<compile_context>
chip_gen: v5e
topology: v5e:2x2
jax: 0.10.0
libtpu: 0.0.40
codegen_flags: <defaults>
</compile_context>

<pallas_src>
import functools

import jax
import jax.numpy as jnp
from jax.experimental import pallas as pl
from jax.experimental.pallas import tpu as pltpu


# ---------------------------------------------------------------------------
# Fused Pallas kernel: one grid step == one image
# ---------------------------------------------------------------------------
def _alexnet_fused_kernel(x_ref, w1_ref, b1_ref, w2_ref, b2_ref, w3_ref, b3_ref,
                          wf1_ref, bf1_ref, wf2_ref, bf2_ref, out_ref,
                          act1_ref, pad2_ref, act2_ref, pad3_ref):
    bf16 = jnp.bfloat16

    def conv3x3_relu(src_ref, oh, ow, w_ref, b_ref):
        # src_ref: zero-padded (oh+2, ow+2, cin) channels-last input (halo = 1).
        # In-kernel im2col: 9 shifted ref reads concatenated along lanes -> one MXU matmul.
        cin = src_ref.shape[-1]
        cols = jnp.concatenate(
            [src_ref[kh:kh + oh, kw:kw + ow, :]
             for kh in range(3) for kw in range(3)],
            axis=-1,
        ).reshape(oh * ow, 9 * cin)                       # (oh*ow, 9*cin)
        acc = jnp.dot(cols.astype(bf16), w_ref[...],
                      preferred_element_type=jnp.float32)
        return jnp.maximum(acc + b_ref[...], 0.0)          # (oh*ow, cout)

    def maxpool2x2_into(src_ref, ih, iw, dst_ref):
        # src_ref: (ih*iw, c) conv output, rows ordered h*iw + w.
        # Writes the (ih/2, iw/2, c) pooled map into the interior of the zero-padded
        # next-layer input dst_ref, using stride-2 sublane reads (pl.ds with stride).
        ow = iw // 2
        for i in range(ih // 2):
            r0 = 2 * i * iw
            r1 = (2 * i + 1) * iw
            top = jnp.maximum(src_ref[pl.ds(r0, ow, 2), :],
                              src_ref[pl.ds(r0 + 1, ow, 2), :])
            bot = jnp.maximum(src_ref[pl.ds(r1, ow, 2), :],
                              src_ref[pl.ds(r1 + 1, ow, 2), :])
            dst_ref[1 + i, 1:ow + 1, :] = jnp.maximum(top, bot)

    # ---- conv1 + ReLU (input already halo/channel padded at the boundary) ----
    act1_ref[...] = conv3x3_relu(x_ref, 16, 16, w1_ref, b1_ref)        # (256, 8)

    # ---- maxpool 2x2 -> zero-padded conv2 input ----
    pad2_ref[...] = jnp.zeros(pad2_ref.shape, pad2_ref.dtype)
    maxpool2x2_into(act1_ref, 16, 16, pad2_ref)                        # interior (8, 8, 8)

    # ---- conv2 + ReLU ----
    act2_ref[...] = conv3x3_relu(pad2_ref, 8, 8, w2_ref, b2_ref)       # (64, 16)

    # ---- maxpool 2x2 -> zero-padded conv3 input ----
    pad3_ref[...] = jnp.zeros(pad3_ref.shape, pad3_ref.dtype)
    maxpool2x2_into(act2_ref, 8, 8, pad3_ref)                          # interior (4, 4, 16)

    # ---- conv3 + ReLU (4x4 spatial), row by row to keep shapes MXU-friendly ----
    cols3 = jnp.concatenate(
        [pad3_ref[kh:kh + 4, kw:kw + 4, :]
         for kh in range(3) for kw in range(3)],
        axis=-1)                                                       # (4, 4, 144)
    rows = []
    for hh in range(4):
        r = jnp.dot(cols3[hh].astype(bf16), w3_ref[...],
                    preferred_element_type=jnp.float32)                # (4, 16)
        rows.append(jnp.maximum(r + b3_ref[...], 0.0))

    # ---- AdaptiveAvgPool2d((2,2)) on 4x4 fused with flatten(CHW order) + fc1 ----
    # The CHW flatten permutation is pre-folded into wf1's (position, cin, cout) layout.
    acc = bf1_ref[...]                                                 # (1, 32)
    for i in range(2):
        for j in range(2):
            pooled = 0.25 * (rows[2 * i][2 * j:2 * j + 1, :]
                             + rows[2 * i][2 * j + 1:2 * j + 2, :]
                             + rows[2 * i + 1][2 * j:2 * j + 1, :]
                             + rows[2 * i + 1][2 * j + 1:2 * j + 2, :])  # (1, 16)
            acc = acc + jnp.dot(pooled.astype(bf16), wf1_ref[2 * i + j],
                                preferred_element_type=jnp.float32)
    h = jnp.maximum(acc, 0.0)                                          # fc1 + ReLU

    # ---- fc2 + ReLU ----
    h = jnp.dot(h.astype(bf16), wf2_ref[...],
                preferred_element_type=jnp.float32) + bf2_ref[...]
    out_ref[...] = jnp.maximum(h, 0.0)                                 # (1, 32)


# ---------------------------------------------------------------------------
# Parameter preparation (PyTorch layouts -> kernel layouts, trace-time only)
# ---------------------------------------------------------------------------
def _prep_params(p):
    bf16 = jnp.bfloat16
    f32 = jnp.float32
    # conv weights: (OC, C, KH, KW) -> (KH*KW*C, OC), conv1 channels zero-padded 4->8.
    w1 = jnp.pad(p["conv1_w"], ((0, 0), (0, 4), (0, 0), (0, 0)))
    w1 = w1.transpose(2, 3, 1, 0).reshape(72, 8).astype(bf16)
    w2 = p["conv2_w"].transpose(2, 3, 1, 0).reshape(72, 16).astype(bf16)
    w3 = p["conv3_w"].transpose(2, 3, 1, 0).reshape(144, 16).astype(bf16)
    b1 = p["conv1_b"].reshape(1, 8).astype(f32)
    b2 = p["conv2_b"].reshape(1, 16).astype(f32)
    b3 = p["conv3_b"].reshape(1, 16).astype(f32)
    # fc1 acts on flatten(NCHW): input index = c*4 + h*2 + w.  Regroup rows by the pooled
    # spatial position pos = h*2 + w so the kernel can fuse avg-pool + flatten + fc1.
    wf1 = (p["fc1_w"].reshape(32, 16, 2, 2)
           .transpose(2, 3, 1, 0).reshape(4, 16, 32).astype(bf16))
    bf1 = p["fc1_b"].reshape(1, 32).astype(f32)
    wf2 = p["fc2_w"].T.astype(bf16)                                    # (in, out)
    bf2 = p["fc2_b"].reshape(1, 32).astype(f32)
    return (w1, b1, w2, b2, w3, b3, wf1, bf1, wf2, bf2)


# ---------------------------------------------------------------------------
# AlexnetBackbone.forward
# ---------------------------------------------------------------------------
def alexnet_backbone_forward(params, x):
    B = x.shape[0]
    kp = _prep_params(params)
    # Single boundary layout op: NCHW -> NHWC, zero-pad channels 4->8 and +1 spatial
    # halo for conv1 (padding=1). Everything downstream lives inside the fused kernel.
    xh = jnp.pad(jnp.transpose(x, (0, 2, 3, 1)),
                 ((0, 0), (1, 1), (1, 1), (0, 4)))                     # (B, 18, 18, 8)

    grid_spec = pltpu.PrefetchScalarGridSpec(
        num_scalar_prefetch=0,
        grid=(B,),
        in_specs=[
            pl.BlockSpec((None, 18, 18, 8), lambda b: (b, 0, 0, 0)),   # one image / step
            pl.BlockSpec((72, 8), lambda b: (0, 0)),
            pl.BlockSpec((1, 8), lambda b: (0, 0)),
            pl.BlockSpec((72, 16), lambda b: (0, 0)),
            pl.BlockSpec((1, 16), lambda b: (0, 0)),
            pl.BlockSpec((144, 16), lambda b: (0, 0)),
            pl.BlockSpec((1, 16), lambda b: (0, 0)),
            pl.BlockSpec((4, 16, 32), lambda b: (0, 0, 0)),
            pl.BlockSpec((1, 32), lambda b: (0, 0)),
            pl.BlockSpec((32, 32), lambda b: (0, 0)),
            pl.BlockSpec((1, 32), lambda b: (0, 0)),
        ],
        out_specs=pl.BlockSpec((None, 1, 32), lambda b: (b, 0, 0)),
        scratch_shapes=[
            pltpu.VMEM((256, 8), jnp.float32),     # conv1 output, rows = h*16 + w
            pltpu.VMEM((10, 10, 8), jnp.float32),  # zero-padded conv2 input
            pltpu.VMEM((64, 16), jnp.float32),     # conv2 output, rows = h*8 + w
            pltpu.VMEM((6, 6, 16), jnp.float32),   # zero-padded conv3 input
        ],
    )
    out = pl.pallas_call(
        _alexnet_fused_kernel,
        out_shape=jax.ShapeDtypeStruct((B, 1, 32), jnp.float32),
        grid_spec=grid_spec,
        compiler_params=pltpu.CompilerParams(
            dimension_semantics=("parallel",)),    # v7x: one image per TensorCore
    )(xh, *kp)
    return out.reshape(B, 32)


# ---------------------------------------------------------------------------
# Scaled-down AlexNet-style parameters (deterministic init, PyTorch layouts)
# ---------------------------------------------------------------------------
def init_params():
    key = jax.random.PRNGKey(0)
    ks = jax.random.split(key, 10)

    def winit(k, shape, fan_in):
        return jax.random.normal(k, shape, jnp.float32) / jnp.sqrt(float(fan_in))

    return {
        # pre_features: conv stack
        "conv1_w": winit(ks[0], (8, 4, 3, 3), 4 * 9),
        "conv1_b": 0.01 * jax.random.normal(ks[1], (8,), jnp.float32),
        "conv2_w": winit(ks[2], (16, 8, 3, 3), 8 * 9),
        "conv2_b": 0.01 * jax.random.normal(ks[3], (16,), jnp.float32),
        "conv3_w": winit(ks[4], (16, 16, 3, 3), 16 * 9),
        "conv3_b": 0.01 * jax.random.normal(ks[5], (16,), jnp.float32),
        # features: classifier minus final Linear (PyTorch (out, in) layout)
        # TODO(synk): Dropout layers of classifier[:-1] are stochastic only in train
        # mode; they are identity here (eval/inference semantics).
        "fc1_w": winit(ks[6], (32, 16 * 2 * 2), 16 * 2 * 2),
        "fc1_b": 0.01 * jax.random.normal(ks[7], (32,), jnp.float32),
        "fc2_w": winit(ks[8], (32, 32), 32),
        "fc2_b": 0.01 * jax.random.normal(ks[9], (32,), jnp.float32),
    }


if __name__ == "__main__":
    params = init_params()
    x = jax.random.normal(jax.random.PRNGKey(0), (2, 4, 16, 16), jnp.float32)
    fwd = jax.jit(functools.partial(alexnet_backbone_forward, params))
    out = jax.block_until_ready(fwd(x))
    assert out.shape == (2, 32), out.shape
    assert bool(jnp.all(jnp.isfinite(out)))
    print("KERNEL_OK")
</pallas_src>

<mosaic_0001>
module attributes {stable_mosaic.version = 11 : i64} {
  func.func @_alexnet_fused_kernel(%arg0: i32, %arg1: memref<1x18x18x8xf32, #tpu.memory_space<vmem>>, %arg2: memref<72x8xbf16, #tpu.memory_space<vmem>>, %arg3: memref<1x8xf32, #tpu.memory_space<vmem>>, %arg4: memref<72x16xbf16, #tpu.memory_space<vmem>>, %arg5: memref<1x16xf32, #tpu.memory_space<vmem>>, %arg6: memref<144x16xbf16, #tpu.memory_space<vmem>>, %arg7: memref<1x16xf32, #tpu.memory_space<vmem>>, %arg8: memref<4x16x32xbf16, #tpu.memory_space<vmem>>, %arg9: memref<1x32xf32, #tpu.memory_space<vmem>>, %arg10: memref<32x32xbf16, #tpu.memory_space<vmem>>, %arg11: memref<1x32xf32, #tpu.memory_space<vmem>>, %arg12: memref<1x1x32xf32, #tpu.memory_space<vmem>>, %arg13: memref<256x8xf32, #tpu.memory_space<vmem>>, %arg14: memref<10x10x8xf32, #tpu.memory_space<vmem>>, %arg15: memref<64x16xf32, #tpu.memory_space<vmem>>, %arg16: memref<6x6x16xf32, #tpu.memory_space<vmem>>) attributes {dimension_semantics = [#tpu.dimension_semantics<parallel>], iteration_bounds = array<i64: 2>, scalar_prefetch = 0 : i64, scratch_operands = 4 : i64, tpu.core_type = #tpu.core_type<tc>, window_params = [{transform_indices = @transform_0, window_bounds = array<i64: 1, 18, 18, 8>}, {pipeline_mode = #tpu.pipeline_mode<synchronous>, transform_indices = @transform_1, window_bounds = array<i64: 72, 8>}, {pipeline_mode = #tpu.pipeline_mode<synchronous>, transform_indices = @transform_2, window_bounds = array<i64: 1, 8>}, {pipeline_mode = #tpu.pipeline_mode<synchronous>, transform_indices = @transform_3, window_bounds = array<i64: 72, 16>}, {pipeline_mode = #tpu.pipeline_mode<synchronous>, transform_indices = @transform_4, window_bounds = array<i64: 1, 16>}, {pipeline_mode = #tpu.pipeline_mode<synchronous>, transform_indices = @transform_5, window_bounds = array<i64: 144, 16>}, {pipeline_mode = #tpu.pipeline_mode<synchronous>, transform_indices = @transform_6, window_bounds = array<i64: 1, 16>}, {pipeline_mode = #tpu.pipeline_mode<synchronous>, transform_indices = @transform_7, window_bounds = array<i64: 4, 16, 32>}, {pipeline_mode = #tpu.pipeline_mode<synchronous>, transform_indices = @transform_8, window_bounds = array<i64: 1, 32>}, {pipeline_mode = #tpu.pipeline_mode<synchronous>, transform_indices = @transform_9, window_bounds = array<i64: 32, 32>}, {pipeline_mode = #tpu.pipeline_mode<synchronous>, transform_indices = @transform_10, window_bounds = array<i64: 1, 32>}, {transform_indices = @transform_11, window_bounds = array<i64: 1, 1, 32>}]} {
    %c0 = arith.constant 0 : index
    %c0_0 = arith.constant 0 : index
    %c0_1 = arith.constant 0 : index
    %c0_2 = arith.constant 0 : index
    %0 = vector.load %arg1[%c0, %c0_0, %c0_1, %c0_2] : memref<1x18x18x8xf32, #tpu.memory_space<vmem>>, vector<1x16x16x8xf32>
    %1 = vector.shape_cast %0 : vector<1x16x16x8xf32> to vector<16x16x8xf32>
    %c0_3 = arith.constant 0 : index
    %c0_4 = arith.constant 0 : index
    %c1 = arith.constant 1 : index
    %c0_5 = arith.constant 0 : index
    %2 = vector.load %arg1[%c0_3, %c0_4, %c1, %c0_5] : memref<1x18x18x8xf32, #tpu.memory_space<vmem>>, vector<1x16x16x8xf32>
    %3 = vector.shape_cast %2 : vector<1x16x16x8xf32> to vector<16x16x8xf32>
    %c0_6 = arith.constant 0 : index
    %c0_7 = arith.constant 0 : index
    %c2 = arith.constant 2 : index
    %c0_8 = arith.constant 0 : index
    %4 = vector.load %arg1[%c0_6, %c0_7, %c2, %c0_8] : memref<1x18x18x8xf32, #tpu.memory_space<vmem>>, vector<1x16x16x8xf32>
    %5 = vector.shape_cast %4 : vector<1x16x16x8xf32> to vector<16x16x8xf32>
    %c0_9 = arith.constant 0 : index
    %c1_10 = arith.constant 1 : index
    %c0_11 = arith.constant 0 : index
    %c0_12 = arith.constant 0 : index
    %6 = vector.load %arg1[%c0_9, %c1_10, %c0_11, %c0_12] : memref<1x18x18x8xf32, #tpu.memory_space<vmem>>, vector<1x16x16x8xf32>
    %7 = vector.shape_cast %6 : vector<1x16x16x8xf32> to vector<16x16x8xf32>
    %c0_13 = arith.constant 0 : index
    %c1_14 = arith.constant 1 : index
    %c1_15 = arith.constant 1 : index
    %c0_16 = arith.constant 0 : index
    %8 = vector.load %arg1[%c0_13, %c1_14, %c1_15, %c0_16] : memref<1x18x18x8xf32, #tpu.memory_space<vmem>>, vector<1x16x16x8xf32>
    %9 = vector.shape_cast %8 : vector<1x16x16x8xf32> to vector<16x16x8xf32>
    %c0_17 = arith.constant 0 : index
    %c1_18 = arith.constant 1 : index
    %c2_19 = arith.constant 2 : index
    %c0_20 = arith.constant 0 : index
    %10 = vector.load %arg1[%c0_17, %c1_18, %c2_19, %c0_20] : memref<1x18x18x8xf32, #tpu.memory_space<vmem>>, vector<1x16x16x8xf32>
    %11 = vector.shape_cast %10 : vector<1x16x16x8xf32> to vector<16x16x8xf32>
    %c0_21 = arith.constant 0 : index
    %c2_22 = arith.constant 2 : index
    %c0_23 = arith.constant 0 : index
    %c0_24 = arith.constant 0 : index
    %12 = vector.load %arg1[%c0_21, %c2_22, %c0_23, %c0_24] : memref<1x18x18x8xf32, #tpu.memory_space<vmem>>, vector<1x16x16x8xf32>
    %13 = vector.shape_cast %12 : vector<1x16x16x8xf32> to vector<16x16x8xf32>
    %c0_25 = arith.constant 0 : index
    %c2_26 = arith.constant 2 : index
    %c1_27 = arith.constant 1 : index
    %c0_28 = arith.constant 0 : index
    %14 = vector.load %arg1[%c0_25, %c2_26, %c1_27, %c0_28] : memref<1x18x18x8xf32, #tpu.memory_space<vmem>>, vector<1x16x16x8xf32>
    %15 = vector.shape_cast %14 : vector<1x16x16x8xf32> to vector<16x16x8xf32>
    %c0_29 = arith.constant 0 : index
    %c2_30 = arith.constant 2 : index
    %c2_31 = arith.constant 2 : index
    %c0_32 = arith.constant 0 : index
    %16 = vector.load %arg1[%c0_29, %c2_30, %c2_31, %c0_32] : memref<1x18x18x8xf32, #tpu.memory_space<vmem>>, vector<1x16x16x8xf32>
    %17 = vector.shape_cast %16 : vector<1x16x16x8xf32> to vector<16x16x8xf32>
    %18 = tpu.concatenate %1, %3, %5, %7, %9, %11, %13, %15, %17 in 2 : vector<16x16x8xf32>, vector<16x16x8xf32>, vector<16x16x8xf32>, vector<16x16x8xf32>, vector<16x16x8xf32>, vector<16x16x8xf32>, vector<16x16x8xf32>, vector<16x16x8xf32>, vector<16x16x8xf32> -> vector<16x16x72xf32>
    %19 = vector.shape_cast %18 : vector<16x16x72xf32> to vector<256x72xf32>
    %20 = arith.truncf %19 : vector<256x72xf32> to vector<256x72xbf16>
    %c0_33 = arith.constant 0 : index
    %c0_34 = arith.constant 0 : index
    %21 = vector.load %arg2[%c0_33, %c0_34] : memref<72x8xbf16, #tpu.memory_space<vmem>>, vector<72x8xbf16>
    %cst = arith.constant dense<0.000000e+00> : vector<256x8xf32>
    %22 = tpu.matmul %20, %21, %cst {dimension_numbers = #tpu.dot_dimension_numbers<[1], [0], [0], [1], [0, 0, 1, 1], [], []>} : vector<256x72xbf16>, vector<72x8xbf16>, vector<256x8xf32> -> vector<256x8xf32>
    %c0_35 = arith.constant 0 : index
    %c0_36 = arith.constant 0 : index
    %23 = vector.load %arg3[%c0_35, %c0_36] : memref<1x8xf32, #tpu.memory_space<vmem>>, vector<1x8xf32>
    %24 = vector.broadcast %23 : vector<1x8xf32> to vector<256x8xf32>
    %25 = arith.addf %22, %24 : vector<256x8xf32>
    %cst_37 = arith.constant 0.000000e+00 : f32
    %26 = vector.broadcast %cst_37 : f32 to vector<256x8xf32>
    %27 = arith.maximumf %25, %26 : vector<256x8xf32>
    %c0_38 = arith.constant 0 : index
    %c0_39 = arith.constant 0 : index
    %28 = vector.load %arg13[%c0_38, %c0_39] : memref<256x8xf32, #tpu.memory_space<vmem>>, vector<256x8xf32>
    tpu.vector_store %arg13[%c0_38, %c0_39], %27 {strides = array<i32>} : memref<256x8xf32, #tpu.memory_space<vmem>>, vector<256x8xf32>,
    %cst_40 = arith.constant 0.000000e+00 : f32
    %29 = vector.broadcast %cst_40 : f32 to vector<10x10x8xf32>
    %c0_41 = arith.constant 0 : index
    %c0_42 = arith.constant 0 : index
    %c0_43 = arith.constant 0 : index
    %30 = vector.load %arg14[%c0_41, %c0_42, %c0_43] : memref<10x10x8xf32, #tpu.memory_space<vmem>>, vector<10x10x8xf32>
    tpu.vector_store %arg14[%c0_41, %c0_42, %c0_43], %29 {strides = array<i32>} : memref<10x10x8xf32, #tpu.memory_space<vmem>>, vector<10x10x8xf32>,
    %c0_44 = arith.constant 0 : index
    %c0_45 = arith.constant 0 : index
    %31 = tpu.strided_load %arg13[%c0_44, %c0_45] {strides = array<i32: 2, 1>} : memref<256x8xf32, #tpu.memory_space<vmem>>, vector<8x8xf32>
    %c1_46 = arith.constant 1 : index
    %c0_47 = arith.constant 0 : index
    %32 = tpu.strided_load %arg13[%c1_46, %c0_47] {strides = array<i32: 2, 1>} : memref<256x8xf32, #tpu.memory_space<vmem>>, vector<8x8xf32>
    %33 = arith.maximumf %31, %32 : vector<8x8xf32>
    %c16 = arith.constant 16 : index
    %c0_48 = arith.constant 0 : index
    %34 = tpu.strided_load %arg13[%c16, %c0_48] {strides = array<i32: 2, 1>} : memref<256x8xf32, #tpu.memory_space<vmem>>, vector<8x8xf32>
    %c17 = arith.constant 17 : index
    %c0_49 = arith.constant 0 : index
    %35 = tpu.strided_load %arg13[%c17, %c0_49] {strides = array<i32: 2, 1>} : memref<256x8xf32, #tpu.memory_space<vmem>>, vector<8x8xf32>
    %36 = arith.maximumf %34, %35 : vector<8x8xf32>
    %37 = arith.maximumf %33, %36 : vector<8x8xf32>
    %c1_50 = arith.constant 1 : index
    %c1_51 = arith.constant 1 : index
    %c0_52 = arith.constant 0 : index
    %38 = vector.load %arg14[%c1_50, %c1_51, %c0_52] : memref<10x10x8xf32, #tpu.memory_space<vmem>>, vector<1x8x8xf32>
    %39 = vector.shape_cast %38 : vector<1x8x8xf32> to vector<8x8xf32>
    %40 = vector.shape_cast %37 : vector<8x8xf32> to vector<1x8x8xf32>
    tpu.vector_store %arg14[%c1_50, %c1_51, %c0_52], %40 {strides = array<i32>} : memref<10x10x8xf32, #tpu.memory_space<vmem>>, vector<1x8x8xf32>,
    %c32 = arith.constant 32 : index
    %c0_53 = arith.constant 0 : index
    %41 = tpu.strided_load %arg13[%c32, %c0_53] {strides = array<i32: 2, 1>} : memref<256x8xf32, #tpu.memory_space<vmem>>, vector<8x8xf32>
    %c33 = arith.constant 33 : index
    %c0_54 = arith.constant 0 : index
    %42 = tpu.strided_load %arg13[%c33, %c0_54] {strides = array<i32: 2, 1>} : memref<256x8xf32, #tpu.memory_space<vmem>>, vector<8x8xf32>
    %43 = arith.maximumf %41, %42 : vector<8x8xf32>
    %c48 = arith.constant 48 : index
    %c0_55 = arith.constant 0 : index
    %44 = tpu.strided_load %arg13[%c48, %c0_55] {strides = array<i32: 2, 1>} : memref<256x8xf32, #tpu.memory_space<vmem>>, vector<8x8xf32>
    %c49 = arith.constant 49 : index
    %c0_56 = arith.constant 0 : index
    %45 = tpu.strided_load %arg13[%c49, %c0_56] {strides = array<i32: 2, 1>} : memref<256x8xf32, #tpu.memory_space<vmem>>, vector<8x8xf32>
    %46 = arith.maximumf %44, %45 : vector<8x8xf32>
    %47 = arith.maximumf %43, %46 : vector<8x8xf32>
    %c2_57 = arith.constant 2 : index
    %c1_58 = arith.constant 1 : index
    %c0_59 = arith.constant 0 : index
    %48 = vector.load %arg14[%c2_57, %c1_58, %c0_59] : memref<10x10x8xf32, #tpu.memory_space<vmem>>, vector<1x8x8xf32>
    %49 = vector.shape_cast %48 : vector<1x8x8xf32> to vector<8x8xf32>
    %50 = vector.shape_cast %47 : vector<8x8xf32> to vector<1x8x8xf32>
    tpu.vector_store %arg14[%c2_57, %c1_58, %c0_59], %50 {strides = array<i32>} : memref<10x10x8xf32, #tpu.memory_space<vmem>>, vector<1x8x8xf32>,
    %c64 = arith.constant 64 : index
    %c0_60 = arith.constant 0 : index
    %51 = tpu.strided_load %arg13[%c64, %c0_60] {strides = array<i32: 2, 1>} : memref<256x8xf32, #tpu.memory_space<vmem>>, vector<8x8xf32>
    %c65 = arith.constant 65 : index
    %c0_61 = arith.constant 0 : index
    %52 = tpu.strided_load %arg13[%c65, %c0_61] {strides = array<i32: 2, 1>} : memref<256x8xf32, #tpu.memory_space<vmem>>, vector<8x8xf32>
    %53 = arith.maximumf %51, %52 : vector<8x8xf32>
    %c80 = arith.constant 80 : index
    %c0_62 = arith.constant 0 : index
    %54 = tpu.strided_load %arg13[%c80, %c0_62] {strides = array<i32: 2, 1>} : memref<256x8xf32, #tpu.memory_space<vmem>>, vector<8x8xf32>
    %c81 = arith.constant 81 : index
    %c0_63 = arith.constant 0 : index
    %55 = tpu.strided_load %arg13[%c81, %c0_63] {strides = array<i32: 2, 1>} : memref<256x8xf32, #tpu.memory_space<vmem>>, vector<8x8xf32>
    %56 = arith.maximumf %54, %55 : vector<8x8xf32>
    %57 = arith.maximumf %53, %56 : vector<8x8xf32>
    %c3 = arith.constant 3 : index
    %c1_64 = arith.constant 1 : index
    %c0_65 = arith.constant 0 : index
    %58 = vector.load %arg14[%c3, %c1_64, %c0_65] : memref<10x10x8xf32, #tpu.memory_space<vmem>>, vector<1x8x8xf32>
    %59 = vector.shape_cast %58 : vector<1x8x8xf32> to vector<8x8xf32>
    %60 = vector.shape_cast %57 : vector<8x8xf32> to vector<1x8x8xf32>
    tpu.vector_store %arg14[%c3, %c1_64, %c0_65], %60 {strides = array<i32>} : memref<10x10x8xf32, #tpu.memory_space<vmem>>, vector<1x8x8xf32>,
    %c96 = arith.constant 96 : index
    %c0_66 = arith.constant 0 : index
    %61 = tpu.strided_load %arg13[%c96, %c0_66] {strides = array<i32: 2, 1>} : memref<256x8xf32, #tpu.memory_space<vmem>>, vector<8x8xf32>
    %c97 = arith.constant 97 : index
    %c0_67 = arith.constant 0 : index
    %62 = tpu.strided_load %arg13[%c97, %c0_67] {strides = array<i32: 2, 1>} : memref<256x8xf32, #tpu.memory_space<vmem>>, vector<8x8xf32>
    %63 = arith.maximumf %61, %62 : vector<8x8xf32>
    %c112 = arith.constant 112 : index
    %c0_68 = arith.constant 0 : index
    %64 = tpu.strided_load %arg13[%c112, %c0_68] {strides = array<i32: 2, 1>} : memref<256x8xf32, #tpu.memory_space<vmem>>, vector<8x8xf32>
    %c113 = arith.constant 113 : index
    %c0_69 = arith.constant 0 : index
    %65 = tpu.strided_load %arg13[%c113, %c0_69] {strides = array<i32: 2, 1>} : memref<256x8xf32, #tpu.memory_space<vmem>>, vector<8x8xf32>
    %66 = arith.maximumf %64, %65 : vector<8x8xf32>
    %67 = arith.maximumf %63, %66 : vector<8x8xf32>
    %c4 = arith.constant 4 : index
    %c1_70 = arith.constant 1 : index
    %c0_71 = arith.constant 0 : index
    %68 = vector.load %arg14[%c4, %c1_70, %c0_71] : memref<10x10x8xf32, #tpu.memory_space<vmem>>, vector<1x8x8xf32>
    %69 = vector.shape_cast %68 : vector<1x8x8xf32> to vector<8x8xf32>
    %70 = vector.shape_cast %67 : vector<8x8xf32> to vector<1x8x8xf32>
    tpu.vector_store %arg14[%c4, %c1_70, %c0_71], %70 {strides = array<i32>} : memref<10x10x8xf32, #tpu.memory_space<vmem>>, vector<1x8x8xf32>,
    %c128 = arith.constant 128 : index
    %c0_72 = arith.constant 0 : index
    %71 = tpu.strided_load %arg13[%c128, %c0_72] {strides = array<i32: 2, 1>} : memref<256x8xf32, #tpu.memory_space<vmem>>, vector<8x8xf32>
    %c129 = arith.constant 129 : index
    %c0_73 = arith.constant 0 : index
    %72 = tpu.strided_load %arg13[%c129, %c0_73] {strides = array<i32: 2, 1>} : memref<256x8xf32, #tpu.memory_space<vmem>>, vector<8x8xf32>
    %73 = arith.maximumf %71, %72 : vector<8x8xf32>
    %c144 = arith.constant 144 : index
    %c0_74 = arith.constant 0 : index
    %74 = tpu.strided_load %arg13[%c144, %c0_74] {strides = array<i32: 2, 1>} : memref<256x8xf32, #tpu.memory_space<vmem>>, vector<8x8xf32>
    %c145 = arith.constant 145 : index
    %c0_75 = arith.constant 0 : index
    %75 = tpu.strided_load %arg13[%c145, %c0_75] {strides = array<i32: 2, 1>} : memref<256x8xf32, #tpu.memory_space<vmem>>, vector<8x8xf32>
    %76 = arith.maximumf %74, %75 : vector<8x8xf32>
    %77 = arith.maximumf %73, %76 : vector<8x8xf32>
    %c5 = arith.constant 5 : index
    %c1_76 = arith.constant 1 : index
    %c0_77 = arith.constant 0 : index
    %78 = vector.load %arg14[%c5, %c1_76, %c0_77] : memref<10x10x8xf32, #tpu.memory_space<vmem>>, vector<1x8x8xf32>
    %79 = vector.shape_cast %78 : vector<1x8x8xf32> to vector<8x8xf32>
    %80 = vector.shape_cast %77 : vector<8x8xf32> to vector<1x8x8xf32>
    tpu.vector_store %arg14[%c5, %c1_76, %c0_77], %80 {strides = array<i32>} : memref<10x10x8xf32, #tpu.memory_space<vmem>>, vector<1x8x8xf32>,
    %c160 = arith.constant 160 : index
    %c0_78 = arith.constant 0 : index
    %81 = tpu.strided_load %arg13[%c160, %c0_78] {strides = array<i32: 2, 1>} : memref<256x8xf32, #tpu.memory_space<vmem>>, vector<8x8xf32>
    %c161 = arith.constant 161 : index
    %c0_79 = arith.constant 0 : index
    %82 = tpu.strided_load %arg13[%c161, %c0_79] {strides = array<i32: 2, 1>} : memref<256x8xf32, #tpu.memory_space<vmem>>, vector<8x8xf32>
    %83 = arith.maximumf %81, %82 : vector<8x8xf32>
    %c176 = arith.constant 176 : index
    %c0_80 = arith.constant 0 : index
    %84 = tpu.strided_load %arg13[%c176, %c0_80] {strides = array<i32: 2, 1>} : memref<256x8xf32, #tpu.memory_space<vmem>>, vector<8x8xf32>
    %c177 = arith.constant 177 : index
    %c0_81 = arith.constant 0 : index
    %85 = tpu.strided_load %arg13[%c177, %c0_81] {strides = array<i32: 2, 1>} : memref<256x8xf32, #tpu.memory_space<vmem>>, vector<8x8xf32>
    %86 = arith.maximumf %84, %85 : vector<8x8xf32>
    %87 = arith.maximumf %83, %86 : vector<8x8xf32>
    %c6 = arith.constant 6 : index
    %c1_82 = arith.constant 1 : index
    %c0_83 = arith.constant 0 : index
    %88 = vector.load %arg14[%c6, %c1_82, %c0_83] : memref<10x10x8xf32, #tpu.memory_space<vmem>>, vector<1x8x8xf32>
    %89 = vector.shape_cast %88 : vector<1x8x8xf32> to vector<8x8xf32>
    %90 = vector.shape_cast %87 : vector<8x8xf32> to vector<1x8x8xf32>
    tpu.vector_store %arg14[%c6, %c1_82, %c0_83], %90 {strides = array<i32>} : memref<10x10x8xf32, #tpu.memory_space<vmem>>, vector<1x8x8xf32>,
    %c192 = arith.constant 192 : index
    %c0_84 = arith.constant 0 : index
    %91 = tpu.strided_load %arg13[%c192, %c0_84] {strides = array<i32: 2, 1>} : memref<256x8xf32, #tpu.memory_space<vmem>>, vector<8x8xf32>
    %c193 = arith.constant 193 : index
    %c0_85 = arith.constant 0 : index
    %92 = tpu.strided_load %arg13[%c193, %c0_85] {strides = array<i32: 2, 1>} : memref<256x8xf32, #tpu.memory_space<vmem>>, vector<8x8xf32>
    %93 = arith.maximumf %91, %92 : vector<8x8xf32>
    %c208 = arith.constant 208 : index
    %c0_86 = arith.constant 0 : index
    %94 = tpu.strided_load %arg13[%c208, %c0_86] {strides = array<i32: 2, 1>} : memref<256x8xf32, #tpu.memory_space<vmem>>, vector<8x8xf32>
    %c209 = arith.constant 209 : index
    %c0_87 = arith.constant 0 : index
    %95 = tpu.strided_load %arg13[%c209, %c0_87] {strides = array<i32: 2, 1>} : memref<256x8xf32, #tpu.memory_space<vmem>>, vector<8x8xf32>
    %96 = arith.maximumf %94, %95 : vector<8x8xf32>
    %97 = arith.maximumf %93, %96 : vector<8x8xf32>
    %c7 = arith.constant 7 : index
    %c1_88 = arith.constant 1 : index
    %c0_89 = arith.constant 0 : index
    %98 = vector.load %arg14[%c7, %c1_88, %c0_89] : memref<10x10x8xf32, #tpu.memory_space<vmem>>, vector<1x8x8xf32>
    %99 = vector.shape_cast %98 : vector<1x8x8xf32> to vector<8x8xf32>
    %100 = vector.shape_cast %97 : vector<8x8xf32> to vector<1x8x8xf32>
    tpu.vector_store %arg14[%c7, %c1_88, %c0_89], %100 {strides = array<i32>} : memref<10x10x8xf32, #tpu.memory_space<vmem>>, vector<1x8x8xf32>,
    %c224 = arith.constant 224 : index
    %c0_90 = arith.constant 0 : index
    %101 = tpu.strided_load %arg13[%c224, %c0_90] {strides = array<i32: 2, 1>} : memref<256x8xf32, #tpu.memory_space<vmem>>, vector<8x8xf32>
    %c225 = arith.constant 225 : index
    %c0_91 = arith.constant 0 : index
    %102 = tpu.strided_load %arg13[%c225, %c0_91] {strides = array<i32: 2, 1>} : memref<256x8xf32, #tpu.memory_space<vmem>>, vector<8x8xf32>
    %103 = arith.maximumf %101, %102 : vector<8x8xf32>
    %c240 = arith.constant 240 : index
    %c0_92 = arith.constant 0 : index
    %104 = tpu.strided_load %arg13[%c240, %c0_92] {strides = array<i32: 2, 1>} : memref<256x8xf32, #tpu.memory_space<vmem>>, vector<8x8xf32>
    %c241 = arith.constant 241 : index
    %c0_93 = arith.constant 0 : index
    %105 = tpu.strided_load %arg13[%c241, %c0_93] {strides = array<i32: 2, 1>} : memref<256x8xf32, #tpu.memory_space<vmem>>, vector<8x8xf32>
    %106 = arith.maximumf %104, %105 : vector<8x8xf32>
    %107 = arith.maximumf %103, %106 : vector<8x8xf32>
    %c8 = arith.constant 8 : index
    %c1_94 = arith.constant 1 : index
    %c0_95 = arith.constant 0 : index
    %108 = vector.load %arg14[%c8, %c1_94, %c0_95] : memref<10x10x8xf32, #tpu.memory_space<vmem>>, vector<1x8x8xf32>
    %109 = vector.shape_cast %108 : vector<1x8x8xf32> to vector<8x8xf32>
    %110 = vector.shape_cast %107 : vector<8x8xf32> to vector<1x8x8xf32>
    tpu.vector_store %arg14[%c8, %c1_94, %c0_95], %110 {strides = array<i32>} : memref<10x10x8xf32, #tpu.memory_space<vmem>>, vector<1x8x8xf32>,
    %c0_96 = arith.constant 0 : index
    %c0_97 = arith.constant 0 : index
    %c0_98 = arith.constant 0 : index
    %111 = vector.load %arg14[%c0_96, %c0_97, %c0_98] : memref<10x10x8xf32, #tpu.memory_space<vmem>>, vector<8x8x8xf32>
    %c0_99 = arith.constant 0 : index
    %c1_100 = arith.constant 1 : index
    %c0_101 = arith.constant 0 : index
    %112 = vector.load %arg14[%c0_99, %c1_100, %c0_101] : memref<10x10x8xf32, #tpu.memory_space<vmem>>, vector<8x8x8xf32>
    %c0_102 = arith.constant 0 : index
    %c2_103 = arith.constant 2 : index
    %c0_104 = arith.constant 0 : index
    %113 = vector.load %arg14[%c0_102, %c2_103, %c0_104] : memref<10x10x8xf32, #tpu.memory_space<vmem>>, vector<8x8x8xf32>
    %c1_105 = arith.constant 1 : index
    %c0_106 = arith.constant 0 : index
    %c0_107 = arith.constant 0 : index
    %114 = vector.load %arg14[%c1_105, %c0_106, %c0_107] : memref<10x10x8xf32, #tpu.memory_space<vmem>>, vector<8x8x8xf32>
    %c1_108 = arith.constant 1 : index
    %c1_109 = arith.constant 1 : index
    %c0_110 = arith.constant 0 : index
    %115 = vector.load %arg14[%c1_108, %c1_109, %c0_110] : memref<10x10x8xf32, #tpu.memory_space<vmem>>, vector<8x8x8xf32>
    %c1_111 = arith.constant 1 : index
    %c2_112 = arith.constant 2 : index
    %c0_113 = arith.constant 0 : index
    %116 = vector.load %arg14[%c1_111, %c2_112, %c0_113] : memref<10x10x8xf32, #tpu.memory_space<vmem>>, vector<8x8x8xf32>
    %c2_114 = arith.constant 2 : index
    %c0_115 = arith.constant 0 : index
    %c0_116 = arith.constant 0 : index
    %117 = vector.load %arg14[%c2_114, %c0_115, %c0_116] : memref<10x10x8xf32, #tpu.memory_space<vmem>>, vector<8x8x8xf32>
    %c2_117 = arith.constant 2 : index
    %c1_118 = arith.constant 1 : index
    %c0_119 = arith.constant 0 : index
    %118 = vector.load %arg14[%c2_117, %c1_118, %c0_119] : memref<10x10x8xf32, #tpu.memory_space<vmem>>, vector<8x8x8xf32>
    %c2_120 = arith.constant 2 : index
    %c2_121 = arith.constant 2 : index
    %c0_122 = arith.constant 0 : index
    %119 = vector.load %arg14[%c2_120, %c2_121, %c0_122] : memref<10x10x8xf32, #tpu.memory_space<vmem>>, vector<8x8x8xf32>
    %120 = tpu.concatenate %111, %112, %113, %114, %115, %116, %117, %118, %119 in 2 : vector<8x8x8xf32>, vector<8x8x8xf32>, vector<8x8x8xf32>, vector<8x8x8xf32>, vector<8x8x8xf32>, vector<8x8x8xf32>, vector<8x8x8xf32>, vector<8x8x8xf32>, vector<8x8x8xf32> -> vector<8x8x72xf32>
    %121 = vector.shape_cast %120 : vector<8x8x72xf32> to vector<64x72xf32>
    %122 = arith.truncf %121 : vector<64x72xf32> to vector<64x72xbf16>
    %c0_123 = arith.constant 0 : index
    %c0_124 = arith.constant 0 : index
    %123 = vector.load %arg4[%c0_123, %c0_124] : memref<72x16xbf16, #tpu.memory_space<vmem>>, vector<72x16xbf16>
    %cst_125 = arith.constant dense<0.000000e+00> : vector<64x16xf32>
    %124 = tpu.matmul %122, %123, %cst_125 {dimension_numbers = #tpu.dot_dimension_numbers<[1], [0], [0], [1], [0, 0, 1, 1], [], []>} : vector<64x72xbf16>, vector<72x16xbf16>, vector<64x16xf32> -> vector<64x16xf32>
    %c0_126 = arith.constant 0 : index
    %c0_127 = arith.constant 0 : index
    %125 = vector.load %arg5[%c0_126, %c0_127] : memref<1x16xf32, #tpu.memory_space<vmem>>, vector<1x16xf32>
    %126 = vector.broadcast %125 : vector<1x16xf32> to vector<64x16xf32>
    %127 = arith.addf %124, %126 : vector<64x16xf32>
    %cst_128 = arith.constant 0.000000e+00 : f32
    %128 = vector.broadcast %cst_128 : f32 to vector<64x16xf32>
    %129 = arith.maximumf %127, %128 : vector<64x16xf32>
    %c0_129 = arith.constant 0 : index
    %c0_130 = arith.constant 0 : index
    %130 = vector.load %arg15[%c0_129, %c0_130] : memref<64x16xf32, #tpu.memory_space<vmem>>, vector<64x16xf32>
    tpu.vector_store %arg15[%c0_129, %c0_130], %129 {strides = array<i32>} : memref<64x16xf32, #tpu.memory_space<vmem>>, vector<64x16xf32>,
    %cst_131 = arith.constant 0.000000e+00 : f32
    %131 = vector.broadcast %cst_131 : f32 to vector<6x6x16xf32>
    %c0_132 = arith.constant 0 : index
    %c0_133 = arith.constant 0 : index
    %c0_134 = arith.constant 0 : index
    %132 = vector.load %arg16[%c0_132, %c0_133, %c0_134] : memref<6x6x16xf32, #tpu.memory_space<vmem>>, vector<6x6x16xf32>
    tpu.vector_store %arg16[%c0_132, %c0_133, %c0_134], %131 {strides = array<i32>} : memref<6x6x16xf32, #tpu.memory_space<vmem>>, vector<6x6x16xf32>,
    %c0_135 = arith.constant 0 : index
    %c0_136 = arith.constant 0 : index
    %133 = tpu.strided_load %arg15[%c0_135, %c0_136] {strides = array<i32: 2, 1>} : memref<64x16xf32, #tpu.memory_space<vmem>>, vector<4x16xf32>
    %c1_137 = arith.constant 1 : index
    %c0_138 = arith.constant 0 : index
    %134 = tpu.strided_load %arg15[%c1_137, %c0_138] {strides = array<i32: 2, 1>} : memref<64x16xf32, #tpu.memory_space<vmem>>, vector<4x16xf32>
    %135 = arith.maximumf %133, %134 : vector<4x16xf32>
    %c8_139 = arith.constant 8 : index
    %c0_140 = arith.constant 0 : index
    %136 = tpu.strided_load %arg15[%c8_139, %c0_140] {strides = array<i32: 2, 1>} : memref<64x16xf32, #tpu.memory_space<vmem>>, vector<4x16xf32>
    %c9 = arith.constant 9 : index
    %c0_141 = arith.constant 0 : index
    %137 = tpu.strided_load %arg15[%c9, %c0_141] {strides = array<i32: 2, 1>} : memref<64x16xf32, #tpu.memory_space<vmem>>, vector<4x16xf32>
    %138 = arith.maximumf %136, %137 : vector<4x16xf32>
    %139 = arith.maximumf %135, %138 : vector<4x16xf32>
    %c1_142 = arith.constant 1 : index
    %c1_143 = arith.constant 1 : index
    %c0_144 = arith.constant 0 : index
    %140 = vector.load %arg16[%c1_142, %c1_143, %c0_144] : memref<6x6x16xf32, #tpu.memory_space<vmem>>, vector<1x4x16xf32>
    %141 = vector.shape_cast %140 : vector<1x4x16xf32> to vector<4x16xf32>
    %142 = vector.shape_cast %139 : vector<4x16xf32> to vector<1x4x16xf32>
    tpu.vector_store %arg16[%c1_142, %c1_143, %c0_144], %142 {strides = array<i32>} : memref<6x6x16xf32, #tpu.memory_space<vmem>>, vector<1x4x16xf32>,
    %c16_145 = arith.constant 16 : index
    %c0_146 = arith.constant 0 : index
    %143 = tpu.strided_load %arg15[%c16_145, %c0_146] {strides = array<i32: 2, 1>} : memref<64x16xf32, #tpu.memory_space<vmem>>, vector<4x16xf32>
    %c17_147 = arith.constant 17 : index
    %c0_148 = arith.constant 0 : index
    %144 = tpu.strided_load %arg15[%c17_147, %c0_148] {strides = array<i32: 2, 1>} : memref<64x16xf32, #tpu.memory_space<vmem>>, vector<4x16xf32>
    %145 = arith.maximumf %143, %144 : vector<4x16xf32>
    %c24 = arith.constant 24 : index
    %c0_149 = arith.constant 0 : index
    %146 = tpu.strided_load %arg15[%c24, %c0_149] {strides = array<i32: 2, 1>} : memref<64x16xf32, #tpu.memory_space<vmem>>, vector<4x16xf32>
    %c25 = arith.constant 25 : index
    %c0_150 = arith.constant 0 : index
    %147 = tpu.strided_load %arg15[%c25, %c0_150] {strides = array<i32: 2, 1>} : memref<64x16xf32, #tpu.memory_space<vmem>>, vector<4x16xf32>
    %148 = arith.maximumf %146, %147 : vector<4x16xf32>
    %149 = arith.maximumf %145, %148 : vector<4x16xf32>
    %c2_151 = arith.constant 2 : index
    %c1_152 = arith.constant 1 : index
    %c0_153 = arith.constant 0 : index
    %150 = vector.load %arg16[%c2_151, %c1_152, %c0_153] : memref<6x6x16xf32, #tpu.memory_space<vmem>>, vector<1x4x16xf32>
    %151 = vector.shape_cast %150 : vector<1x4x16xf32> to vector<4x16xf32>
    %152 = vector.shape_cast %149 : vector<4x16xf32> to vector<1x4x16xf32>
    tpu.vector_store %arg16[%c2_151, %c1_152, %c0_153], %152 {strides = array<i32>} : memref<6x6x16xf32, #tpu.memory_space<vmem>>, vector<1x4x16xf32>,
    %c32_154 = arith.constant 32 : index
    %c0_155 = arith.constant 0 : index
    %153 = tpu.strided_load %arg15[%c32_154, %c0_155] {strides = array<i32: 2, 1>} : memref<64x16xf32, #tpu.memory_space<vmem>>, vector<4x16xf32>
    %c33_156 = arith.constant 33 : index
    %c0_157 = arith.constant 0 : index
    %154 = tpu.strided_load %arg15[%c33_156, %c0_157] {strides = array<i32: 2, 1>} : memref<64x16xf32, #tpu.memory_space<vmem>>, vector<4x16xf32>
    %155 = arith.maximumf %153, %154 : vector<4x16xf32>
    %c40 = arith.constant 40 : index
    %c0_158 = arith.constant 0 : index
    %156 = tpu.strided_load %arg15[%c40, %c0_158] {strides = array<i32: 2, 1>} : memref<64x16xf32, #tpu.memory_space<vmem>>, vector<4x16xf32>
    %c41 = arith.constant 41 : index
    %c0_159 = arith.constant 0 : index
    %157 = tpu.strided_load %arg15[%c41, %c0_159] {strides = array<i32: 2, 1>} : memref<64x16xf32, #tpu.memory_space<vmem>>, vector<4x16xf32>
    %158 = arith.maximumf %156, %157 : vector<4x16xf32>
    %159 = arith.maximumf %155, %158 : vector<4x16xf32>
    %c3_160 = arith.constant 3 : index
    %c1_161 = arith.constant 1 : index
    %c0_162 = arith.constant 0 : index
    %160 = vector.load %arg16[%c3_160, %c1_161, %c0_162] : memref<6x6x16xf32, #tpu.memory_space<vmem>>, vector<1x4x16xf32>
    %161 = vector.shape_cast %160 : vector<1x4x16xf32> to vector<4x16xf32>
    %162 = vector.shape_cast %159 : vector<4x16xf32> to vector<1x4x16xf32>
    tpu.vector_store %arg16[%c3_160, %c1_161, %c0_162], %162 {strides = array<i32>} : memref<6x6x16xf32, #tpu.memory_space<vmem>>, vector<1x4x16xf32>,
    %c48_163 = arith.constant 48 : index
    %c0_164 = arith.constant 0 : index
    %163 = tpu.strided_load %arg15[%c48_163, %c0_164] {strides = array<i32: 2, 1>} : memref<64x16xf32, #tpu.memory_space<vmem>>, vector<4x16xf32>
    %c49_165 = arith.constant 49 : index
    %c0_166 = arith.constant 0 : index
    %164 = tpu.strided_load %arg15[%c49_165, %c0_166] {strides = array<i32: 2, 1>} : memref<64x16xf32, #tpu.memory_space<vmem>>, vector<4x16xf32>
    %165 = arith.maximumf %163, %164 : vector<4x16xf32>
    %c56 = arith.constant 56 : index
    %c0_167 = arith.constant 0 : index
    %166 = tpu.strided_load %arg15[%c56, %c0_167] {strides = array<i32: 2, 1>} : memref<64x16xf32, #tpu.memory_space<vmem>>, vector<4x16xf32>
    %c57 = arith.constant 57 : index
    %c0_168 = arith.constant 0 : index
    %167 = tpu.strided_load %arg15[%c57, %c0_168] {strides = array<i32: 2, 1>} : memref<64x16xf32, #tpu.memory_space<vmem>>, vector<4x16xf32>
    %168 = arith.maximumf %166, %167 : vector<4x16xf32>
    %169 = arith.maximumf %165, %168 : vector<4x16xf32>
    %c4_169 = arith.constant 4 : index
    %c1_170 = arith.constant 1 : index
    %c0_171 = arith.constant 0 : index
    %170 = vector.load %arg16[%c4_169, %c1_170, %c0_171] : memref<6x6x16xf32, #tpu.memory_space<vmem>>, vector<1x4x16xf32>
    %171 = vector.shape_cast %170 : vector<1x4x16xf32> to vector<4x16xf32>
    %172 = vector.shape_cast %169 : vector<4x16xf32> to vector<1x4x16xf32>
    tpu.vector_store %arg16[%c4_169, %c1_170, %c0_171], %172 {strides = array<i32>} : memref<6x6x16xf32, #tpu.memory_space<vmem>>, vector<1x4x16xf32>,
    %c0_172 = arith.constant 0 : index
    %c0_173 = arith.constant 0 : index
    %c0_174 = arith.constant 0 : index
    %173 = vector.load %arg16[%c0_172, %c0_173, %c0_174] : memref<6x6x16xf32, #tpu.memory_space<vmem>>, vector<4x4x16xf32>
    %c0_175 = arith.constant 0 : index
    %c1_176 = arith.constant 1 : index
    %c0_177 = arith.constant 0 : index
    %174 = vector.load %arg16[%c0_175, %c1_176, %c0_177] : memref<6x6x16xf32, #tpu.memory_space<vmem>>, vector<4x4x16xf32>
    %c0_178 = arith.constant 0 : index
    %c2_179 = arith.constant 2 : index
    %c0_180 = arith.constant 0 : index
    %175 = vector.load %arg16[%c0_178, %c2_179, %c0_180] : memref<6x6x16xf32, #tpu.memory_space<vmem>>, vector<4x4x16xf32>
    %c1_181 = arith.constant 1 : index
    %c0_182 = arith.constant 0 : index
    %c0_183 = arith.constant 0 : index
    %176 = vector.load %arg16[%c1_181, %c0_182, %c0_183] : memref<6x6x16xf32, #tpu.memory_space<vmem>>, vector<4x4x16xf32>
    %c1_184 = arith.constant 1 : index
    %c1_185 = arith.constant 1 : index
    %c0_186 = arith.constant 0 : index
    %177 = vector.load %arg16[%c1_184, %c1_185, %c0_186] : memref<6x6x16xf32, #tpu.memory_space<vmem>>, vector<4x4x16xf32>
    %c1_187 = arith.constant 1 : index
    %c2_188 = arith.constant 2 : index
    %c0_189 = arith.constant 0 : index
    %178 = vector.load %arg16[%c1_187, %c2_188, %c0_189] : memref<6x6x16xf32, #tpu.memory_space<vmem>>, vector<4x4x16xf32>
    %c2_190 = arith.constant 2 : index
    %c0_191 = arith.constant 0 : index
    %c0_192 = arith.constant 0 : index
    %179 = vector.load %arg16[%c2_190, %c0_191, %c0_192] : memref<6x6x16xf32, #tpu.memory_space<vmem>>, vector<4x4x16xf32>
    %c2_193 = arith.constant 2 : index
    %c1_194 = arith.constant 1 : index
    %c0_195 = arith.constant 0 : index
    %180 = vector.load %arg16[%c2_193, %c1_194, %c0_195] : memref<6x6x16xf32, #tpu.memory_space<vmem>>, vector<4x4x16xf32>
    %c2_196 = arith.constant 2 : index
    %c2_197 = arith.constant 2 : index
    %c0_198 = arith.constant 0 : index
    %181 = vector.load %arg16[%c2_196, %c2_197, %c0_198] : memref<6x6x16xf32, #tpu.memory_space<vmem>>, vector<4x4x16xf32>
    %182 = tpu.concatenate %173, %174, %175, %176, %177, %178, %179, %180, %181 in 2 : vector<4x4x16xf32>, vector<4x4x16xf32>, vector<4x4x16xf32>, vector<4x4x16xf32>, vector<4x4x16xf32>, vector<4x4x16xf32>, vector<4x4x16xf32>, vector<4x4x16xf32>, vector<4x4x16xf32> -> vector<4x4x144xf32>
    %183 = vector.extract_strided_slice %182 {offsets = [0, 0, 0], sizes = [1, 4, 144], strides = [1, 1, 1]} : vector<4x4x144xf32> to vector<1x4x144xf32>
    %184 = vector.shape_cast %183 : vector<1x4x144xf32> to vector<4x144xf32>
    %185 = arith.truncf %184 : vector<4x144xf32> to vector<4x144xbf16>
    %c0_199 = arith.constant 0 : index
    %c0_200 = arith.constant 0 : index
    %186 = vector.load %arg6[%c0_199, %c0_200] : memref<144x16xbf16, #tpu.memory_space<vmem>>, vector<144x16xbf16>
    %cst_201 = arith.constant dense<0.000000e+00> : vector<4x16xf32>
    %187 = tpu.matmul %185, %186, %cst_201 {dimension_numbers = #tpu.dot_dimension_numbers<[1], [0], [0], [1], [0, 0, 1, 1], [], []>} : vector<4x144xbf16>, vector<144x16xbf16>, vector<4x16xf32> -> vector<4x16xf32>
    %c0_202 = arith.constant 0 : index
    %c0_203 = arith.constant 0 : index
    %188 = vector.load %arg7[%c0_202, %c0_203] : memref<1x16xf32, #tpu.memory_space<vmem>>, vector<1x16xf32>
    %189 = vector.broadcast %188 : vector<1x16xf32> to vector<4x16xf32>
    %190 = arith.addf %187, %189 : vector<4x16xf32>
    %cst_204 = arith.constant 0.000000e+00 : f32
    %191 = vector.broadcast %cst_204 : f32 to vector<4x16xf32>
    %192 = arith.maximumf %190, %191 : vector<4x16xf32>
    %193 = vector.extract_strided_slice %182 {offsets = [1, 0, 0], sizes = [1, 4, 144], strides = [1, 1, 1]} : vector<4x4x144xf32> to vector<1x4x144xf32>
    %194 = vector.shape_cast %193 : vector<1x4x144xf32> to vector<4x144xf32>
    %195 = arith.truncf %194 : vector<4x144xf32> to vector<4x144xbf16>
    %c0_205 = arith.constant 0 : index
    %c0_206 = arith.constant 0 : index
    %196 = vector.load %arg6[%c0_205, %c0_206] : memref<144x16xbf16, #tpu.memory_space<vmem>>, vector<144x16xbf16>
    %cst_207 = arith.constant dense<0.000000e+00> : vector<4x16xf32>
    %197 = tpu.matmul %195, %196, %cst_207 {dimension_numbers = #tpu.dot_dimension_numbers<[1], [0], [0], [1], [0, 0, 1, 1], [], []>} : vector<4x144xbf16>, vector<144x16xbf16>, vector<4x16xf32> -> vector<4x16xf32>
    %c0_208 = arith.constant 0 : index
    %c0_209 = arith.constant 0 : index
    %198 = vector.load %arg7[%c0_208, %c0_209] : memref<1x16xf32, #tpu.memory_space<vmem>>, vector<1x16xf32>
    %199 = vector.broadcast %198 : vector<1x16xf32> to vector<4x16xf32>
    %200 = arith.addf %197, %199 : vector<4x16xf32>
    %cst_210 = arith.constant 0.000000e+00 : f32
    %201 = vector.broadcast %cst_210 : f32 to vector<4x16xf32>
    %202 = arith.maximumf %200, %201 : vector<4x16xf32>
    %203 = vector.extract_strided_slice %182 {offsets = [2, 0, 0], sizes = [1, 4, 144], strides = [1, 1, 1]} : vector<4x4x144xf32> to vector<1x4x144xf32>
    %204 = vector.shape_cast %203 : vector<1x4x144xf32> to vector<4x144xf32>
    %205 = arith.truncf %204 : vector<4x144xf32> to vector<4x144xbf16>
    %c0_211 = arith.constant 0 : index
    %c0_212 = arith.constant 0 : index
    %206 = vector.load %arg6[%c0_211, %c0_212] : memref<144x16xbf16, #tpu.memory_space<vmem>>, vector<144x16xbf16>
    %cst_213 = arith.constant dense<0.000000e+00> : vector<4x16xf32>
    %207 = tpu.matmul %205, %206, %cst_213 {dimension_numbers = #tpu.dot_dimension_numbers<[1], [0], [0], [1], [0, 0, 1, 1], [], []>} : vector<4x144xbf16>, vector<144x16xbf16>, vector<4x16xf32> -> vector<4x16xf32>
    %c0_214 = arith.constant 0 : index
    %c0_215 = arith.constant 0 : index
    %208 = vector.load %arg7[%c0_214, %c0_215] : memref<1x16xf32, #tpu.memory_space<vmem>>, vector<1x16xf32>
    %209 = vector.broadcast %208 : vector<1x16xf32> to vector<4x16xf32>
    %210 = arith.addf %207, %209 : vector<4x16xf32>
    %cst_216 = arith.constant 0.000000e+00 : f32
    %211 = vector.broadcast %cst_216 : f32 to vector<4x16xf32>
    %212 = arith.maximumf %210, %211 : vector<4x16xf32>
    %213 = vector.extract_strided_slice %182 {offsets = [3, 0, 0], sizes = [1, 4, 144], strides = [1, 1, 1]} : vector<4x4x144xf32> to vector<1x4x144xf32>
    %214 = vector.shape_cast %213 : vector<1x4x144xf32> to vector<4x144xf32>
    %215 = arith.truncf %214 : vector<4x144xf32> to vector<4x144xbf16>
    %c0_217 = arith.constant 0 : index
    %c0_218 = arith.constant 0 : index
    %216 = vector.load %arg6[%c0_217, %c0_218] : memref<144x16xbf16, #tpu.memory_space<vmem>>, vector<144x16xbf16>
    %cst_219 = arith.constant dense<0.000000e+00> : vector<4x16xf32>
    %217 = tpu.matmul %215, %216, %cst_219 {dimension_numbers = #tpu.dot_dimension_numbers<[1], [0], [0], [1], [0, 0, 1, 1], [], []>} : vector<4x144xbf16>, vector<144x16xbf16>, vector<4x16xf32> -> vector<4x16xf32>
    %c0_220 = arith.constant 0 : index
    %c0_221 = arith.constant 0 : index
    %218 = vector.load %arg7[%c0_220, %c0_221] : memref<1x16xf32, #tpu.memory_space<vmem>>, vector<1x16xf32>
    %219 = vector.broadcast %218 : vector<1x16xf32> to vector<4x16xf32>
    %220 = arith.addf %217, %219 : vector<4x16xf32>
    %cst_222 = arith.constant 0.000000e+00 : f32
    %221 = vector.broadcast %cst_222 : f32 to vector<4x16xf32>
    %222 = arith.maximumf %220, %221 : vector<4x16xf32>
    %c0_223 = arith.constant 0 : index
    %c0_224 = arith.constant 0 : index
    %223 = vector.load %arg9[%c0_223, %c0_224] : memref<1x32xf32, #tpu.memory_space<vmem>>, vector<1x32xf32>
    %224 = vector.extract_strided_slice %192 {offsets = [0, 0], sizes = [1, 16], strides = [1, 1]} : vector<4x16xf32> to vector<1x16xf32>
    %225 = vector.extract_strided_slice %192 {offsets = [1, 0], sizes = [1, 16], strides = [1, 1]} : vector<4x16xf32> to vector<1x16xf32>
    %226 = arith.addf %224, %225 : vector<1x16xf32>
    %227 = vector.extract_strided_slice %202 {offsets = [0, 0], sizes = [1, 16], strides = [1, 1]} : vector<4x16xf32> to vector<1x16xf32>
    %228 = arith.addf %226, %227 : vector<1x16xf32>
    %229 = vector.extract_strided_slice %202 {offsets = [1, 0], sizes = [1, 16], strides = [1, 1]} : vector<4x16xf32> to vector<1x16xf32>
    %230 = arith.addf %228, %229 : vector<1x16xf32>
    %cst_225 = arith.constant 2.500000e-01 : f32
    %231 = vector.broadcast %cst_225 : f32 to vector<1x16xf32>
    %232 = arith.mulf %231, %230 : vector<1x16xf32>
    %233 = arith.truncf %232 : vector<1x16xf32> to vector<1x16xbf16>
    %c0_226 = arith.constant 0 : index
    %c0_227 = arith.constant 0 : index
    %c0_228 = arith.constant 0 : index
    %234 = vector.load %arg8[%c0_226, %c0_227, %c0_228] : memref<4x16x32xbf16, #tpu.memory_space<vmem>>, vector<1x16x32xbf16>
    %235 = vector.shape_cast %234 : vector<1x16x32xbf16> to vector<16x32xbf16>
    %cst_229 = arith.constant dense<0.000000e+00> : vector<1x32xf32>
    %236 = tpu.matmul %233, %235, %cst_229 {dimension_numbers = #tpu.dot_dimension_numbers<[1], [0], [0], [1], [0, 0, 1, 1], [], []>} : vector<1x16xbf16>, vector<16x32xbf16>, vector<1x32xf32> -> vector<1x32xf32>
    %237 = arith.addf %223, %236 : vector<1x32xf32>
    %238 = vector.extract_strided_slice %192 {offsets = [2, 0], sizes = [1, 16], strides = [1, 1]} : vector<4x16xf32> to vector<1x16xf32>
    %239 = vector.extract_strided_slice %192 {offsets = [3, 0], sizes = [1, 16], strides = [1, 1]} : vector<4x16xf32> to vector<1x16xf32>
    %240 = arith.addf %238, %239 : vector<1x16xf32>
    %241 = vector.extract_strided_slice %202 {offsets = [2, 0], sizes = [1, 16], strides = [1, 1]} : vector<4x16xf32> to vector<1x16xf32>
    %242 = arith.addf %240, %241 : vector<1x16xf32>
    %243 = vector.extract_strided_slice %202 {offsets = [3, 0], sizes = [1, 16], strides = [1, 1]} : vector<4x16xf32> to vector<1x16xf32>
    %244 = arith.addf %242, %243 : vector<1x16xf32>
    %cst_230 = arith.constant 2.500000e-01 : f32
    %245 = vector.broadcast %cst_230 : f32 to vector<1x16xf32>
    %246 = arith.mulf %245, %244 : vector<1x16xf32>
    %247 = arith.truncf %246 : vector<1x16xf32> to vector<1x16xbf16>
    %c1_231 = arith.constant 1 : index
    %c0_232 = arith.constant 0 : index
    %c0_233 = arith.constant 0 : index
    %248 = vector.load %arg8[%c1_231, %c0_232, %c0_233] : memref<4x16x32xbf16, #tpu.memory_space<vmem>>, vector<1x16x32xbf16>
    %249 = vector.shape_cast %248 : vector<1x16x32xbf16> to vector<16x32xbf16>
    %cst_234 = arith.constant dense<0.000000e+00> : vector<1x32xf32>
    %250 = tpu.matmul %247, %249, %cst_234 {dimension_numbers = #tpu.dot_dimension_numbers<[1], [0], [0], [1], [0, 0, 1, 1], [], []>} : vector<1x16xbf16>, vector<16x32xbf16>, vector<1x32xf32> -> vector<1x32xf32>
    %251 = arith.addf %237, %250 : vector<1x32xf32>
    %252 = vector.extract_strided_slice %212 {offsets = [0, 0], sizes = [1, 16], strides = [1, 1]} : vector<4x16xf32> to vector<1x16xf32>
    %253 = vector.extract_strided_slice %212 {offsets = [1, 0], sizes = [1, 16], strides = [1, 1]} : vector<4x16xf32> to vector<1x16xf32>
    %254 = arith.addf %252, %253 : vector<1x16xf32>
    %255 = vector.extract_strided_slice %222 {offsets = [0, 0], sizes = [1, 16], strides = [1, 1]} : vector<4x16xf32> to vector<1x16xf32>
    %256 = arith.addf %254, %255 : vector<1x16xf32>
    %257 = vector.extract_strided_slice %222 {offsets = [1, 0], sizes = [1, 16], strides = [1, 1]} : vector<4x16xf32> to vector<1x16xf32>
    %258 = arith.addf %256, %257 : vector<1x16xf32>
    %cst_235 = arith.constant 2.500000e-01 : f32
    %259 = vector.broadcast %cst_235 : f32 to vector<1x16xf32>
    %260 = arith.mulf %259, %258 : vector<1x16xf32>
    %261 = arith.truncf %260 : vector<1x16xf32> to vector<1x16xbf16>
    %c2_236 = arith.constant 2 : index
    %c0_237 = arith.constant 0 : index
    %c0_238 = arith.constant 0 : index
    %262 = vector.load %arg8[%c2_236, %c0_237, %c0_238] : memref<4x16x32xbf16, #tpu.memory_space<vmem>>, vector<1x16x32xbf16>
    %263 = vector.shape_cast %262 : vector<1x16x32xbf16> to vector<16x32xbf16>
    %cst_239 = arith.constant dense<0.000000e+00> : vector<1x32xf32>
    %264 = tpu.matmul %261, %263, %cst_239 {dimension_numbers = #tpu.dot_dimension_numbers<[1], [0], [0], [1], [0, 0, 1, 1], [], []>} : vector<1x16xbf16>, vector<16x32xbf16>, vector<1x32xf32> -> vector<1x32xf32>
    %265 = arith.addf %251, %264 : vector<1x32xf32>
    %266 = vector.extract_strided_slice %212 {offsets = [2, 0], sizes = [1, 16], strides = [1, 1]} : vector<4x16xf32> to vector<1x16xf32>
    %267 = vector.extract_strided_slice %212 {offsets = [3, 0], sizes = [1, 16], strides = [1, 1]} : vector<4x16xf32> to vector<1x16xf32>
    %268 = arith.addf %266, %267 : vector<1x16xf32>
    %269 = vector.extract_strided_slice %222 {offsets = [2, 0], sizes = [1, 16], strides = [1, 1]} : vector<4x16xf32> to vector<1x16xf32>
    %270 = arith.addf %268, %269 : vector<1x16xf32>
    %271 = vector.extract_strided_slice %222 {offsets = [3, 0], sizes = [1, 16], strides = [1, 1]} : vector<4x16xf32> to vector<1x16xf32>
    %272 = arith.addf %270, %271 : vector<1x16xf32>
    %cst_240 = arith.constant 2.500000e-01 : f32
    %273 = vector.broadcast %cst_240 : f32 to vector<1x16xf32>
    %274 = arith.mulf %273, %272 : vector<1x16xf32>
    %275 = arith.truncf %274 : vector<1x16xf32> to vector<1x16xbf16>
    %c3_241 = arith.constant 3 : index
    %c0_242 = arith.constant 0 : index
    %c0_243 = arith.constant 0 : index
    %276 = vector.load %arg8[%c3_241, %c0_242, %c0_243] : memref<4x16x32xbf16, #tpu.memory_space<vmem>>, vector<1x16x32xbf16>
    %277 = vector.shape_cast %276 : vector<1x16x32xbf16> to vector<16x32xbf16>
    %cst_244 = arith.constant dense<0.000000e+00> : vector<1x32xf32>
    %278 = tpu.matmul %275, %277, %cst_244 {dimension_numbers = #tpu.dot_dimension_numbers<[1], [0], [0], [1], [0, 0, 1, 1], [], []>} : vector<1x16xbf16>, vector<16x32xbf16>, vector<1x32xf32> -> vector<1x32xf32>
    %279 = arith.addf %265, %278 : vector<1x32xf32>
    %cst_245 = arith.constant 0.000000e+00 : f32
    %280 = vector.broadcast %cst_245 : f32 to vector<1x32xf32>
    %281 = arith.maximumf %279, %280 : vector<1x32xf32>
    %282 = arith.truncf %281 : vector<1x32xf32> to vector<1x32xbf16>
    %c0_246 = arith.constant 0 : index
    %c0_247 = arith.constant 0 : index
    %283 = vector.load %arg10[%c0_246, %c0_247] : memref<32x32xbf16, #tpu.memory_space<vmem>>, vector<32x32xbf16>
    %cst_248 = arith.constant dense<0.000000e+00> : vector<1x32xf32>
    %284 = tpu.matmul %282, %283, %cst_248 {dimension_numbers = #tpu.dot_dimension_numbers<[1], [0], [0], [1], [0, 0, 1, 1], [], []>} : vector<1x32xbf16>, vector<32x32xbf16>, vector<1x32xf32> -> vector<1x32xf32>
    %c0_249 = arith.constant 0 : index
    %c0_250 = arith.constant 0 : index
    %285 = vector.load %arg11[%c0_249, %c0_250] : memref<1x32xf32, #tpu.memory_space<vmem>>, vector<1x32xf32>
    %286 = arith.addf %284, %285 : vector<1x32xf32>
    %cst_251 = arith.constant 0.000000e+00 : f32
    %287 = vector.broadcast %cst_251 : f32 to vector<1x32xf32>
    %288 = arith.maximumf %286, %287 : vector<1x32xf32>
    %c0_252 = arith.constant 0 : index
    %c0_253 = arith.constant 0 : index
    %c0_254 = arith.constant 0 : index
    %289 = vector.load %arg12[%c0_252, %c0_253, %c0_254] : memref<1x1x32xf32, #tpu.memory_space<vmem>>, vector<1x1x32xf32>
    %290 = vector.shape_cast %289 : vector<1x1x32xf32> to vector<1x32xf32>
    %291 = vector.shape_cast %288 : vector<1x32xf32> to vector<1x1x32xf32>
    tpu.vector_store %arg12[%c0_252, %c0_253, %c0_254], %291 {strides = array<i32>} : memref<1x1x32xf32, #tpu.memory_space<vmem>>, vector<1x1x32xf32>,
    return
  }
  func.func @transform_0(%arg0: i32) -> (i32, i32, i32, i32) {
    %c0_i32 = arith.constant 0 : i32
    %c0_i32_0 = arith.constant 0 : i32
    %c0_i32_1 = arith.constant 0 : i32
    %c0_i32_2 = arith.constant 0 : i32
    return %arg0, %c0_i32, %c0_i32_0, %c0_i32_1 : i32, i32, i32, i32
  }
  func.func @transform_1(%arg0: i32) -> (i32, i32) {
    %c0_i32 = arith.constant 0 : i32
    %c0_i32_0 = arith.constant 0 : i32
    %c0_i32_1 = arith.constant 0 : i32
    return %c0_i32, %c0_i32_0 : i32, i32
  }
  func.func @transform_2(%arg0: i32) -> (i32, i32) {
    %c0_i32 = arith.constant 0 : i32
    %c0_i32_0 = arith.constant 0 : i32
    %c0_i32_1 = arith.constant 0 : i32
    return %c0_i32, %c0_i32_0 : i32, i32
  }
  func.func @transform_3(%arg0: i32) -> (i32, i32) {
    %c0_i32 = arith.constant 0 : i32
    %c0_i32_0 = arith.constant 0 : i32
    %c0_i32_1 = arith.constant 0 : i32
    return %c0_i32, %c0_i32_0 : i32, i32
  }
  func.func @transform_4(%arg0: i32) -> (i32, i32) {
    %c0_i32 = arith.constant 0 : i32
    %c0_i32_0 = arith.constant 0 : i32
    %c0_i32_1 = arith.constant 0 : i32
    return %c0_i32, %c0_i32_0 : i32, i32
  }
  func.func @transform_5(%arg0: i32) -> (i32, i32) {
    %c0_i32 = arith.constant 0 : i32
    %c0_i32_0 = arith.constant 0 : i32
    %c0_i32_1 = arith.constant 0 : i32
    return %c0_i32, %c0_i32_0 : i32, i32
  }
  func.func @transform_6(%arg0: i32) -> (i32, i32) {
    %c0_i32 = arith.constant 0 : i32
    %c0_i32_0 = arith.constant 0 : i32
    %c0_i32_1 = arith.constant 0 : i32
    return %c0_i32, %c0_i32_0 : i32, i32
  }
  func.func @transform_7(%arg0: i32) -> (i32, i32, i32) {
    %c0_i32 = arith.constant 0 : i32
    %c0_i32_0 = arith.constant 0 : i32
    %c0_i32_1 = arith.constant 0 : i32
    %c0_i32_2 = arith.constant 0 : i32
    return %c0_i32, %c0_i32_0, %c0_i32_1 : i32, i32, i32
  }
  func.func @transform_8(%arg0: i32) -> (i32, i32) {
    %c0_i32 = arith.constant 0 : i32
    %c0_i32_0 = arith.constant 0 : i32
    %c0_i32_1 = arith.constant 0 : i32
    return %c0_i32, %c0_i32_0 : i32, i32
  }
  func.func @transform_9(%arg0: i32) -> (i32, i32) {
    %c0_i32 = arith.constant 0 : i32
    %c0_i32_0 = arith.constant 0 : i32
    %c0_i32_1 = arith.constant 0 : i32
    return %c0_i32, %c0_i32_0 : i32, i32
  }
  func.func @transform_10(%arg0: i32) -> (i32, i32) {
    %c0_i32 = arith.constant 0 : i32
    %c0_i32_0 = arith.constant 0 : i32
    %c0_i32_1 = arith.constant 0 : i32
    return %c0_i32, %c0_i32_0 : i32, i32
  }
  func.func @transform_11(%arg0: i32) -> (i32, i32, i32) {
    %c0_i32 = arith.constant 0 : i32
    %c0_i32_0 = arith.constant 0 : i32
    %c0_i32_1 = arith.constant 0 : i32
    return %arg0, %c0_i32, %c0_i32_0 : i32, i32, i32
  }
}

</mosaic_0001>

<llo_original>
// kernel: alexnet_backbone_forward.1
$region0: #{alexnet_backbone_forward.1}
  #allocation0 [shape = 'u32[]', space=smem, size = 0x4, offset = 0x4, fixed_abs, tag = 'smem constant byte address 0x4 - core index']
  #allocation1 [shape = 'u32[72,128]{1,0:T(1,128)}', space=vmem, size = 0x9000, scoped, tag = 'internal scratch']
  #allocation2 [shape = 'f32[256,8]{1,0:T(8,128)}', space=vmem, size = 0x20000, scoped, tag = 'scratch operand']
  #allocation3 [shape = 'f32[10,10,8]{2,1,0:T(8,128)}', space=vmem, size = 0x14000, scoped, tag = 'scratch operand']
  #allocation4 [shape = 'f32[64,16]{1,0:T(8,128)}', space=vmem, size = 0x8000, scoped, tag = 'scratch operand']
  #allocation5 [shape = 'f32[6,6,16]{2,1,0:T(8,128)}', space=vmem, size = 0x6000, scoped, tag = 'scratch operand']
  %s0 = inlined_call_operand.vmem [shape: f32[2,18,18,8], index: 0, kind: input, shape index: {}]
  %s1 = inlined_call_operand.vmem [shape: bf16[72,8], index: 1, kind: input, shape index: {}]
  %s2 = inlined_call_operand.vmem [shape: f32[1,8], index: 2, kind: input, shape index: {}]
  %s3 = inlined_call_operand.vmem [shape: bf16[72,16], index: 3, kind: input, shape index: {}]
  %s4 = inlined_call_operand.vmem [shape: f32[1,16], index: 4, kind: input, shape index: {}]
  %s5 = inlined_call_operand.vmem [shape: bf16[144,16], index: 5, kind: input, shape index: {}]
  %s6 = inlined_call_operand.vmem [shape: f32[1,16], index: 6, kind: input, shape index: {}]
  %s7 = inlined_call_operand.vmem [shape: bf16[4,16,32], index: 7, kind: input, shape index: {}]
  %s8 = inlined_call_operand.vmem [shape: f32[1,32], index: 8, kind: input, shape index: {}]
  %s9 = inlined_call_operand.vmem [shape: bf16[32,32], index: 9, kind: input, shape index: {}]
  %s10 = inlined_call_operand.vmem [shape: f32[1,32], index: 10, kind: input, shape index: {}]
  %s11 = inlined_call_operand.hbm [shape: f32[2,1,32], index: 11, kind: output, shape index: {}]
  %s12 = sld [smem:[#allocation0]]
  $region77: #{alexnet_backbone_forward.1} parent=0
    _
  %s14 = ssub.s32 1, %s12
  %s15 = scalar_select 0, %s14, %s12
  $region1: #{alexnet_backbone_forward.1} parent=0
    #allocation6 [shape = 'u8[1024]{0}', space=vmem, size = 0x400, scoped, tag = 'output window, operand 0']
    #allocation7 [shape = 's32[2]{0}', space=sflag, size = 0x8, scoped, tag = 'scoped memory for alexnet_backbone_forward.1']
    %16 = vsyncpa [#allocation7], 0
    %s17 = scalar_lea.sflag [#allocation7], 1
    %18 = vsyncpa %s17, 0
    loop: start=0, step=1, limit=4
    $region2: #{alexnet_backbone_forward.1} parent=1 // loop_pre_header
      _
    $region3: #{alexnet_backbone_forward.1} parent=1 // loop_header
      %s20 = sphi 0, %s24
      %p21 = scmp.ge.s32.totalorder %s20, 4
      %s30 = sphi 0, %s32
      %s33 = sphi 0, %s30
      %s34 = sphi 0, %s33
      %s50 = sphi 0, %s34
      %s54 = sphi 0, %s54
      %s56 = sphi 0, %s54
      %s57 = sphi 0, %s56
      %s71 = sphi 0, %s57
      %s75 = sphi 0, %s75
      %s77 = sphi 0, %s75
      %s78 = sphi 0, %s77
      %s92 = sphi 0, %s78
      %s96 = sphi 0, %s96
      %s98 = sphi 0, %s96
      %s99 = sphi 0, %s98
      %s113 = sphi 0, %s99
      %s117 = sphi 0, %s117
      %s119 = sphi 0, %s117
      %s120 = sphi 0, %s119
      %s134 = sphi 0, %s120
      %s138 = sphi 0, %s138
      %s140 = sphi 0, %s138
      %s141 = sphi 0, %s140
      %s155 = sphi 0, %s141
      %s159 = sphi 0, %s159
      %s161 = sphi 0, %s159
      %s162 = sphi 0, %s161
      %s176 = sphi 0, %s162
      %s180 = sphi 0, %s180
      %s182 = sphi 0, %s180
      %s183 = sphi 0, %s182
      %s197 = sphi 0, %s183
      %s201 = sphi 0, %s201
      %s203 = sphi 0, %s201
      %s204 = sphi 0, %s203
      %s218 = sphi 0, %s204
      %s222 = sphi 0, %s222
      %s224 = sphi 0, %s222
      %s225 = sphi 0, %s224
      %s239 = sphi 0, %s225
      %s243 = sphi 0, %s243
      %s245 = sphi 0, %s243
      %s246 = sphi 0, %s245
      %s260 = sphi 0, %s246
      %s266 = sphi 0, %s268
      %s269 = sphi 0, %s266
      %s270 = sphi 0, %s269
      %s286 = sphi 0, %s270
    $region4: #{alexnet_backbone_forward.1} parent=1 // loop_header_branch
      %23 = sbr.rel (%p21) target = $region8
    $region5: #{alexnet_backbone_forward.1} parent=1 // loop_body
      %s25 = ssub.s32 %s20, 1
      %s26 = ssub.s32 %s20, 2
      %s27 = sadd.s32 %s20, 1
      %s28 = ssub.s32 %s20, %s27
      %p29 = scmp.eq.s32.totalorder %s28, 0
      %s31 = sadd.s32 %s30, 1
      %s32 = scalar_select %p29, %s30, %s31
      %p35 = pneg %p29
      %p36 = scmp.eq.s32.totalorder %s20, 1
      %p37 = por %p35, %p36
      %p38 = scmp.ne.s32.totalorder %s30, %s33
      %p39 = scmp.eq.s32.totalorder %s20, 0
      %p40 = por %p38, %p39
      %p41 = scmp.ne.s32.totalorder %s30, %s33
      %p42 = scmp.eq.s32.totalorder %s25, 1
      %p43 = por %p41, %p42
      %p44 = scmp.ne.s32.totalorder %s33, %s34
      %p45 = scmp.eq.s32.totalorder %s25, 0
      %p46 = por %p44, %p45
      %p47 = scmp.ne.s32.totalorder %s33, %s34
      %p48 = scmp.eq.s32.totalorder %s26, 1
      %p49 = por %p47, %p48
      %p51 = scmp.ne.s32.totalorder %s34, %s50
      %p52 = scmp.eq.s32.totalorder %s26, 0
      %p53 = por %p51, %p52
      %s55 = sadd.s32 %s54, 1
      %p58 = scmp.eq.s32.totalorder %s20, 1
      %p59 = scmp.ne.s32.totalorder %s54, %s56
      %p60 = scmp.eq.s32.totalorder %s20, 0
      %p61 = por %p59, %p60
      %p62 = scmp.ne.s32.totalorder %s54, %s56
      %p63 = scmp.eq.s32.totalorder %s25, 1
      %p64 = por %p62, %p63
      %p65 = scmp.ne.s32.totalorder %s56, %s57
      %p66 = scmp.eq.s32.totalorder %s25, 0
      %p67 = por %p65, %p66
      %p68 = scmp.ne.s32.totalorder %s56, %s57
      %p69 = scmp.eq.s32.totalorder %s26, 1
      %p70 = por %p68, %p69
      %p72 = scmp.ne.s32.totalorder %s57, %s71
      %p73 = scmp.eq.s32.totalorder %s26, 0
      %p74 = por %p72, %p73
      %s76 = sadd.s32 %s75, 1
      %p79 = scmp.eq.s32.totalorder %s20, 1
      %p80 = scmp.ne.s32.totalorder %s75, %s77
      %p81 = scmp.eq.s32.totalorder %s20, 0
      %p82 = por %p80, %p81
      %p83 = scmp.ne.s32.totalorder %s75, %s77
      %p84 = scmp.eq.s32.totalorder %s25, 1
      %p85 = por %p83, %p84
      %p86 = scmp.ne.s32.totalorder %s77, %s78
      %p87 = scmp.eq.s32.totalorder %s25, 0
      %p88 = por %p86, %p87
      %p89 = scmp.ne.s32.totalorder %s77, %s78
      %p90 = scmp.eq.s32.totalorder %s26, 1
      %p91 = por %p89, %p90
      %p93 = scmp.ne.s32.totalorder %s78, %s92
      %p94 = scmp.eq.s32.totalorder %s26, 0
      %p95 = por %p93, %p94
      %s97 = sadd.s32 %s96, 1
      %p100 = scmp.eq.s32.totalorder %s20, 1
      %p101 = scmp.ne.s32.totalorder %s96, %s98
      %p102 = scmp.eq.s32.totalorder %s20, 0
      %p103 = por %p101, %p102
      %p104 = scmp.ne.s32.totalorder %s96, %s98
      %p105 = scmp.eq.s32.totalorder %s25, 1
      %p106 = por %p104, %p105
      %p107 = scmp.ne.s32.totalorder %s98, %s99
      %p108 = scmp.eq.s32.totalorder %s25, 0
      %p109 = por %p107, %p108
      %p110 = scmp.ne.s32.totalorder %s98, %s99
      %p111 = scmp.eq.s32.totalorder %s26, 1
      %p112 = por %p110, %p111
      %p114 = scmp.ne.s32.totalorder %s99, %s113
      %p115 = scmp.eq.s32.totalorder %s26, 0
      %p116 = por %p114, %p115
      %s118 = sadd.s32 %s117, 1
      %p121 = scmp.eq.s32.totalorder %s20, 1
      %p122 = scmp.ne.s32.totalorder %s117, %s119
      %p123 = scmp.eq.s32.totalorder %s20, 0
      %p124 = por %p122, %p123
      %p125 = scmp.ne.s32.totalorder %s117, %s119
      %p126 = scmp.eq.s32.totalorder %s25, 1
      %p127 = por %p125, %p126
      %p128 = scmp.ne.s32.totalorder %s119, %s120
      %p129 = scmp.eq.s32.totalorder %s25, 0
      %p130 = por %p128, %p129
      %p131 = scmp.ne.s32.totalorder %s119, %s120
      %p132 = scmp.eq.s32.totalorder %s26, 1
      %p133 = por %p131, %p132
      %p135 = scmp.ne.s32.totalorder %s120, %s134
      %p136 = scmp.eq.s32.totalorder %s26, 0
      %p137 = por %p135, %p136
      %s139 = sadd.s32 %s138, 1
      %p142 = scmp.eq.s32.totalorder %s20, 1
      %p143 = scmp.ne.s32.totalorder %s138, %s140
      %p144 = scmp.eq.s32.totalorder %s20, 0
      %p145 = por %p143, %p144
      %p146 = scmp.ne.s32.totalorder %s138, %s140
      %p147 = scmp.eq.s32.totalorder %s25, 1
      %p148 = por %p146, %p147
      %p149 = scmp.ne.s32.totalorder %s140, %s141
      %p150 = scmp.eq.s32.totalorder %s25, 0
      %p151 = por %p149, %p150
      %p152 = scmp.ne.s32.totalorder %s140, %s141
      %p153 = scmp.eq.s32.totalorder %s26, 1
      %p154 = por %p152, %p153
      %p156 = scmp.ne.s32.totalorder %s141, %s155
      %p157 = scmp.eq.s32.totalorder %s26, 0
      %p158 = por %p156, %p157
      %s160 = sadd.s32 %s159, 1
      %p163 = scmp.eq.s32.totalorder %s20, 1
      %p164 = scmp.ne.s32.totalorder %s159, %s161
      %p165 = scmp.eq.s32.totalorder %s20, 0
      %p166 = por %p164, %p165
      %p167 = scmp.ne.s32.totalorder %s159, %s161
      %p168 = scmp.eq.s32.totalorder %s25, 1
      %p169 = por %p167, %p168
      %p170 = scmp.ne.s32.totalorder %s161, %s162
      %p171 = scmp.eq.s32.totalorder %s25, 0
      %p172 = por %p170, %p171
      %p173 = scmp.ne.s32.totalorder %s161, %s162
      %p174 = scmp.eq.s32.totalorder %s26, 1
      %p175 = por %p173, %p174
      %p177 = scmp.ne.s32.totalorder %s162, %s176
      %p178 = scmp.eq.s32.totalorder %s26, 0
      %p179 = por %p177, %p178
      %s181 = sadd.s32 %s180, 1
      %p184 = scmp.eq.s32.totalorder %s20, 1
      %p185 = scmp.ne.s32.totalorder %s180, %s182
      %p186 = scmp.eq.s32.totalorder %s20, 0
      %p187 = por %p185, %p186
      %p188 = scmp.ne.s32.totalorder %s180, %s182
      %p189 = scmp.eq.s32.totalorder %s25, 1
      %p190 = por %p188, %p189
      %p191 = scmp.ne.s32.totalorder %s182, %s183
      %p192 = scmp.eq.s32.totalorder %s25, 0
      %p193 = por %p191, %p192
      %p194 = scmp.ne.s32.totalorder %s182, %s183
      %p195 = scmp.eq.s32.totalorder %s26, 1
      %p196 = por %p194, %p195
      %p198 = scmp.ne.s32.totalorder %s183, %s197
      %p199 = scmp.eq.s32.totalorder %s26, 0
      %p200 = por %p198, %p199
      %s202 = sadd.s32 %s201, 1
      %p205 = scmp.eq.s32.totalorder %s20, 1
      %p206 = scmp.ne.s32.totalorder %s201, %s203
      %p207 = scmp.eq.s32.totalorder %s20, 0
      %p208 = por %p206, %p207
      %p209 = scmp.ne.s32.totalorder %s201, %s203
      %p210 = scmp.eq.s32.totalorder %s25, 1
      %p211 = por %p209, %p210
      %p212 = scmp.ne.s32.totalorder %s203, %s204
      %p213 = scmp.eq.s32.totalorder %s25, 0
      %p214 = por %p212, %p213
      %p215 = scmp.ne.s32.totalorder %s203, %s204
      %p216 = scmp.eq.s32.totalorder %s26, 1
      %p217 = por %p215, %p216
      %p219 = scmp.ne.s32.totalorder %s204, %s218
      %p220 = scmp.eq.s32.totalorder %s26, 0
      %p221 = por %p219, %p220
      %s223 = sadd.s32 %s222, 1
      %p226 = scmp.eq.s32.totalorder %s20, 1
      %p227 = scmp.ne.s32.totalorder %s222, %s224
      %p228 = scmp.eq.s32.totalorder %s20, 0
      %p229 = por %p227, %p228
      %p230 = scmp.ne.s32.totalorder %s222, %s224
      %p231 = scmp.eq.s32.totalorder %s25, 1
      %p232 = por %p230, %p231
      %p233 = scmp.ne.s32.totalorder %s224, %s225
      %p234 = scmp.eq.s32.totalorder %s25, 0
      %p235 = por %p233, %p234
      %p236 = scmp.ne.s32.totalorder %s224, %s225
      %p237 = scmp.eq.s32.totalorder %s26, 1
      %p238 = por %p236, %p237
      %p240 = scmp.ne.s32.totalorder %s225, %s239
      %p241 = scmp.eq.s32.totalorder %s26, 0
      %p242 = por %p240, %p241
      %s244 = sadd.s32 %s243, 1
      %p247 = scmp.eq.s32.totalorder %s20, 1
      %p248 = scmp.ne.s32.totalorder %s243, %s245
      %p249 = scmp.eq.s32.totalorder %s20, 0
      %p250 = por %p248, %p249
      %p251 = scmp.ne.s32.totalorder %s243, %s245
      %p252 = scmp.eq.s32.totalorder %s25, 1
      %p253 = por %p251, %p252
      %p254 = scmp.ne.s32.totalorder %s245, %s246
      %p255 = scmp.eq.s32.totalorder %s25, 0
      %p256 = por %p254, %p255
      %p257 = scmp.ne.s32.totalorder %s245, %s246
      %p258 = scmp.eq.s32.totalorder %s26, 1
      %p259 = por %p257, %p258
      %p261 = scmp.ne.s32.totalorder %s246, %s260
      %p262 = scmp.eq.s32.totalorder %s26, 0
      %p263 = por %p261, %p262
      %s264 = ssub.s32 %s20, %s27
      %p265 = scmp.eq.s32.totalorder %s264, 0
      %s267 = sadd.s32 %s266, 1
      %s268 = scalar_select %p265, %s266, %s267
      %p271 = pneg %p265
      %p272 = scmp.eq.s32.totalorder %s20, 1
      %p273 = por %p271, %p272
      %p274 = scmp.ne.s32.totalorder %s266, %s269
      %p275 = scmp.eq.s32.totalorder %s20, 0
      %p276 = por %p274, %p275
      %p277 = scmp.ne.s32.totalorder %s266, %s269
      %p278 = scmp.eq.s32.totalorder %s25, 1
      %p279 = por %p277, %p278
      %p280 = scmp.ne.s32.totalorder %s269, %s270
      %p281 = scmp.eq.s32.totalorder %s25, 0
      %p282 = por %p280, %p281
      %p283 = scmp.ne.s32.totalorder %s269, %s270
      %p284 = scmp.eq.s32.totalorder %s26, 1
      %p285 = por %p283, %p284
      %p287 = scmp.ne.s32.totalorder %s270, %s286
      %p288 = scmp.eq.s32.totalorder %s26, 0
      %p289 = por %p287, %p288
      %p290 = scmp.le.s32.totalorder 1, %s20
      %p291 = scmp.lt.s32.totalorder %s20, 3
      %p292 = pnand %p290, %p291
      %p293 = pneg %p292
      // Predicated region
      $region9: #{alexnet_backbone_forward.1} parent=5 // pred_check
        _
      $region10: #{alexnet_backbone_forward.1} parent=5 // pred_check_branch
        %295 = sbr.rel (%p292) target = $region12
      $region11: #{alexnet_backbone_forward.1} parent=5 // pred_region
        %s296 = ssub.s32 %s20, 1
        // Predicated region
        $region13: #{alexnet_backbone_forward.1} parent=11 // pred_check
          %p297 = pneg %p67
        $region14: #{alexnet_backbone_forward.1} parent=11 // pred_check_branch
          %299 = sbr.rel (%p297) target = $region16
        $region15: #{alexnet_backbone_forward.1} parent=11 // pred_region
          _
        $region16: #{alexnet_backbone_forward.1} parent=11 // pred_fallthru
          _
        // Predicated region
        $region17: #{alexnet_backbone_forward.1} parent=11 // pred_check
          %p300 = pneg %p88
        $region18: #{alexnet_backbone_forward.1} parent=11 // pred_check_branch
          %302 = sbr.rel (%p300) target = $region20
        $region19: #{alexnet_backbone_forward.1} parent=11 // pred_region
          _
        $region20: #{alexnet_backbone_forward.1} parent=11 // pred_fallthru
          _
        // Predicated region
        $region21: #{alexnet_backbone_forward.1} parent=11 // pred_check
          %p303 = pneg %p109
        $region22: #{alexnet_backbone_forward.1} parent=11 // pred_check_branch
          %305 = sbr.rel (%p303) target = $region24
        $region23: #{alexnet_backbone_forward.1} parent=11 // pred_region
          _
        $region24: #{alexnet_backbone_forward.1} parent=11 // pred_fallthru
          _
        // Predicated region
        $region25: #{alexnet_backbone_forward.1} parent=11 // pred_check
          %p306 = pneg %p130
        $region26: #{alexnet_backbone_forward.1} parent=11 // pred_check_branch
          %308 = sbr.rel (%p306) target = $region28
        $region27: #{alexnet_backbone_forward.1} parent=11 // pred_region
          _
        $region28: #{alexnet_backbone_forward.1} parent=11 // pred_fallthru
          _
        // Predicated region
        $region29: #{alexnet_backbone_forward.1} parent=11 // pred_check
          %p309 = pneg %p151
        $region30: #{alexnet_backbone_forward.1} parent=11 // pred_check_branch
          %311 = sbr.rel (%p309) target = $region32
        $region31: #{alexnet_backbone_forward.1} parent=11 // pred_region
          _
        $region32: #{alexnet_backbone_forward.1} parent=11 // pred_fallthru
          _
        // Predicated region
        $region33: #{alexnet_backbone_forward.1} parent=11 // pred_check
          %p312 = pneg %p172
        $region34: #{alexnet_backbone_forward.1} parent=11 // pred_check_branch
          %314 = sbr.rel (%p312) target = $region36
        $region35: #{alexnet_backbone_forward.1} parent=11 // pred_region
          _
        $region36: #{alexnet_backbone_forward.1} parent=11 // pred_fallthru
          _
        // Predicated region
        $region37: #{alexnet_backbone_forward.1} parent=11 // pred_check
          %p315 = pneg %p193
        $region38: #{alexnet_backbone_forward.1} parent=11 // pred_check_branch
          %317 = sbr.rel (%p315) target = $region40
        $region39: #{alexnet_backbone_forward.1} parent=11 // pred_region
          _
        $region40: #{alexnet_backbone_forward.1} parent=11 // pred_fallthru
          _
        // Predicated region
        $region41: #{alexnet_backbone_forward.1} parent=11 // pred_check
          %p318 = pneg %p214
        $region42: #{alexnet_backbone_forward.1} parent=11 // pred_check_branch
          %320 = sbr.rel (%p318) target = $region44
        $region43: #{alexnet_backbone_forward.1} parent=11 // pred_region
          _
        $region44: #{alexnet_backbone_forward.1} parent=11 // pred_fallthru
          _
        // Predicated region
        $region45: #{alexnet_backbone_forward.1} parent=11 // pred_check
          %p321 = pneg %p235
        $region46: #{alexnet_backbone_forward.1} parent=11 // pred_check_branch
          %323 = sbr.rel (%p321) target = $region48
        $region47: #{alexnet_backbone_forward.1} parent=11 // pred_region
          _
        $region48: #{alexnet_backbone_forward.1} parent=11 // pred_fallthru
          _
        // Predicated region
        $region49: #{alexnet_backbone_forward.1} parent=11 // pred_check
          %p324 = pneg %p256
        $region50: #{alexnet_backbone_forward.1} parent=11 // pred_check_branch
          %326 = sbr.rel (%p324) target = $region52
        $region51: #{alexnet_backbone_forward.1} parent=11 // pred_region
          _
        $region52: #{alexnet_backbone_forward.1} parent=11 // pred_fallthru
          _
      $region12: #{alexnet_backbone_forward.1} parent=5 // pred_fallthru
        _
      %p327 = scmp.lt.s32.totalorder %s20, 2
      // Predicated region
      $region53: #{alexnet_backbone_forward.1} parent=5 // pred_check
        %p328 = pneg %p327
      $region54: #{alexnet_backbone_forward.1} parent=5 // pred_check_branch
        %330 = sbr.rel (%p328) target = $region56
      $region55: #{alexnet_backbone_forward.1} parent=5 // pred_region
        // Predicated region
        $region57: #{alexnet_backbone_forward.1} parent=55 // pred_check
          %p331 = pneg %p40
        $region58: #{alexnet_backbone_forward.1} parent=55 // pred_check_branch
          %333 = sbr.rel (%p331) target = $region60
        $region59: #{alexnet_backbone_forward.1} parent=55 // pred_region
          %p334 = scmp.lt.s32.totalorder %s20, 1
          %s335 = scalar_select %p334, %s20, 1
          %s336 = smul.addr %s335, 54
          %s337 = smul.addr %s336, 8
          %s338 = scalar_lea.vmem %s0, %s337
        $region60: #{alexnet_backbone_forward.1} parent=55 // pred_fallthru
          _
      $region56: #{alexnet_backbone_forward.1} parent=5 // pred_fallthru
        _
      %p339 = scmp.le.s32.totalorder 1, %s20
      %p340 = scmp.lt.s32.totalorder %s20, 3
      %p341 = pnand %p339, %p340
      %p342 = pneg %p341
      // Predicated region
      $region61: #{alexnet_backbone_forward.1} parent=5 // pred_check
        _
      $region62: #{alexnet_backbone_forward.1} parent=5 // pred_check_branch
        %344 = sbr.rel (%p341) target = $region64
      $region63: #{alexnet_backbone_forward.1} parent=5 // pred_region
        %s345 = ssub.s32 %s20, 1
        %p346 = scmp.lt.s32.totalorder %s25, 1
        %s347 = scalar_select %p346, %s25, 1
        %s348 = smul.addr %s347, 54
        %s349 = smul.addr %s348, 8
        %s350 = scalar_lea.vmem %s0, %s349
        %p351 = pneg %p46
        %p352 = pneg %p43
        %p353 = pneg %p67
        %p354 = pneg %p64
        %p355 = pneg %p88
        %p356 = pneg %p85
        %p357 = pneg %p109
        %p358 = pneg %p106
        %p359 = pneg %p130
        %p360 = pneg %p127
        %p361 = pneg %p151
        %p362 = pneg %p148
        %p363 = pneg %p172
        %p364 = pneg %p169
        %p365 = pneg %p193
        %p366 = pneg %p190
        %p367 = pneg %p214
        %p368 = pneg %p211
        %p369 = pneg %p235
        %p370 = pneg %p232
        %p371 = pneg %p256
        %p372 = pneg %p253
        %p373 = pneg %p282
        %p374 = pneg %p279
        %s375 = sand.u32 %s269, 1
        %s376 = scalar_lea.sflag [#allocation7], %s375
        %s377 = sand.u32 %s269, 1
        %s378 = scalar_lea.vmem [#allocation6], %s377
        %p379 = scmp.lt.s32.totalorder %s25, 1
        %s380 = scalar_select %p379, %s25, 1
        %s381 = smul.addr %s380, 54
        %s382 = smul.addr %s381, 8
        %s383 = scalar_lea.vmem %s0, %s382
        %v385 = vld [vmem:[%s383] sm:$0xff]
        %v386 = vld [vmem:[%s383 + $0x8] sm:$0xff]
        %v387 = vld [vmem:[%s383 + $0x18] sm:$0xff]
        %v388 = vld [vmem:[%s383 + $0x20] sm:$0xff]
        %v389 = vld [vmem:[%s383 + $0x30] sm:$0xff]
        %v390 = vld [vmem:[%s383 + $0x38] sm:$0xff]
        %v391 = vld [vmem:[%s383 + $0x48] sm:$0xff]
        %v392 = vld [vmem:[%s383 + $0x50] sm:$0xff]
        %v393 = vld [vmem:[%s383 + $0x60] sm:$0xff]
        %v394 = vld [vmem:[%s383 + $0x68] sm:$0xff]
        %v395 = vld [vmem:[%s383 + $0x78] sm:$0xff]
        %v396 = vld [vmem:[%s383 + $0x80] sm:$0xff]
        %v397 = vld [vmem:[%s383 + $0x90] sm:$0xff]
        %v398 = vld [vmem:[%s383 + $0x98] sm:$0xff]
        %v399 = vld [vmem:[%s383 + $0xa8] sm:$0xff]
        %v400 = vld [vmem:[%s383 + $0xb0] sm:$0xff]
        %v401 = vld [vmem:[%s383 + $0xc0] sm:$0xff]
        %v402 = vld [vmem:[%s383 + $0xc8] sm:$0xff]
        %v403 = vld [vmem:[%s383 + $0xd8] sm:$0xff]
        %v404 = vld [vmem:[%s383 + $0xe0] sm:$0xff]
        %v405 = vld [vmem:[%s383 + $0xf0] sm:$0xff]
        %v406 = vld [vmem:[%s383 + $0xf8] sm:$0xff]
        %v407 = vld [vmem:[%s383 + $0x108] sm:$0xff]
        %v408 = vld [vmem:[%s383 + $0x110] sm:$0xff]
        %v409 = vld [vmem:[%s383 + $0x120] sm:$0xff]
        %v410 = vld [vmem:[%s383 + $0x128] sm:$0xff]
        %v411 = vld [vmem:[%s383 + $0x138] sm:$0xff]
        %v412 = vld [vmem:[%s383 + $0x140] sm:$0xff]
        %v413 = vld [vmem:[%s383 + $0x150] sm:$0xff]
        %v414 = vld [vmem:[%s383 + $0x158] sm:$0xff]
        %v415 = vld [vmem:[%s383 + $0x168] sm:$0xff]
        %v416 = vld [vmem:[%s383 + $0x170] sm:$0xff]
        %v417 = vld [vmem:[%s383 + $0x1] sm:$0xff]
        %v418 = vld [vmem:[%s383 + $0x9] sm:$0xff]
        %v419 = vld [vmem:[%s383 + $0x19] sm:$0xff]
        %v420 = vld [vmem:[%s383 + $0x21] sm:$0xff]
        %v421 = vld [vmem:[%s383 + $0x31] sm:$0xff]
        %v422 = vld [vmem:[%s383 + $0x39] sm:$0xff]
        %v423 = vld [vmem:[%s383 + $0x49] sm:$0xff]
        %v424 = vld [vmem:[%s383 + $0x51] sm:$0xff]
        %v425 = vld [vmem:[%s383 + $0x61] sm:$0xff]
        %v426 = vld [vmem:[%s383 + $0x69] sm:$0xff]
        %v427 = vld [vmem:[%s383 + $0x79] sm:$0xff]
        %v428 = vld [vmem:[%s383 + $0x81] sm:$0xff]
        %v429 = vld [vmem:[%s383 + $0x91] sm:$0xff]
        %v430 = vld [vmem:[%s383 + $0x99] sm:$0xff]
        %v431 = vld [vmem:[%s383 + $0xa9] sm:$0xff]
        %v432 = vld [vmem:[%s383 + $0xb1] sm:$0xff]
        %v433 = vld [vmem:[%s383 + $0xc1] sm:$0xff]
        %v434 = vld [vmem:[%s383 + $0xc9] sm:$0xff]
        %v435 = vld [vmem:[%s383 + $0xd9] sm:$0xff]
        %v436 = vld [vmem:[%s383 + $0xe1] sm:$0xff]
        %v437 = vld [vmem:[%s383 + $0xf1] sm:$0xff]
        %v438 = vld [vmem:[%s383 + $0xf9] sm:$0xff]
        %v439 = vld [vmem:[%s383 + $0x109] sm:$0xff]
        %v440 = vld [vmem:[%s383 + $0x111] sm:$0xff]
        %v441 = vld [vmem:[%s383 + $0x121] sm:$0xff]
        %v442 = vld [vmem:[%s383 + $0x129] sm:$0xff]
        %v443 = vld [vmem:[%s383 + $0x139] sm:$0xff]
        %v444 = vld [vmem:[%s383 + $0x141] sm:$0xff]
        %v445 = vld [vmem:[%s383 + $0x151] sm:$0xff]
        %v446 = vld [vmem:[%s383 + $0x159] sm:$0xff]
        %v447 = vld [vmem:[%s383 + $0x169] sm:$0xff]
        %v448 = vld [vmem:[%s383 + $0x171] sm:$0xff]
        %v449 = vld [vmem:[%s383 + $0x2] sm:$0xff]
        %v450 = vld [vmem:[%s383 + $0xa] sm:$0xff]
        %v451 = vld [vmem:[%s383 + $0x1a] sm:$0xff]
        %v452 = vld [vmem:[%s383 + $0x22] sm:$0xff]
        %v453 = vld [vmem:[%s383 + $0x32] sm:$0xff]
        %v454 = vld [vmem:[%s383 + $0x3a] sm:$0xff]
        %v455 = vld [vmem:[%s383 + $0x4a] sm:$0xff]
        %v456 = vld [vmem:[%s383 + $0x52] sm:$0xff]
        %v457 = vld [vmem:[%s383 + $0x62] sm:$0xff]
        %v458 = vld [vmem:[%s383 + $0x6a] sm:$0xff]
        %v459 = vld [vmem:[%s383 + $0x7a] sm:$0xff]
        %v460 = vld [vmem:[%s383 + $0x82] sm:$0xff]
        %v461 = vld [vmem:[%s383 + $0x92] sm:$0xff]
        %v462 = vld [vmem:[%s383 + $0x9a] sm:$0xff]
        %v463 = vld [vmem:[%s383 + $0xaa] sm:$0xff]
        %v464 = vld [vmem:[%s383 + $0xb2] sm:$0xff]
        %v465 = vld [vmem:[%s383 + $0xc2] sm:$0xff]
        %v466 = vld [vmem:[%s383 + $0xca] sm:$0xff]
        %v467 = vld [vmem:[%s383 + $0xda] sm:$0xff]
        %v468 = vld [vmem:[%s383 + $0xe2] sm:$0xff]
        %v469 = vld [vmem:[%s383 + $0xf2] sm:$0xff]
        %v470 = vld [vmem:[%s383 + $0xfa] sm:$0xff]
        %v471 = vld [vmem:[%s383 + $0x10a] sm:$0xff]
        %v472 = vld [vmem:[%s383 + $0x112] sm:$0xff]
        %v473 = vld [vmem:[%s383 + $0x122] sm:$0xff]
        %v474 = vld [vmem:[%s383 + $0x12a] sm:$0xff]
        %v475 = vld [vmem:[%s383 + $0x13a] sm:$0xff]
        %v476 = vld [vmem:[%s383 + $0x142] sm:$0xff]
        %v477 = vld [vmem:[%s383 + $0x152] sm:$0xff]
        %v478 = vld [vmem:[%s383 + $0x15a] sm:$0xff]
        %v479 = vld [vmem:[%s383 + $0x16a] sm:$0xff]
        %v480 = vld [vmem:[%s383 + $0x172] sm:$0xff]
        %s481 = scalar_lea.vmem %s383, 24
        %v482 = vld [vmem:[%s481] sm:$0xff]
        %v483 = vld [vmem:[%s481 + $0x8] sm:$0xff]
        %v484 = vld [vmem:[%s481 + $0x18] sm:$0xff]
        %v485 = vld [vmem:[%s481 + $0x20] sm:$0xff]
        %v486 = vld [vmem:[%s481 + $0x30] sm:$0xff]
        %v487 = vld [vmem:[%s481 + $0x38] sm:$0xff]
        %v488 = vld [vmem:[%s481 + $0x48] sm:$0xff]
        %v489 = vld [vmem:[%s481 + $0x50] sm:$0xff]
        %v490 = vld [vmem:[%s481 + $0x60] sm:$0xff]
        %v491 = vld [vmem:[%s481 + $0x68] sm:$0xff]
        %v492 = vld [vmem:[%s481 + $0x78] sm:$0xff]
        %v493 = vld [vmem:[%s481 + $0x80] sm:$0xff]
        %v494 = vld [vmem:[%s481 + $0x90] sm:$0xff]
        %v495 = vld [vmem:[%s481 + $0x98] sm:$0xff]
        %v496 = vld [vmem:[%s481 + $0xa8] sm:$0xff]
        %v497 = vld [vmem:[%s481 + $0xb0] sm:$0xff]
        %v498 = vld [vmem:[%s481 + $0xc0] sm:$0xff]
        %v499 = vld [vmem:[%s481 + $0xc8] sm:$0xff]
        %v500 = vld [vmem:[%s481 + $0xd8] sm:$0xff]
        %v501 = vld [vmem:[%s481 + $0xe0] sm:$0xff]
        %v502 = vld [vmem:[%s481 + $0xf0] sm:$0xff]
        %v503 = vld [vmem:[%s481 + $0xf8] sm:$0xff]
        %v504 = vld [vmem:[%s481 + $0x108] sm:$0xff]
        %v505 = vld [vmem:[%s481 + $0x110] sm:$0xff]
        %v506 = vld [vmem:[%s481 + $0x120] sm:$0xff]
        %v507 = vld [vmem:[%s481 + $0x128] sm:$0xff]
        %v508 = vld [vmem:[%s481 + $0x138] sm:$0xff]
        %v509 = vld [vmem:[%s481 + $0x140] sm:$0xff]
        %v510 = vld [vmem:[%s481 + $0x150] sm:$0xff]
        %v511 = vld [vmem:[%s481 + $0x158] sm:$0xff]
        %v512 = vld [vmem:[%s481 + $0x168] sm:$0xff]
        %v513 = vld [vmem:[%s481 + $0x170] sm:$0xff]
        %v514 = vld [vmem:[%s481 + $0x1] sm:$0xff]
        %v515 = vld [vmem:[%s481 + $0x9] sm:$0xff]
        %v516 = vld [vmem:[%s481 + $0x19] sm:$0xff]
        %v517 = vld [vmem:[%s481 + $0x21] sm:$0xff]
        %v518 = vld [vmem:[%s481 + $0x31] sm:$0xff]
        %v519 = vld [vmem:[%s481 + $0x39] sm:$0xff]
        %v520 = vld [vmem:[%s481 + $0x49] sm:$0xff]
        %v521 = vld [vmem:[%s481 + $0x51] sm:$0xff]
        %v522 = vld [vmem:[%s481 + $0x61] sm:$0xff]
        %v523 = vld [vmem:[%s481 + $0x69] sm:$0xff]
        %v524 = vld [vmem:[%s481 + $0x79] sm:$0xff]
        %v525 = vld [vmem:[%s481 + $0x81] sm:$0xff]
        %v526 = vld [vmem:[%s481 + $0x91] sm:$0xff]
        %v527 = vld [vmem:[%s481 + $0x99] sm:$0xff]
        %v528 = vld [vmem:[%s481 + $0xa9] sm:$0xff]
        %v529 = vld [vmem:[%s481 + $0xb1] sm:$0xff]
        %v530 = vld [vmem:[%s481 + $0xc1] sm:$0xff]
        %v531 = vld [vmem:[%s481 + $0xc9] sm:$0xff]
        %v532 = vld [vmem:[%s481 + $0xd9] sm:$0xff]
        %v533 = vld [vmem:[%s481 + $0xe1] sm:$0xff]
        %v534 = vld [vmem:[%s481 + $0xf1] sm:$0xff]
        %v535 = vld [vmem:[%s481 + $0xf9] sm:$0xff]
        %v536 = vld [vmem:[%s481 + $0x109] sm:$0xff]
        %v537 = vld [vmem:[%s481 + $0x111] sm:$0xff]
        %v538 = vld [vmem:[%s481 + $0x121] sm:$0xff]
        %v539 = vld [vmem:[%s481 + $0x129] sm:$0xff]
        %v540 = vld [vmem:[%s481 + $0x139] sm:$0xff]
        %v541 = vld [vmem:[%s481 + $0x141] sm:$0xff]
        %v542 = vld [vmem:[%s481 + $0x151] sm:$0xff]
        %v543 = vld [vmem:[%s481 + $0x159] sm:$0xff]
        %v544 = vld [vmem:[%s481 + $0x169] sm:$0xff]
        %v545 = vld [vmem:[%s481 + $0x171] sm:$0xff]
        %v546 = vld [vmem:[%s481 + $0x2] sm:$0xff]
        %v547 = vld [vmem:[%s481 + $0xa] sm:$0xff]
        %v548 = vld [vmem:[%s481 + $0x1a] sm:$0xff]
        %v549 = vld [vmem:[%s481 + $0x22] sm:$0xff]
        %v550 = vld [vmem:[%s481 + $0x32] sm:$0xff]
        %v551 = vld [vmem:[%s481 + $0x3a] sm:$0xff]
        %v552 = vld [vmem:[%s481 + $0x4a] sm:$0xff]
        %v553 = vld [vmem:[%s481 + $0x52] sm:$0xff]
        %v554 = vld [vmem:[%s481 + $0x62] sm:$0xff]
        %v555 = vld [vmem:[%s481 + $0x6a] sm:$0xff]
        %v556 = vld [vmem:[%s481 + $0x7a] sm:$0xff]
        %v557 = vld [vmem:[%s481 + $0x82] sm:$0xff]
        %v558 = vld [vmem:[%s481 + $0x92] sm:$0xff]
        %v559 = vld [vmem:[%s481 + $0x9a] sm:$0xff]
        %v560 = vld [vmem:[%s481 + $0xaa] sm:$0xff]
        %v561 = vld [vmem:[%s481 + $0xb2] sm:$0xff]
        %v562 = vld [vmem:[%s481 + $0xc2] sm:$0xff]
        %v563 = vld [vmem:[%s481 + $0xca] sm:$0xff]
        %v564 = vld [vmem:[%s481 + $0xda] sm:$0xff]
        %v565 = vld [vmem:[%s481 + $0xe2] sm:$0xff]
        %v566 = vld [vmem:[%s481 + $0xf2] sm:$0xff]
        %v567 = vld [vmem:[%s481 + $0xfa] sm:$0xff]
        %v568 = vld [vmem:[%s481 + $0x10a] sm:$0xff]
        %v569 = vld [vmem:[%s481 + $0x112] sm:$0xff]
        %v570 = vld [vmem:[%s481 + $0x122] sm:$0xff]
        %v571 = vld [vmem:[%s481 + $0x12a] sm:$0xff]
        %v572 = vld [vmem:[%s481 + $0x13a] sm:$0xff]
        %v573 = vld [vmem:[%s481 + $0x142] sm:$0xff]
        %v574 = vld [vmem:[%s481 + $0x152] sm:$0xff]
        %v575 = vld [vmem:[%s481 + $0x15a] sm:$0xff]
        %v576 = vld [vmem:[%s481 + $0x16a] sm:$0xff]
        %v577 = vld [vmem:[%s481 + $0x172] sm:$0xff]
        %s578 = scalar_lea.vmem %s383, 48
        %v579 = vld [vmem:[%s578] sm:$0xff]
        %v580 = vld [vmem:[%s578 + $0x8] sm:$0xff]
        %v581 = vld [vmem:[%s578 + $0x18] sm:$0xff]
        %v582 = vld [vmem:[%s578 + $0x20] sm:$0xff]
        %v583 = vld [vmem:[%s578 + $0x30] sm:$0xff]
        %v584 = vld [vmem:[%s578 + $0x38] sm:$0xff]
        %v585 = vld [vmem:[%s578 + $0x48] sm:$0xff]
        %v586 = vld [vmem:[%s578 + $0x50] sm:$0xff]
        %v587 = vld [vmem:[%s578 + $0x60] sm:$0xff]
        %v588 = vld [vmem:[%s578 + $0x68] sm:$0xff]
        %v589 = vld [vmem:[%s578 + $0x78] sm:$0xff]
        %v590 = vld [vmem:[%s578 + $0x80] sm:$0xff]
        %v591 = vld [vmem:[%s578 + $0x90] sm:$0xff]
        %v592 = vld [vmem:[%s578 + $0x98] sm:$0xff]
        %v593 = vld [vmem:[%s578 + $0xa8] sm:$0xff]
        %v594 = vld [vmem:[%s578 + $0xb0] sm:$0xff]
        %v595 = vld [vmem:[%s578 + $0xc0] sm:$0xff]
        %v596 = vld [vmem:[%s578 + $0xc8] sm:$0xff]
        %v597 = vld [vmem:[%s578 + $0xd8] sm:$0xff]
        %v598 = vld [vmem:[%s578 + $0xe0] sm:$0xff]
        %v599 = vld [vmem:[%s578 + $0xf0] sm:$0xff]
        %v600 = vld [vmem:[%s578 + $0xf8] sm:$0xff]
        %v601 = vld [vmem:[%s578 + $0x108] sm:$0xff]
        %v602 = vld [vmem:[%s578 + $0x110] sm:$0xff]
        %v603 = vld [vmem:[%s578 + $0x120] sm:$0xff]
        %v604 = vld [vmem:[%s578 + $0x128] sm:$0xff]
        %v605 = vld [vmem:[%s578 + $0x138] sm:$0xff]
        %v606 = vld [vmem:[%s578 + $0x140] sm:$0xff]
        %v607 = vld [vmem:[%s578 + $0x150] sm:$0xff]
        %v608 = vld [vmem:[%s578 + $0x158] sm:$0xff]
        %v609 = vld [vmem:[%s578 + $0x168] sm:$0xff]
        %v610 = vld [vmem:[%s578 + $0x170] sm:$0xff]
        %v611 = vld [vmem:[%s578 + $0x1] sm:$0xff]
        %v612 = vld [vmem:[%s578 + $0x9] sm:$0xff]
        %v613 = vld [vmem:[%s578 + $0x19] sm:$0xff]
        %v614 = vld [vmem:[%s578 + $0x21] sm:$0xff]
        %v615 = vld [vmem:[%s578 + $0x31] sm:$0xff]
        %v616 = vld [vmem:[%s578 + $0x39] sm:$0xff]
        %v617 = vld [vmem:[%s578 + $0x49] sm:$0xff]
        %v618 = vld [vmem:[%s578 + $0x51] sm:$0xff]
        %v619 = vld [vmem:[%s578 + $0x61] sm:$0xff]
        %v620 = vld [vmem:[%s578 + $0x69] sm:$0xff]
        %v621 = vld [vmem:[%s578 + $0x79] sm:$0xff]
        %v622 = vld [vmem:[%s578 + $0x81] sm:$0xff]
        %v623 = vld [vmem:[%s578 + $0x91] sm:$0xff]
        %v624 = vld [vmem:[%s578 + $0x99] sm:$0xff]
        %v625 = vld [vmem:[%s578 + $0xa9] sm:$0xff]
        %v626 = vld [vmem:[%s578 + $0xb1] sm:$0xff]
        %v627 = vld [vmem:[%s578 + $0xc1] sm:$0xff]
        %v628 = vld [vmem:[%s578 + $0xc9] sm:$0xff]
        %v629 = vld [vmem:[%s578 + $0xd9] sm:$0xff]
        %v630 = vld [vmem:[%s578 + $0xe1] sm:$0xff]
        %v631 = vld [vmem:[%s578 + $0xf1] sm:$0xff]
        %v632 = vld [vmem:[%s578 + $0xf9] sm:$0xff]
        %v633 = vld [vmem:[%s578 + $0x109] sm:$0xff]
        %v634 = vld [vmem:[%s578 + $0x111] sm:$0xff]
        %v635 = vld [vmem:[%s578 + $0x121] sm:$0xff]
        %v636 = vld [vmem:[%s578 + $0x129] sm:$0xff]
        %v637 = vld [vmem:[%s578 + $0x139] sm:$0xff]
        %v638 = vld [vmem:[%s578 + $0x141] sm:$0xff]
        %v639 = vld [vmem:[%s578 + $0x151] sm:$0xff]
        %v640 = vld [vmem:[%s578 + $0x159] sm:$0xff]
        %v641 = vld [vmem:[%s578 + $0x169] sm:$0xff]
        %v642 = vld [vmem:[%s578 + $0x171] sm:$0xff]
        %v643 = vld [vmem:[%s578 + $0x2] sm:$0xff]
        %v644 = vld [vmem:[%s578 + $0xa] sm:$0xff]
        %v645 = vld [vmem:[%s578 + $0x1a] sm:$0xff]
        %v646 = vld [vmem:[%s578 + $0x22] sm:$0xff]
        %v647 = vld [vmem:[%s578 + $0x32] sm:$0xff]
        %v648 = vld [vmem:[%s578 + $0x3a] sm:$0xff]
        %v649 = vld [vmem:[%s578 + $0x4a] sm:$0xff]
        %v650 = vld [vmem:[%s578 + $0x52] sm:$0xff]
        %v651 = vld [vmem:[%s578 + $0x62] sm:$0xff]
        %v652 = vld [vmem:[%s578 + $0x6a] sm:$0xff]
        %v653 = vld [vmem:[%s578 + $0x7a] sm:$0xff]
        %v654 = vld [vmem:[%s578 + $0x82] sm:$0xff]
        %v655 = vld [vmem:[%s578 + $0x92] sm:$0xff]
        %v656 = vld [vmem:[%s578 + $0x9a] sm:$0xff]
        %v657 = vld [vmem:[%s578 + $0xaa] sm:$0xff]
        %v658 = vld [vmem:[%s578 + $0xb2] sm:$0xff]
        %v659 = vld [vmem:[%s578 + $0xc2] sm:$0xff]
        %v660 = vld [vmem:[%s578 + $0xca] sm:$0xff]
        %v661 = vld [vmem:[%s578 + $0xda] sm:$0xff]
        %v662 = vld [vmem:[%s578 + $0xe2] sm:$0xff]
        %v663 = vld [vmem:[%s578 + $0xf2] sm:$0xff]
        %v664 = vld [vmem:[%s578 + $0xfa] sm:$0xff]
        %v665 = vld [vmem:[%s578 + $0x10a] sm:$0xff]
        %v666 = vld [vmem:[%s578 + $0x112] sm:$0xff]
        %v667 = vld [vmem:[%s578 + $0x122] sm:$0xff]
        %v668 = vld [vmem:[%s578 + $0x12a] sm:$0xff]
        %v669 = vld [vmem:[%s578 + $0x13a] sm:$0xff]
        %v670 = vld [vmem:[%s578 + $0x142] sm:$0xff]
        %v671 = vld [vmem:[%s578 + $0x152] sm:$0xff]
        %v672 = vld [vmem:[%s578 + $0x15a] sm:$0xff]
        %v673 = vld [vmem:[%s578 + $0x16a] sm:$0xff]
        %v674 = vld [vmem:[%s578 + $0x172] sm:$0xff]
        %707 = vrot.lane.b32.xlu0 %v417, 8
        %v708 = vpop.permute.xlu0 %707
        %709 = vrot.lane.b32.xlu0 %v418, 8
        %v710 = vpop.permute.xlu0 %709
        %711 = vrot.lane.b32.xlu0 %v419, 8
        %v712 = vpop.permute.xlu0 %711
        %713 = vrot.lane.b32.xlu0 %v420, 8
        %v714 = vpop.permute.xlu0 %713
        %715 = vrot.lane.b32.xlu0 %v421, 8
        %v716 = vpop.permute.xlu0 %715
        %717 = vrot.lane.b32.xlu0 %v422, 8
        %v718 = vpop.permute.xlu0 %717
        %719 = vrot.lane.b32.xlu0 %v423, 8
        %v720 = vpop.permute.xlu0 %719
        %721 = vrot.lane.b32.xlu0 %v424, 8
        %v722 = vpop.permute.xlu0 %721
        %723 = vrot.lane.b32.xlu0 %v425, 8
        %v724 = vpop.permute.xlu0 %723
        %725 = vrot.lane.b32.xlu0 %v426, 8
        %v726 = vpop.permute.xlu0 %725
        %727 = vrot.lane.b32.xlu0 %v427, 8
        %v728 = vpop.permute.xlu0 %727
        %729 = vrot.lane.b32.xlu0 %v428, 8
        %v730 = vpop.permute.xlu0 %729
        %731 = vrot.lane.b32.xlu0 %v429, 8
        %v732 = vpop.permute.xlu0 %731
        %733 = vrot.lane.b32.xlu0 %v430, 8
        %v734 = vpop.permute.xlu0 %733
        %735 = vrot.lane.b32.xlu0 %v431, 8
        %v736 = vpop.permute.xlu0 %735
        %737 = vrot.lane.b32.xlu0 %v432, 8
        %v738 = vpop.permute.xlu0 %737
        %739 = vrot.lane.b32.xlu0 %v433, 8
        %v740 = vpop.permute.xlu0 %739
        %741 = vrot.lane.b32.xlu0 %v434, 8
        %v742 = vpop.permute.xlu0 %741
        %743 = vrot.lane.b32.xlu0 %v435, 8
        %v744 = vpop.permute.xlu0 %743
        %745 = vrot.lane.b32.xlu0 %v436, 8
        %v746 = vpop.permute.xlu0 %745
        %747 = vrot.lane.b32.xlu0 %v437, 8
        %v748 = vpop.permute.xlu0 %747
        %749 = vrot.lane.b32.xlu0 %v438, 8
        %v750 = vpop.permute.xlu0 %749
        %751 = vrot.lane.b32.xlu0 %v439, 8
        %v752 = vpop.permute.xlu0 %751
        %753 = vrot.lane.b32.xlu0 %v440, 8
        %v754 = vpop.permute.xlu0 %753
        %755 = vrot.lane.b32.xlu0 %v441, 8
        %v756 = vpop.permute.xlu0 %755
        %757 = vrot.lane.b32.xlu0 %v442, 8
        %v758 = vpop.permute.xlu0 %757
        %759 = vrot.lane.b32.xlu0 %v443, 8
        %v760 = vpop.permute.xlu0 %759
        %761 = vrot.lane.b32.xlu0 %v444, 8
        %v762 = vpop.permute.xlu0 %761
        %763 = vrot.lane.b32.xlu0 %v445, 8
        %v764 = vpop.permute.xlu0 %763
        %765 = vrot.lane.b32.xlu0 %v446, 8
        %v766 = vpop.permute.xlu0 %765
        %767 = vrot.lane.b32.xlu0 %v447, 8
        %v768 = vpop.permute.xlu0 %767
        %769 = vrot.lane.b32.xlu0 %v448, 8
        %v770 = vpop.permute.xlu0 %769
        %835 = vrot.lane.b32.xlu0 %v449, 16
        %v836 = vpop.permute.xlu0 %835
        %837 = vrot.lane.b32.xlu0 %v450, 16
        %v838 = vpop.permute.xlu0 %837
        %839 = vrot.lane.b32.xlu0 %v451, 16
        %v840 = vpop.permute.xlu0 %839
        %841 = vrot.lane.b32.xlu0 %v452, 16
        %v842 = vpop.permute.xlu0 %841
        %843 = vrot.lane.b32.xlu0 %v453, 16
        %v844 = vpop.permute.xlu0 %843
        %845 = vrot.lane.b32.xlu0 %v454, 16
        %v846 = vpop.permute.xlu0 %845
        %847 = vrot.lane.b32.xlu0 %v455, 16
        %v848 = vpop.permute.xlu0 %847
        %849 = vrot.lane.b32.xlu0 %v456, 16
        %v850 = vpop.permute.xlu0 %849
        %851 = vrot.lane.b32.xlu0 %v457, 16
        %v852 = vpop.permute.xlu0 %851
        %853 = vrot.lane.b32.xlu0 %v458, 16
        %v854 = vpop.permute.xlu0 %853
        %855 = vrot.lane.b32.xlu0 %v459, 16
        %v856 = vpop.permute.xlu0 %855
        %857 = vrot.lane.b32.xlu0 %v460, 16
        %v858 = vpop.permute.xlu0 %857
        %859 = vrot.lane.b32.xlu0 %v461, 16
        %v860 = vpop.permute.xlu0 %859
        %861 = vrot.lane.b32.xlu0 %v462, 16
        %v862 = vpop.permute.xlu0 %861
        %863 = vrot.lane.b32.xlu0 %v463, 16
        %v864 = vpop.permute.xlu0 %863
        %865 = vrot.lane.b32.xlu0 %v464, 16
        %v866 = vpop.permute.xlu0 %865
        %867 = vrot.lane.b32.xlu0 %v465, 16
        %v868 = vpop.permute.xlu0 %867
        %869 = vrot.lane.b32.xlu0 %v466, 16
        %v870 = vpop.permute.xlu0 %869
        %871 = vrot.lane.b32.xlu0 %v467, 16
        %v872 = vpop.permute.xlu0 %871
        %873 = vrot.lane.b32.xlu0 %v468, 16
        %v874 = vpop.permute.xlu0 %873
        %875 = vrot.lane.b32.xlu0 %v469, 16
        %v876 = vpop.permute.xlu0 %875
        %877 = vrot.lane.b32.xlu0 %v470, 16
        %v878 = vpop.permute.xlu0 %877
        %879 = vrot.lane.b32.xlu0 %v471, 16
        %v880 = vpop.permute.xlu0 %879
        %881 = vrot.lane.b32.xlu0 %v472, 16
        %v882 = vpop.permute.xlu0 %881
        %883 = vrot.lane.b32.xlu0 %v473, 16
        %v884 = vpop.permute.xlu0 %883
        %885 = vrot.lane.b32.xlu0 %v474, 16
        %v886 = vpop.permute.xlu0 %885
        %887 = vrot.lane.b32.xlu0 %v475, 16
        %v888 = vpop.permute.xlu0 %887
        %889 = vrot.lane.b32.xlu0 %v476, 16
        %v890 = vpop.permute.xlu0 %889
        %891 = vrot.lane.b32.xlu0 %v477, 16
        %v892 = vpop.permute.xlu0 %891
        %893 = vrot.lane.b32.xlu0 %v478, 16
        %v894 = vpop.permute.xlu0 %893
        %895 = vrot.lane.b32.xlu0 %v479, 16
        %v896 = vpop.permute.xlu0 %895
        %897 = vrot.lane.b32.xlu0 %v480, 16
        %v898 = vpop.permute.xlu0 %897
        %963 = vrot.lane.b32.xlu0 %v482, 24
        %v964 = vpop.permute.xlu0 %963
        %965 = vrot.lane.b32.xlu0 %v483, 24
        %v966 = vpop.permute.xlu0 %965
        %967 = vrot.lane.b32.xlu0 %v484, 24
        %v968 = vpop.permute.xlu0 %967
        %969 = vrot.lane.b32.xlu0 %v485, 24
        %v970 = vpop.permute.xlu0 %969
        %971 = vrot.lane.b32.xlu0 %v486, 24
        %v972 = vpop.permute.xlu0 %971
        %973 = vrot.lane.b32.xlu0 %v487, 24
        %v974 = vpop.permute.xlu0 %973
        %975 = vrot.lane.b32.xlu0 %v488, 24
        %v976 = vpop.permute.xlu0 %975
        %977 = vrot.lane.b32.xlu0 %v489, 24
        %v978 = vpop.permute.xlu0 %977
        %979 = vrot.lane.b32.xlu0 %v490, 24
        %v980 = vpop.permute.xlu0 %979
        %981 = vrot.lane.b32.xlu0 %v491, 24
        %v982 = vpop.permute.xlu0 %981
        %983 = vrot.lane.b32.xlu0 %v492, 24
        %v984 = vpop.permute.xlu0 %983
        %985 = vrot.lane.b32.xlu0 %v493, 24
        %v986 = vpop.permute.xlu0 %985
        %987 = vrot.lane.b32.xlu0 %v494, 24
        %v988 = vpop.permute.xlu0 %987
        %989 = vrot.lane.b32.xlu0 %v495, 24
        %v990 = vpop.permute.xlu0 %989
        %991 = vrot.lane.b32.xlu0 %v496, 24
        %v992 = vpop.permute.xlu0 %991
        %993 = vrot.lane.b32.xlu0 %v497, 24
        %v994 = vpop.permute.xlu0 %993
        %995 = vrot.lane.b32.xlu0 %v498, 24
        %v996 = vpop.permute.xlu0 %995
        %997 = vrot.lane.b32.xlu0 %v499, 24
        %v998 = vpop.permute.xlu0 %997
        %999 = vrot.lane.b32.xlu0 %v500, 24
        %v1000 = vpop.permute.xlu0 %999
        %1001 = vrot.lane.b32.xlu0 %v501, 24
        %v1002 = vpop.permute.xlu0 %1001
        %1003 = vrot.lane.b32.xlu0 %v502, 24
        %v1004 = vpop.permute.xlu0 %1003
        %1005 = vrot.lane.b32.xlu0 %v503, 24
        %v1006 = vpop.permute.xlu0 %1005
        %1007 = vrot.lane.b32.xlu0 %v504, 24
        %v1008 = vpop.permute.xlu0 %1007
        %1009 = vrot.lane.b32.xlu0 %v505, 24
        %v1010 = vpop.permute.xlu0 %1009
        %1011 = vrot.lane.b32.xlu0 %v506, 24
        %v1012 = vpop.permute.xlu0 %1011
        %1013 = vrot.lane.b32.xlu0 %v507, 24
        %v1014 = vpop.permute.xlu0 %1013
        %1015 = vrot.lane.b32.xlu0 %v508, 24
        %v1016 = vpop.permute.xlu0 %1015
        %1017 = vrot.lane.b32.xlu0 %v509, 24
        %v1018 = vpop.permute.xlu0 %1017
        %1019 = vrot.lane.b32.xlu0 %v510, 24
        %v1020 = vpop.permute.xlu0 %1019
        %1021 = vrot.lane.b32.xlu0 %v511, 24
        %v1022 = vpop.permute.xlu0 %1021
        %1023 = vrot.lane.b32.xlu0 %v512, 24
        %v1024 = vpop.permute.xlu0 %1023
        %1025 = vrot.lane.b32.xlu0 %v513, 24
        %v1026 = vpop.permute.xlu0 %1025
        %1091 = vrot.lane.b32.xlu0 %v514, 32
        %v1092 = vpop.permute.xlu0 %1091
        %1093 = vrot.lane.b32.xlu0 %v515, 32
        %v1094 = vpop.permute.xlu0 %1093
        %1095 = vrot.lane.b32.xlu0 %v516, 32
        %v1096 = vpop.permute.xlu0 %1095
        %1097 = vrot.lane.b32.xlu0 %v517, 32
        %v1098 = vpop.permute.xlu0 %1097
        %1099 = vrot.lane.b32.xlu0 %v518, 32
        %v1100 = vpop.permute.xlu0 %1099
        %1101 = vrot.lane.b32.xlu0 %v519, 32
        %v1102 = vpop.permute.xlu0 %1101
        %1103 = vrot.lane.b32.xlu0 %v520, 32
        %v1104 = vpop.permute.xlu0 %1103
        %1105 = vrot.lane.b32.xlu0 %v521, 32
        %v1106 = vpop.permute.xlu0 %1105
        %1107 = vrot.lane.b32.xlu0 %v522, 32
        %v1108 = vpop.permute.xlu0 %1107
        %1109 = vrot.lane.b32.xlu0 %v523, 32
        %v1110 = vpop.permute.xlu0 %1109
        %1111 = vrot.lane.b32.xlu0 %v524, 32
        %v1112 = vpop.permute.xlu0 %1111
        %1113 = vrot.lane.b32.xlu0 %v525, 32
        %v1114 = vpop.permute.xlu0 %1113
        %1115 = vrot.lane.b32.xlu0 %v526, 32
        %v1116 = vpop.permute.xlu0 %1115
        %1117 = vrot.lane.b32.xlu0 %v527, 32
        %v1118 = vpop.permute.xlu0 %1117
        %1119 = vrot.lane.b32.xlu0 %v528, 32
        %v1120 = vpop.permute.xlu0 %1119
        %1121 = vrot.lane.b32.xlu0 %v529, 32
        %v1122 = vpop.permute.xlu0 %1121
        %1123 = vrot.lane.b32.xlu0 %v530, 32
        %v1124 = vpop.permute.xlu0 %1123
        %1125 = vrot.lane.b32.xlu0 %v531, 32
        %v1126 = vpop.permute.xlu0 %1125
        %1127 = vrot.lane.b32.xlu0 %v532, 32
        %v1128 = vpop.permute.xlu0 %1127
        %1129 = vrot.lane.b32.xlu0 %v533, 32
        %v1130 = vpop.permute.xlu0 %1129
        %1131 = vrot.lane.b32.xlu0 %v534, 32
        %v1132 = vpop.permute.xlu0 %1131
        %1133 = vrot.lane.b32.xlu0 %v535, 32
        %v1134 = vpop.permute.xlu0 %1133
        %1135 = vrot.lane.b32.xlu0 %v536, 32
        %v1136 = vpop.permute.xlu0 %1135
        %1137 = vrot.lane.b32.xlu0 %v537, 32
        %v1138 = vpop.permute.xlu0 %1137
        %1139 = vrot.lane.b32.xlu0 %v538, 32
        %v1140 = vpop.permute.xlu0 %1139
        %1141 = vrot.lane.b32.xlu0 %v539, 32
        %v1142 = vpop.permute.xlu0 %1141
        %1143 = vrot.lane.b32.xlu0 %v540, 32
        %v1144 = vpop.permute.xlu0 %1143
        %1145 = vrot.lane.b32.xlu0 %v541, 32
        %v1146 = vpop.permute.xlu0 %1145
        %1147 = vrot.lane.b32.xlu0 %v542, 32
        %v1148 = vpop.permute.xlu0 %1147
        %1149 = vrot.lane.b32.xlu0 %v543, 32
        %v1150 = vpop.permute.xlu0 %1149
        %1151 = vrot.lane.b32.xlu0 %v544, 32
        %v1152 = vpop.permute.xlu0 %1151
        %1153 = vrot.lane.b32.xlu0 %v545, 32
        %v1154 = vpop.permute.xlu0 %1153
        %1219 = vrot.lane.b32.xlu0 %v546, 40
        %v1220 = vpop.permute.xlu0 %1219
        %1221 = vrot.lane.b32.xlu0 %v547, 40
        %v1222 = vpop.permute.xlu0 %1221
        %1223 = vrot.lane.b32.xlu0 %v548, 40
        %v1224 = vpop.permute.xlu0 %1223
        %1225 = vrot.lane.b32.xlu0 %v549, 40
        %v1226 = vpop.permute.xlu0 %1225
        %1227 = vrot.lane.b32.xlu0 %v550, 40
        %v1228 = vpop.permute.xlu0 %1227
        %1229 = vrot.lane.b32.xlu0 %v551, 40
        %v1230 = vpop.permute.xlu0 %1229
        %1231 = vrot.lane.b32.xlu0 %v552, 40
        %v1232 = vpop.permute.xlu0 %1231
        %1233 = vrot.lane.b32.xlu0 %v553, 40
        %v1234 = vpop.permute.xlu0 %1233
        %1235 = vrot.lane.b32.xlu0 %v554, 40
        %v1236 = vpop.permute.xlu0 %1235
        %1237 = vrot.lane.b32.xlu0 %v555, 40
        %v1238 = vpop.permute.xlu0 %1237
        %1239 = vrot.lane.b32.xlu0 %v556, 40
        %v1240 = vpop.permute.xlu0 %1239
        %1241 = vrot.lane.b32.xlu0 %v557, 40
        %v1242 = vpop.permute.xlu0 %1241
        %1243 = vrot.lane.b32.xlu0 %v558, 40
        %v1244 = vpop.permute.xlu0 %1243
        %1245 = vrot.lane.b32.xlu0 %v559, 40
        %v1246 = vpop.permute.xlu0 %1245
        %1247 = vrot.lane.b32.xlu0 %v560, 40
        %v1248 = vpop.permute.xlu0 %1247
        %1249 = vrot.lane.b32.xlu0 %v561, 40
        %v1250 = vpop.permute.xlu0 %1249
        %1251 = vrot.lane.b32.xlu0 %v562, 40
        %v1252 = vpop.permute.xlu0 %1251
        %1253 = vrot.lane.b32.xlu0 %v563, 40
        %v1254 = vpop.permute.xlu0 %1253
        %1255 = vrot.lane.b32.xlu0 %v564, 40
        %v1256 = vpop.permute.xlu0 %1255
        %1257 = vrot.lane.b32.xlu0 %v565, 40
        %v1258 = vpop.permute.xlu0 %1257
        %1259 = vrot.lane.b32.xlu0 %v566, 40
        %v1260 = vpop.permute.xlu0 %1259
        %1261 = vrot.lane.b32.xlu0 %v567, 40
        %v1262 = vpop.permute.xlu0 %1261
        %1263 = vrot.lane.b32.xlu0 %v568, 40
        %v1264 = vpop.permute.xlu0 %1263
        %1265 = vrot.lane.b32.xlu0 %v569, 40
        %v1266 = vpop.permute.xlu0 %1265
        %1267 = vrot.lane.b32.xlu0 %v570, 40
        %v1268 = vpop.permute.xlu0 %1267
        %1269 = vrot.lane.b32.xlu0 %v571, 40
        %v1270 = vpop.permute.xlu0 %1269
        %1271 = vrot.lane.b32.xlu0 %v572, 40
        %v1272 = vpop.permute.xlu0 %1271
        %1273 = vrot.lane.b32.xlu0 %v573, 40
        %v1274 = vpop.permute.xlu0 %1273
        %1275 = vrot.lane.b32.xlu0 %v574, 40
        %v1276 = vpop.permute.xlu0 %1275
        %1277 = vrot.lane.b32.xlu0 %v575, 40
        %v1278 = vpop.permute.xlu0 %1277
        %1279 = vrot.lane.b32.xlu0 %v576, 40
        %v1280 = vpop.permute.xlu0 %1279
        %1281 = vrot.lane.b32.xlu0 %v577, 40
        %v1282 = vpop.permute.xlu0 %1281
        %1347 = vrot.lane.b32.xlu0 %v579, 48
        %v1348 = vpop.permute.xlu0 %1347
        %1349 = vrot.lane.b32.xlu0 %v580, 48
        %v1350 = vpop.permute.xlu0 %1349
        %1351 = vrot.lane.b32.xlu0 %v581, 48
        %v1352 = vpop.permute.xlu0 %1351
        %1353 = vrot.lane.b32.xlu0 %v582, 48
        %v1354 = vpop.permute.xlu0 %1353
        %1355 = vrot.lane.b32.xlu0 %v583, 48
        %v1356 = vpop.permute.xlu0 %1355
        %1357 = vrot.lane.b32.xlu0 %v584, 48
        %v1358 = vpop.permute.xlu0 %1357
        %1359 = vrot.lane.b32.xlu0 %v585, 48
        %v1360 = vpop.permute.xlu0 %1359
        %1361 = vrot.lane.b32.xlu0 %v586, 48
        %v1362 = vpop.permute.xlu0 %1361
        %1363 = vrot.lane.b32.xlu0 %v587, 48
        %v1364 = vpop.permute.xlu0 %1363
        %1365 = vrot.lane.b32.xlu0 %v588, 48
        %v1366 = vpop.permute.xlu0 %1365
        %1367 = vrot.lane.b32.xlu0 %v589, 48
        %v1368 = vpop.permute.xlu0 %1367
        %1369 = vrot.lane.b32.xlu0 %v590, 48
        %v1370 = vpop.permute.xlu0 %1369
        %1371 = vrot.lane.b32.xlu0 %v591, 48
        %v1372 = vpop.permute.xlu0 %1371
        %1373 = vrot.lane.b32.xlu0 %v592, 48
        %v1374 = vpop.permute.xlu0 %1373
        %1375 = vrot.lane.b32.xlu0 %v593, 48
        %v1376 = vpop.permute.xlu0 %1375
        %1377 = vrot.lane.b32.xlu0 %v594, 48
        %v1378 = vpop.permute.xlu0 %1377
        %1379 = vrot.lane.b32.xlu0 %v595, 48
        %v1380 = vpop.permute.xlu0 %1379
        %1381 = vrot.lane.b32.xlu0 %v596, 48
        %v1382 = vpop.permute.xlu0 %1381
        %1383 = vrot.lane.b32.xlu0 %v597, 48
        %v1384 = vpop.permute.xlu0 %1383
        %1385 = vrot.lane.b32.xlu0 %v598, 48
        %v1386 = vpop.permute.xlu0 %1385
        %1387 = vrot.lane.b32.xlu0 %v599, 48
        %v1388 = vpop.permute.xlu0 %1387
        %1389 = vrot.lane.b32.xlu0 %v600, 48
        %v1390 = vpop.permute.xlu0 %1389
        %1391 = vrot.lane.b32.xlu0 %v601, 48
        %v1392 = vpop.permute.xlu0 %1391
        %1393 = vrot.lane.b32.xlu0 %v602, 48
        %v1394 = vpop.permute.xlu0 %1393
        %1395 = vrot.lane.b32.xlu0 %v603, 48
        %v1396 = vpop.permute.xlu0 %1395
        %1397 = vrot.lane.b32.xlu0 %v604, 48
        %v1398 = vpop.permute.xlu0 %1397
        %1399 = vrot.lane.b32.xlu0 %v605, 48
        %v1400 = vpop.permute.xlu0 %1399
        %1401 = vrot.lane.b32.xlu0 %v606, 48
        %v1402 = vpop.permute.xlu0 %1401
        %1403 = vrot.lane.b32.xlu0 %v607, 48
        %v1404 = vpop.permute.xlu0 %1403
        %1405 = vrot.lane.b32.xlu0 %v608, 48
        %v1406 = vpop.permute.xlu0 %1405
        %1407 = vrot.lane.b32.xlu0 %v609, 48
        %v1408 = vpop.permute.xlu0 %1407
        %1409 = vrot.lane.b32.xlu0 %v610, 48
        %v1410 = vpop.permute.xlu0 %1409
        %1475 = vrot.lane.b32.xlu0 %v611, 56
        %v1476 = vpop.permute.xlu0 %1475
        %1477 = vrot.lane.b32.xlu0 %v612, 56
        %v1478 = vpop.permute.xlu0 %1477
        %1479 = vrot.lane.b32.xlu0 %v613, 56
        %v1480 = vpop.permute.xlu0 %1479
        %1481 = vrot.lane.b32.xlu0 %v614, 56
        %v1482 = vpop.permute.xlu0 %1481
        %1483 = vrot.lane.b32.xlu0 %v615, 56
        %v1484 = vpop.permute.xlu0 %1483
        %1485 = vrot.lane.b32.xlu0 %v616, 56
        %v1486 = vpop.permute.xlu0 %1485
        %1487 = vrot.lane.b32.xlu0 %v617, 56
        %v1488 = vpop.permute.xlu0 %1487
        %1489 = vrot.lane.b32.xlu0 %v618, 56
        %v1490 = vpop.permute.xlu0 %1489
        %1491 = vrot.lane.b32.xlu0 %v619, 56
        %v1492 = vpop.permute.xlu0 %1491
        %1493 = vrot.lane.b32.xlu0 %v620, 56
        %v1494 = vpop.permute.xlu0 %1493
        %1495 = vrot.lane.b32.xlu0 %v621, 56
        %v1496 = vpop.permute.xlu0 %1495
        %1497 = vrot.lane.b32.xlu0 %v622, 56
        %v1498 = vpop.permute.xlu0 %1497
        %1499 = vrot.lane.b32.xlu0 %v623, 56
        %v1500 = vpop.permute.xlu0 %1499
        %1501 = vrot.lane.b32.xlu0 %v624, 56
        %v1502 = vpop.permute.xlu0 %1501
        %1503 = vrot.lane.b32.xlu0 %v625, 56
        %v1504 = vpop.permute.xlu0 %1503
        %1505 = vrot.lane.b32.xlu0 %v626, 56
        %v1506 = vpop.permute.xlu0 %1505
        %1507 = vrot.lane.b32.xlu0 %v627, 56
        %v1508 = vpop.permute.xlu0 %1507
        %1509 = vrot.lane.b32.xlu0 %v628, 56
        %v1510 = vpop.permute.xlu0 %1509
        %1511 = vrot.lane.b32.xlu0 %v629, 56
        %v1512 = vpop.permute.xlu0 %1511
        %1513 = vrot.lane.b32.xlu0 %v630, 56
        %v1514 = vpop.permute.xlu0 %1513
        %1515 = vrot.lane.b32.xlu0 %v631, 56
        %v1516 = vpop.permute.xlu0 %1515
        %1517 = vrot.lane.b32.xlu0 %v632, 56
        %v1518 = vpop.permute.xlu0 %1517
        %1519 = vrot.lane.b32.xlu0 %v633, 56
        %v1520 = vpop.permute.xlu0 %1519
        %1521 = vrot.lane.b32.xlu0 %v634, 56
        %v1522 = vpop.permute.xlu0 %1521
        %1523 = vrot.lane.b32.xlu0 %v635, 56
        %v1524 = vpop.permute.xlu0 %1523
        %1525 = vrot.lane.b32.xlu0 %v636, 56
        %v1526 = vpop.permute.xlu0 %1525
        %1527 = vrot.lane.b32.xlu0 %v637, 56
        %v1528 = vpop.permute.xlu0 %1527
        %1529 = vrot.lane.b32.xlu0 %v638, 56
        %v1530 = vpop.permute.xlu0 %1529
        %1531 = vrot.lane.b32.xlu0 %v639, 56
        %v1532 = vpop.permute.xlu0 %1531
        %1533 = vrot.lane.b32.xlu0 %v640, 56
        %v1534 = vpop.permute.xlu0 %1533
        %1535 = vrot.lane.b32.xlu0 %v641, 56
        %v1536 = vpop.permute.xlu0 %1535
        %1537 = vrot.lane.b32.xlu0 %v642, 56
        %v1538 = vpop.permute.xlu0 %1537
        %1603 = vrot.lane.b32.xlu0 %v643, 64
        %v1604 = vpop.permute.xlu0 %1603
        %1605 = vrot.lane.b32.xlu0 %v644, 64
        %v1606 = vpop.permute.xlu0 %1605
        %1607 = vrot.lane.b32.xlu0 %v645, 64
        %v1608 = vpop.permute.xlu0 %1607
        %1609 = vrot.lane.b32.xlu0 %v646, 64
        %v1610 = vpop.permute.xlu0 %1609
        %1611 = vrot.lane.b32.xlu0 %v647, 64
        %v1612 = vpop.permute.xlu0 %1611
        %1613 = vrot.lane.b32.xlu0 %v648, 64
        %v1614 = vpop.permute.xlu0 %1613
        %1615 = vrot.lane.b32.xlu0 %v649, 64
        %v1616 = vpop.permute.xlu0 %1615
        %1617 = vrot.lane.b32.xlu0 %v650, 64
        %v1618 = vpop.permute.xlu0 %1617
        %1619 = vrot.lane.b32.xlu0 %v651, 64
        %v1620 = vpop.permute.xlu0 %1619
        %1621 = vrot.lane.b32.xlu0 %v652, 64
        %v1622 = vpop.permute.xlu0 %1621
        %1623 = vrot.lane.b32.xlu0 %v653, 64
        %v1624 = vpop.permute.xlu0 %1623
        %1625 = vrot.lane.b32.xlu0 %v654, 64
        %v1626 = vpop.permute.xlu0 %1625
        %1627 = vrot.lane.b32.xlu0 %v655, 64
        %v1628 = vpop.permute.xlu0 %1627
        %1629 = vrot.lane.b32.xlu0 %v656, 64
        %v1630 = vpop.permute.xlu0 %1629
        %1631 = vrot.lane.b32.xlu0 %v657, 64
        %v1632 = vpop.permute.xlu0 %1631
        %1633 = vrot.lane.b32.xlu0 %v658, 64
        %v1634 = vpop.permute.xlu0 %1633
        %1635 = vrot.lane.b32.xlu0 %v659, 64
        %v1636 = vpop.permute.xlu0 %1635
        %1637 = vrot.lane.b32.xlu0 %v660, 64
        %v1638 = vpop.permute.xlu0 %1637
        %1639 = vrot.lane.b32.xlu0 %v661, 64
        %v1640 = vpop.permute.xlu0 %1639
        %1641 = vrot.lane.b32.xlu0 %v662, 64
        %v1642 = vpop.permute.xlu0 %1641
        %1643 = vrot.lane.b32.xlu0 %v663, 64
        %v1644 = vpop.permute.xlu0 %1643
        %1645 = vrot.lane.b32.xlu0 %v664, 64
        %v1646 = vpop.permute.xlu0 %1645
        %1647 = vrot.lane.b32.xlu0 %v665, 64
        %v1648 = vpop.permute.xlu0 %1647
        %1649 = vrot.lane.b32.xlu0 %v666, 64
        %v1650 = vpop.permute.xlu0 %1649
        %1651 = vrot.lane.b32.xlu0 %v667, 64
        %v1652 = vpop.permute.xlu0 %1651
        %1653 = vrot.lane.b32.xlu0 %v668, 64
        %v1654 = vpop.permute.xlu0 %1653
        %1655 = vrot.lane.b32.xlu0 %v669, 64
        %v1656 = vpop.permute.xlu0 %1655
        %1657 = vrot.lane.b32.xlu0 %v670, 64
        %v1658 = vpop.permute.xlu0 %1657
        %1659 = vrot.lane.b32.xlu0 %v671, 64
        %v1660 = vpop.permute.xlu0 %1659
        %1661 = vrot.lane.b32.xlu0 %v672, 64
        %v1662 = vpop.permute.xlu0 %1661
        %1663 = vrot.lane.b32.xlu0 %v673, 64
        %v1664 = vpop.permute.xlu0 %1663
        %1665 = vrot.lane.b32.xlu0 %v674, 64
        %v1666 = vpop.permute.xlu0 %1665
        %vm1699 = vcmask 64512
        %v1700 = vsel %vm1699, %v385, %v708
        %v1701 = vsel %vm1699, %v386, %v710
        %v1702 = vsel %vm1699, %v387, %v712
        %v1703 = vsel %vm1699, %v388, %v714
        %v1704 = vsel %vm1699, %v389, %v716
        %v1705 = vsel %vm1699, %v390, %v718
        %v1706 = vsel %vm1699, %v391, %v720
        %v1707 = vsel %vm1699, %v392, %v722
        %v1708 = vsel %vm1699, %v393, %v724
        %v1709 = vsel %vm1699, %v394, %v726
        %v1710 = vsel %vm1699, %v395, %v728
        %v1711 = vsel %vm1699, %v396, %v730
        %v1712 = vsel %vm1699, %v397, %v732
        %v1713 = vsel %vm1699, %v398, %v734
        %v1714 = vsel %vm1699, %v399, %v736
        %v1715 = vsel %vm1699, %v400, %v738
        %v1716 = vsel %vm1699, %v401, %v740
        %v1717 = vsel %vm1699, %v402, %v742
        %v1718 = vsel %vm1699, %v403, %v744
        %v1719 = vsel %vm1699, %v404, %v746
        %v1720 = vsel %vm1699, %v405, %v748
        %v1721 = vsel %vm1699, %v406, %v750
        %v1722 = vsel %vm1699, %v407, %v752
        %v1723 = vsel %vm1699, %v408, %v754
        %v1724 = vsel %vm1699, %v409, %v756
        %v1725 = vsel %vm1699, %v410, %v758
        %v1726 = vsel %vm1699, %v411, %v760
        %v1727 = vsel %vm1699, %v412, %v762
        %v1728 = vsel %vm1699, %v413, %v764
        %v1729 = vsel %vm1699, %v414, %v766
        %v1730 = vsel %vm1699, %v415, %v768
        %v1731 = vsel %vm1699, %v416, %v770
        %vm1732 = vcmask 130048
        %v1733 = vsel %vm1732, %v1700, %v836
        %v1734 = vsel %vm1732, %v1701, %v838
        %v1735 = vsel %vm1732, %v1702, %v840
        %v1736 = vsel %vm1732, %v1703, %v842
        %v1737 = vsel %vm1732, %v1704, %v844
        %v1738 = vsel %vm1732, %v1705, %v846
        %v1739 = vsel %vm1732, %v1706, %v848
        %v1740 = vsel %vm1732, %v1707, %v850
        %v1741 = vsel %vm1732, %v1708, %v852
        %v1742 = vsel %vm1732, %v1709, %v854
        %v1743 = vsel %vm1732, %v1710, %v856
        %v1744 = vsel %vm1732, %v1711, %v858
        %v1745 = vsel %vm1732, %v1712, %v860
        %v1746 = vsel %vm1732, %v1713, %v862
        %v1747 = vsel %vm1732, %v1714, %v864
        %v1748 = vsel %vm1732, %v1715, %v866
        %v1749 = vsel %vm1732, %v1716, %v868
        %v1750 = vsel %vm1732, %v1717, %v870
        %v1751 = vsel %vm1732, %v1718, %v872
        %v1752 = vsel %vm1732, %v1719, %v874
        %v1753 = vsel %vm1732, %v1720, %v876
        %v1754 = vsel %vm1732, %v1721, %v878
        %v1755 = vsel %vm1732, %v1722, %v880
        %v1756 = vsel %vm1732, %v1723, %v882
        %v1757 = vsel %vm1732, %v1724, %v884
        %v1758 = vsel %vm1732, %v1725, %v886
        %v1759 = vsel %vm1732, %v1726, %v888
        %v1760 = vsel %vm1732, %v1727, %v890
        %v1761 = vsel %vm1732, %v1728, %v892
        %v1762 = vsel %vm1732, %v1729, %v894
        %v1763 = vsel %vm1732, %v1730, %v896
        %v1764 = vsel %vm1732, %v1731, %v898
        %vm1765 = vcmask 195584
        %v1766 = vsel %vm1765, %v1733, %v964
        %v1767 = vsel %vm1765, %v1734, %v966
        %v1768 = vsel %vm1765, %v1735, %v968
        %v1769 = vsel %vm1765, %v1736, %v970
        %v1770 = vsel %vm1765, %v1737, %v972
        %v1771 = vsel %vm1765, %v1738, %v974
        %v1772 = vsel %vm1765, %v1739, %v976
        %v1773 = vsel %vm1765, %v1740, %v978
        %v1774 = vsel %vm1765, %v1741, %v980
        %v1775 = vsel %vm1765, %v1742, %v982
        %v1776 = vsel %vm1765, %v1743, %v984
        %v1777 = vsel %vm1765, %v1744, %v986
        %v1778 = vsel %vm1765, %v1745, %v988
        %v1779 = vsel %vm1765, %v1746, %v990
        %v1780 = vsel %vm1765, %v1747, %v992
        %v1781 = vsel %vm1765, %v1748, %v994
        %v1782 = vsel %vm1765, %v1749, %v996
        %v1783 = vsel %vm1765, %v1750, %v998
        %v1784 = vsel %vm1765, %v1751, %v1000
        %v1785 = vsel %vm1765, %v1752, %v1002
        %v1786 = vsel %vm1765, %v1753, %v1004
        %v1787 = vsel %vm1765, %v1754, %v1006
        %v1788 = vsel %vm1765, %v1755, %v1008
        %v1789 = vsel %vm1765, %v1756, %v1010
        %v1790 = vsel %vm1765, %v1757, %v1012
        %v1791 = vsel %vm1765, %v1758, %v1014
        %v1792 = vsel %vm1765, %v1759, %v1016
        %v1793 = vsel %vm1765, %v1760, %v1018
        %v1794 = vsel %vm1765, %v1761, %v1020
        %v1795 = vsel %vm1765, %v1762, %v1022
        %v1796 = vsel %vm1765, %v1763, %v1024
        %v1797 = vsel %vm1765, %v1764, %v1026
        %vm1798 = vcmask 261120
        %v1799 = vsel %vm1798, %v1766, %v1092
        %v1800 = vsel %vm1798, %v1767, %v1094
        %v1801 = vsel %vm1798, %v1768, %v1096
        %v1802 = vsel %vm1798, %v1769, %v1098
        %v1803 = vsel %vm1798, %v1770, %v1100
        %v1804 = vsel %vm1798, %v1771, %v1102
        %v1805 = vsel %vm1798, %v1772, %v1104
        %v1806 = vsel %vm1798, %v1773, %v1106
        %v1807 = vsel %vm1798, %v1774, %v1108
        %v1808 = vsel %vm1798, %v1775, %v1110
        %v1809 = vsel %vm1798, %v1776, %v1112
        %v1810 = vsel %vm1798, %v1777, %v1114
        %v1811 = vsel %vm1798, %v1778, %v1116
        %v1812 = vsel %vm1798, %v1779, %v1118
        %v1813 = vsel %vm1798, %v1780, %v1120
        %v1814 = vsel %vm1798, %v1781, %v1122
        %v1815 = vsel %vm1798, %v1782, %v1124
        %v1816 = vsel %vm1798, %v1783, %v1126
        %v1817 = vsel %vm1798, %v1784, %v1128
        %v1818 = vsel %vm1798, %v1785, %v1130
        %v1819 = vsel %vm1798, %v1786, %v1132
        %v1820 = vsel %vm1798, %v1787, %v1134
        %v1821 = vsel %vm1798, %v1788, %v1136
        %v1822 = vsel %vm1798, %v1789, %v1138
        %v1823 = vsel %vm1798, %v1790, %v1140
        %v1824 = vsel %vm1798, %v1791, %v1142
        %v1825 = vsel %vm1798, %v1792, %v1144
        %v1826 = vsel %vm1798, %v1793, %v1146
        %v1827 = vsel %vm1798, %v1794, %v1148
        %v1828 = vsel %vm1798, %v1795, %v1150
        %v1829 = vsel %vm1798, %v1796, %v1152
        %v1830 = vsel %vm1798, %v1797, %v1154
        %vm1831 = vcmask 326656
        %v1832 = vsel %vm1831, %v1799, %v1220
        %v1833 = vsel %vm1831, %v1800, %v1222
        %v1834 = vsel %vm1831, %v1801, %v1224
        %v1835 = vsel %vm1831, %v1802, %v1226
        %v1836 = vsel %vm1831, %v1803, %v1228
        %v1837 = vsel %vm1831, %v1804, %v1230
        %v1838 = vsel %vm1831, %v1805, %v1232
        %v1839 = vsel %vm1831, %v1806, %v1234
        %v1840 = vsel %vm1831, %v1807, %v1236
        %v1841 = vsel %vm1831, %v1808, %v1238
        %v1842 = vsel %vm1831, %v1809, %v1240
        %v1843 = vsel %vm1831, %v1810, %v1242
        %v1844 = vsel %vm1831, %v1811, %v1244
        %v1845 = vsel %vm1831, %v1812, %v1246
        %v1846 = vsel %vm1831, %v1813, %v1248
        %v1847 = vsel %vm1831, %v1814, %v1250
        %v1848 = vsel %vm1831, %v1815, %v1252
        %v1849 = vsel %vm1831, %v1816, %v1254
        %v1850 = vsel %vm1831, %v1817, %v1256
        %v1851 = vsel %vm1831, %v1818, %v1258
        %v1852 = vsel %vm1831, %v1819, %v1260
        %v1853 = vsel %vm1831, %v1820, %v1262
        %v1854 = vsel %vm1831, %v1821, %v1264
        %v1855 = vsel %vm1831, %v1822, %v1266
        %v1856 = vsel %vm1831, %v1823, %v1268
        %v1857 = vsel %vm1831, %v1824, %v1270
        %v1858 = vsel %vm1831, %v1825, %v1272
        %v1859 = vsel %vm1831, %v1826, %v1274
        %v1860 = vsel %vm1831, %v1827, %v1276
        %v1861 = vsel %vm1831, %v1828, %v1278
        %v1862 = vsel %vm1831, %v1829, %v1280
        %v1863 = vsel %vm1831, %v1830, %v1282
        %vm1864 = vcmask 392192
        %v1865 = vsel %vm1864, %v1832, %v1348
        %v1866 = vsel %vm1864, %v1833, %v1350
        %v1867 = vsel %vm1864, %v1834, %v1352
        %v1868 = vsel %vm1864, %v1835, %v1354
        %v1869 = vsel %vm1864, %v1836, %v1356
        %v1870 = vsel %vm1864, %v1837, %v1358
        %v1871 = vsel %vm1864, %v1838, %v1360
        %v1872 = vsel %vm1864, %v1839, %v1362
        %v1873 = vsel %vm1864, %v1840, %v1364
        %v1874 = vsel %vm1864, %v1841, %v1366
        %v1875 = vsel %vm1864, %v1842, %v1368
        %v1876 = vsel %vm1864, %v1843, %v1370
        %v1877 = vsel %vm1864, %v1844, %v1372
        %v1878 = vsel %vm1864, %v1845, %v1374
        %v1879 = vsel %vm1864, %v1846, %v1376
        %v1880 = vsel %vm1864, %v1847, %v1378
        %v1881 = vsel %vm1864, %v1848, %v1380
        %v1882 = vsel %vm1864, %v1849, %v1382
        %v1883 = vsel %vm1864, %v1850, %v1384
        %v1884 = vsel %vm1864, %v1851, %v1386
        %v1885 = vsel %vm1864, %v1852, %v1388
        %v1886 = vsel %vm1864, %v1853, %v1390
        %v1887 = vsel %vm1864, %v1854, %v1392
        %v1888 = vsel %vm1864, %v1855, %v1394
        %v1889 = vsel %vm1864, %v1856, %v1396
        %v1890 = vsel %vm1864, %v1857, %v1398
        %v1891 = vsel %vm1864, %v1858, %v1400
        %v1892 = vsel %vm1864, %v1859, %v1402
        %v1893 = vsel %vm1864, %v1860, %v1404
        %v1894 = vsel %vm1864, %v1861, %v1406
        %v1895 = vsel %vm1864, %v1862, %v1408
        %v1896 = vsel %vm1864, %v1863, %v1410
        %vm1897 = vcmask 457728
        %v1898 = vsel %vm1897, %v1865, %v1476
        %v1899 = vsel %vm1897, %v1866, %v1478
        %v1900 = vsel %vm1897, %v1867, %v1480
        %v1901 = vsel %vm1897, %v1868, %v1482
        %v1902 = vsel %vm1897, %v1869, %v1484
        %v1903 = vsel %vm1897, %v1870, %v1486
        %v1904 = vsel %vm1897, %v1871, %v1488
        %v1905 = vsel %vm1897, %v1872, %v1490
        %v1906 = vsel %vm1897, %v1873, %v1492
        %v1907 = vsel %vm1897, %v1874, %v1494
        %v1908 = vsel %vm1897, %v1875, %v1496
        %v1909 = vsel %vm1897, %v1876, %v1498
        %v1910 = vsel %vm1897, %v1877, %v1500
        %v1911 = vsel %vm1897, %v1878, %v1502
        %v1912 = vsel %vm1897, %v1879, %v1504
        %v1913 = vsel %vm1897, %v1880, %v1506
        %v1914 = vsel %vm1897, %v1881, %v1508
        %v1915 = vsel %vm1897, %v1882, %v1510
        %v1916 = vsel %vm1897, %v1883, %v1512
        %v1917 = vsel %vm1897, %v1884, %v1514
        %v1918 = vsel %vm1897, %v1885, %v1516
        %v1919 = vsel %vm1897, %v1886, %v1518
        %v1920 = vsel %vm1897, %v1887, %v1520
        %v1921 = vsel %vm1897, %v1888, %v1522
        %v1922 = vsel %vm1897, %v1889, %v1524
        %v1923 = vsel %vm1897, %v1890, %v1526
        %v1924 = vsel %vm1897, %v1891, %v1528
        %v1925 = vsel %vm1897, %v1892, %v1530
        %v1926 = vsel %vm1897, %v1893, %v1532
        %v1927 = vsel %vm1897, %v1894, %v1534
        %v1928 = vsel %vm1897, %v1895, %v1536
        %v1929 = vsel %vm1897, %v1896, %v1538
        %vm1930 = vcmask 523264
        %v1931 = vsel %vm1930, %v1898, %v1604
        %v1932 = vsel %vm1930, %v1899, %v1606
        %v1933 = vsel %vm1930, %v1900, %v1608
        %v1934 = vsel %vm1930, %v1901, %v1610
        %v1935 = vsel %vm1930, %v1902, %v1612
        %v1936 = vsel %vm1930, %v1903, %v1614
        %v1937 = vsel %vm1930, %v1904, %v1616
        %v1938 = vsel %vm1930, %v1905, %v1618
        %v1939 = vsel %vm1930, %v1906, %v1620
        %v1940 = vsel %vm1930, %v1907, %v1622
        %v1941 = vsel %vm1930, %v1908, %v1624
        %v1942 = vsel %vm1930, %v1909, %v1626
        %v1943 = vsel %vm1930, %v1910, %v1628
        %v1944 = vsel %vm1930, %v1911, %v1630
        %v1945 = vsel %vm1930, %v1912, %v1632
        %v1946 = vsel %vm1930, %v1913, %v1634
        %v1947 = vsel %vm1930, %v1914, %v1636
        %v1948 = vsel %vm1930, %v1915, %v1638
        %v1949 = vsel %vm1930, %v1916, %v1640
        %v1950 = vsel %vm1930, %v1917, %v1642
        %v1951 = vsel %vm1930, %v1918, %v1644
        %v1952 = vsel %vm1930, %v1919, %v1646
        %v1953 = vsel %vm1930, %v1920, %v1648
        %v1954 = vsel %vm1930, %v1921, %v1650
        %v1955 = vsel %vm1930, %v1922, %v1652
        %v1956 = vsel %vm1930, %v1923, %v1654
        %v1957 = vsel %vm1930, %v1924, %v1656
        %v1958 = vsel %vm1930, %v1925, %v1658
        %v1959 = vsel %vm1930, %v1926, %v1660
        %v1960 = vsel %vm1930, %v1927, %v1662
        %v1961 = vsel %vm1930, %v1928, %v1664
        %v1962 = vsel %vm1930, %v1929, %v1666
        %v1963 = vpack.c.bf16 %v1932, %v1931
        %v1964 = vpack.c.bf16 %v1934, %v1933
        %v1965 = vpack.c.bf16 %v1936, %v1935
        %v1966 = vpack.c.bf16 %v1938, %v1937
        %v1967 = vpack.c.bf16 %v1940, %v1939
        %v1968 = vpack.c.bf16 %v1942, %v1941
        %v1969 = vpack.c.bf16 %v1944, %v1943
        %v1970 = vpack.c.bf16 %v1946, %v1945
        %v1971 = vpack.c.bf16 %v1948, %v1947
        %v1972 = vpack.c.bf16 %v1950, %v1949
        %v1973 = vpack.c.bf16 %v1952, %v1951
        %v1974 = vpack.c.bf16 %v1954, %v1953
        %v1975 = vpack.c.bf16 %v1956, %v1955
        %v1976 = vpack.c.bf16 %v1958, %v1957
        %v1977 = vpack.c.bf16 %v1960, %v1959
        %v1978 = vpack.c.bf16 %v1962, %v1961
        %v1979 = vld [vmem:[%s1] sm:$0xf]
        %v1980 = vld [vmem:[%s1 + $0x4] sm:$0xf]
        %v1981 = vld [vmem:[%s1 + $0x8] sm:$0xf]
        %v1982 = vld [vmem:[%s1 + $0xc] sm:$0xf]
        %v1983 = vld [vmem:[%s1 + $0x10] sm:$0xf]
        %v1984 = vld [vmem:[%s1 + $0x14] sm:$0xf]
        %v1985 = vld [vmem:[%s1 + $0x18] sm:$0xf]
        %v1986 = vld [vmem:[%s1 + $0x1c] sm:$0xf]
        %v1987 = vld [vmem:[%s1 + $0x20] sm:$0xf]
        %v1988 = vld [vmem:[%s2] sm:$0x1]
        %v1990 = vperm.slane %v1988, 0
        %v2001 = vunpack.c.l.b16 %v1979
        %v2002 = vunpack.c.l.b16 %v1980
        %v2003 = vunpack.c.l.b16 %v1981
        %v2004 = vunpack.c.l.b16 %v1982
        %v2005 = vunpack.c.l.b16 %v1983
        %v2006 = vunpack.c.l.b16 %v1984
        %v2007 = vunpack.c.l.b16 %v1985
        %v2008 = vunpack.c.l.b16 %v1986
        %v2009 = vunpack.c.l.b16 %v1987
        %v2010 = vpack.c.b16 %v2002, %v2001
        %v2011 = vpack.c.b16 %v2004, %v2003
        %v2012 = vpack.c.b16 %v2006, %v2005
        %v2013 = vpack.c.b16 %v2008, %v2007
        %v2014 = vpack.c.b16 %v2009, %v2009
        %vm2019 = vcmask 588800
        %v2021 = vsel %vm2019, %v1963, 0
        %v2024 = vsel %vm2019, %v1964, 0
        %v2027 = vsel %vm2019, %v1965, 0
        %v2030 = vsel %vm2019, %v1966, 0
        %v2033 = vsel %vm2019, %v1967, 0
        %v2036 = vsel %vm2019, %v1968, 0
        %v2039 = vsel %vm2019, %v1969, 0
        %v2042 = vsel %vm2019, %v1970, 0
        %v2045 = vsel %vm2019, %v1971, 0
        %v2048 = vsel %vm2019, %v1972, 0
        %v2051 = vsel %vm2019, %v1973, 0
        %v2054 = vsel %vm2019, %v1974, 0
        %v2057 = vsel %vm2019, %v1975, 0
        %v2060 = vsel %vm2019, %v1976, 0
        %v2063 = vsel %vm2019, %v1977, 0
        %v2066 = vsel %vm2019, %v1978, 0
        %vm2068 = vcmask 1043456
        %v2070 = vsel %vm2068, %v2014, 0
        %2072 = vmatpush.bf16.msra.mxu0 0
        %2073 = vmatpush.bf16.msra.mxu0 0
        %2074 = vmatpush.bf16.msra.mxu0 0
        %2075 = vmatpush.bf16.msra.mxu0 %v2070
        %2076 = vmatpush.bf16.msra.mxu0 %v2013
        %2077 = vmatpush.bf16.msra.mxu0 %v2012
        %2078 = vmatpush.bf16.msra.mxu0 %v2011
        %2079 = vmatpush.bf16.msra.mxu0 %v2010
        %2080 = vmatmul.bf16.gmra.mxu0 %v2021
        %v2081 = vpop.f32.mrf.mxu0
        %v2082 = vadd.f32 %v1990, %v2081
        %v2083 = vpop.f32.mrf.mxu0
        %v2084 = vadd.f32 %v1990, %v2083
        %2085 = vmatmul.bf16.gmra.mxu0 %v2024
        %v2086 = vpop.f32.mrf.mxu0
        %v2087 = vadd.f32 %v1990, %v2086
        %v2088 = vpop.f32.mrf.mxu0
        %v2089 = vadd.f32 %v1990, %v2088
        %2090 = vmatmul.bf16.gmra.mxu0 %v2027
        %v2091 = vpop.f32.mrf.mxu0
        %v2092 = vadd.f32 %v1990, %v2091
        %v2093 = vpop.f32.mrf.mxu0
        %v2094 = vadd.f32 %v1990, %v2093
        %2095 = vmatmul.bf16.gmra.mxu0 %v2030
        %v2096 = vpop.f32.mrf.mxu0
        %v2097 = vadd.f32 %v1990, %v2096
        %v2098 = vpop.f32.mrf.mxu0
        %v2099 = vadd.f32 %v1990, %v2098
        %2100 = vmatmul.bf16.gmra.mxu0 %v2033
        %v2101 = vpop.f32.mrf.mxu0
        %v2102 = vadd.f32 %v1990, %v2101
        %v2103 = vpop.f32.mrf.mxu0
        %v2104 = vadd.f32 %v1990, %v2103
        %2105 = vmatmul.bf16.gmra.mxu0 %v2036
        %v2106 = vpop.f32.mrf.mxu0
        %v2107 = vadd.f32 %v1990, %v2106
        %v2108 = vpop.f32.mrf.mxu0
        %v2109 = vadd.f32 %v1990, %v2108
        %2110 = vmatmul.bf16.gmra.mxu0 %v2039
        %v2111 = vpop.f32.mrf.mxu0
        %v2112 = vadd.f32 %v1990, %v2111
        %v2113 = vpop.f32.mrf.mxu0
        %v2114 = vadd.f32 %v1990, %v2113
        %2115 = vmatmul.bf16.gmra.mxu0 %v2042
        %v2116 = vpop.f32.mrf.mxu0
        %v2117 = vadd.f32 %v1990, %v2116
        %v2118 = vpop.f32.mrf.mxu0
        %v2119 = vadd.f32 %v1990, %v2118
        %2120 = vmatmul.bf16.gmra.mxu0 %v2045
        %v2121 = vpop.f32.mrf.mxu0
        %v2122 = vadd.f32 %v1990, %v2121
        %v2123 = vpop.f32.mrf.mxu0
        %v2124 = vadd.f32 %v1990, %v2123
        %2125 = vmatmul.bf16.gmra.mxu0 %v2048
        %v2126 = vpop.f32.mrf.mxu0
        %v2127 = vadd.f32 %v1990, %v2126
        %v2128 = vpop.f32.mrf.mxu0
        %v2129 = vadd.f32 %v1990, %v2128
        %2130 = vmatmul.bf16.gmra.mxu0 %v2051
        %v2131 = vpop.f32.mrf.mxu0
        %v2132 = vadd.f32 %v1990, %v2131
        %v2133 = vpop.f32.mrf.mxu0
        %v2134 = vadd.f32 %v1990, %v2133
        %2135 = vmatmul.bf16.gmra.mxu0 %v2054
        %v2136 = vpop.f32.mrf.mxu0
        %v2137 = vadd.f32 %v1990, %v2136
        %v2138 = vpop.f32.mrf.mxu0
        %v2139 = vadd.f32 %v1990, %v2138
        %2140 = vmatmul.bf16.gmra.mxu0 %v2057
        %v2141 = vpop.f32.mrf.mxu0
        %v2142 = vadd.f32 %v1990, %v2141
        %v2143 = vpop.f32.mrf.mxu0
        %v2144 = vadd.f32 %v1990, %v2143
        %2145 = vmatmul.bf16.gmra.mxu0 %v2060
        %v2146 = vpop.f32.mrf.mxu0
        %v2147 = vadd.f32 %v1990, %v2146
        %v2148 = vpop.f32.mrf.mxu0
        %v2149 = vadd.f32 %v1990, %v2148
        %2150 = vmatmul.bf16.gmra.mxu0 %v2063
        %v2151 = vpop.f32.mrf.mxu0
        %v2152 = vadd.f32 %v1990, %v2151
        %v2153 = vpop.f32.mrf.mxu0
        %v2154 = vadd.f32 %v1990, %v2153
        %2155 = vmatmul.bf16.gmra.mxu0 %v2066
        %v2156 = vpop.f32.mrf.mxu0
        %v2157 = vadd.f32 %v1990, %v2156
        %v2158 = vpop.f32.mrf.mxu0
        %v2159 = vadd.f32 %v1990, %v2158
        %2160 = vdwg.mxu0
        %v2161 = vmax.f32 %v2082, 0.0
        %v2162 = vmax.f32 %v2084, 0.0
        %v2163 = vmax.f32 %v2087, 0.0
        %v2164 = vmax.f32 %v2089, 0.0
        %v2165 = vmax.f32 %v2092, 0.0
        %v2166 = vmax.f32 %v2094, 0.0
        %v2167 = vmax.f32 %v2097, 0.0
        %v2168 = vmax.f32 %v2099, 0.0
        %v2169 = vmax.f32 %v2102, 0.0
        %v2170 = vmax.f32 %v2104, 0.0
        %v2171 = vmax.f32 %v2107, 0.0
        %v2172 = vmax.f32 %v2109, 0.0
        %v2173 = vmax.f32 %v2112, 0.0
        %v2174 = vmax.f32 %v2114, 0.0
        %v2175 = vmax.f32 %v2117, 0.0
        %v2176 = vmax.f32 %v2119, 0.0
        %v2177 = vmax.f32 %v2122, 0.0
        %v2178 = vmax.f32 %v2124, 0.0
        %v2179 = vmax.f32 %v2127, 0.0
        %v2180 = vmax.f32 %v2129, 0.0
        %v2181 = vmax.f32 %v2132, 0.0
        %v2182 = vmax.f32 %v2134, 0.0
        %v2183 = vmax.f32 %v2137, 0.0
        %v2184 = vmax.f32 %v2139, 0.0
        %v2185 = vmax.f32 %v2142, 0.0
        %v2186 = vmax.f32 %v2144, 0.0
        %v2187 = vmax.f32 %v2147, 0.0
        %v2188 = vmax.f32 %v2149, 0.0
        %v2189 = vmax.f32 %v2152, 0.0
        %v2190 = vmax.f32 %v2154, 0.0
        %v2191 = vmax.f32 %v2157, 0.0
        %v2192 = vmax.f32 %v2159, 0.0
        %2193 = vst.msk [vmem:[#allocation2] sm:$0xff] %vm1699, %v2161
        %2194 = vst.msk [vmem:[#allocation2 + $0x8] sm:$0xff] %vm1699, %v2162
        %2195 = vst.msk [vmem:[#allocation2 + $0x10] sm:$0xff] %vm1699, %v2163
        %2196 = vst.msk [vmem:[#allocation2 + $0x18] sm:$0xff] %vm1699, %v2164
        %2197 = vst.msk [vmem:[#allocation2 + $0x20] sm:$0xff] %vm1699, %v2165
        %2198 = vst.msk [vmem:[#allocation2 + $0x28] sm:$0xff] %vm1699, %v2166
        %2199 = vst.msk [vmem:[#allocation2 + $0x30] sm:$0xff] %vm1699, %v2167
        %2200 = vst.msk [vmem:[#allocation2 + $0x38] sm:$0xff] %vm1699, %v2168
        %2201 = vst.msk [vmem:[#allocation2 + $0x40] sm:$0xff] %vm1699, %v2169
        %2202 = vst.msk [vmem:[#allocation2 + $0x48] sm:$0xff] %vm1699, %v2170
        %2203 = vst.msk [vmem:[#allocation2 + $0x50] sm:$0xff] %vm1699, %v2171
        %2204 = vst.msk [vmem:[#allocation2 + $0x58] sm:$0xff] %vm1699, %v2172
        %2205 = vst.msk [vmem:[#allocation2 + $0x60] sm:$0xff] %vm1699, %v2173
        %2206 = vst.msk [vmem:[#allocation2 + $0x68] sm:$0xff] %vm1699, %v2174
        %2207 = vst.msk [vmem:[#allocation2 + $0x70] sm:$0xff] %vm1699, %v2175
        %2208 = vst.msk [vmem:[#allocation2 + $0x78] sm:$0xff] %vm1699, %v2176
        %2209 = vst.msk [vmem:[#allocation2 + $0x80] sm:$0xff] %vm1699, %v2177
        %2210 = vst.msk [vmem:[#allocation2 + $0x88] sm:$0xff] %vm1699, %v2178
        %2211 = vst.msk [vmem:[#allocation2 + $0x90] sm:$0xff] %vm1699, %v2179
        %2212 = vst.msk [vmem:[#allocation2 + $0x98] sm:$0xff] %vm1699, %v2180
        %2213 = vst.msk [vmem:[#allocation2 + $0xa0] sm:$0xff] %vm1699, %v2181
        %2214 = vst.msk [vmem:[#allocation2 + $0xa8] sm:$0xff] %vm1699, %v2182
        %2215 = vst.msk [vmem:[#allocation2 + $0xb0] sm:$0xff] %vm1699, %v2183
        %2216 = vst.msk [vmem:[#allocation2 + $0xb8] sm:$0xff] %vm1699, %v2184
        %2217 = vst.msk [vmem:[#allocation2 + $0xc0] sm:$0xff] %vm1699, %v2185
        %2218 = vst.msk [vmem:[#allocation2 + $0xc8] sm:$0xff] %vm1699, %v2186
        %2219 = vst.msk [vmem:[#allocation2 + $0xd0] sm:$0xff] %vm1699, %v2187
        %2220 = vst.msk [vmem:[#allocation2 + $0xd8] sm:$0xff] %vm1699, %v2188
        %2221 = vst.msk [vmem:[#allocation2 + $0xe0] sm:$0xff] %vm1699, %v2189
        %2222 = vst.msk [vmem:[#allocation2 + $0xe8] sm:$0xff] %vm1699, %v2190
        %2223 = vst.msk [vmem:[#allocation2 + $0xf0] sm:$0xff] %vm1699, %v2191
        %2224 = vst.msk [vmem:[#allocation2 + $0xf8] sm:$0xff] %vm1699, %v2192
        %2225 = vst.msk [vmem:[#allocation3] sm:$0xff] %vm1699, 0.0
        %vm2226 = vcmask 58368
        %2227 = vst.msk [vmem:[#allocation3 + $0x8] sm:$0x3] %vm2226, 0.0
        %2228 = vst.msk [vmem:[#allocation3 + $0x10] sm:$0xff] %vm1699, 0.0
        %2229 = vst.msk [vmem:[#allocation3 + $0x18] sm:$0x3] %vm2226, 0.0
        %2230 = vst.msk [vmem:[#allocation3 + $0x20] sm:$0xff] %vm1699, 0.0
        %2231 = vst.msk [vmem:[#allocation3 + $0x28] sm:$0x3] %vm2226, 0.0
        %2232 = vst.msk [vmem:[#allocation3 + $0x30] sm:$0xff] %vm1699, 0.0
        %2233 = vst.msk [vmem:[#allocation3 + $0x38] sm:$0x3] %vm2226, 0.0
        %2234 = vst.msk [vmem:[#allocation3 + $0x40] sm:$0xff] %vm1699, 0.0
        %2235 = vst.msk [vmem:[#allocation3 + $0x48] sm:$0x3] %vm2226, 0.0
        %2236 = vst.msk [vmem:[#allocation3 + $0x50] sm:$0xff] %vm1699, 0.0
        %2237 = vst.msk [vmem:[#allocation3 + $0x58] sm:$0x3] %vm2226, 0.0
        %2238 = vst.msk [vmem:[#allocation3 + $0x60] sm:$0xff] %vm1699, 0.0
        %2239 = vst.msk [vmem:[#allocation3 + $0x68] sm:$0x3] %vm2226, 0.0
        %2240 = vst.msk [vmem:[#allocation3 + $0x70] sm:$0xff] %vm1699, 0.0
        %2241 = vst.msk [vmem:[#allocation3 + $0x78] sm:$0x3] %vm2226, 0.0
        %2242 = vst.msk [vmem:[#allocation3 + $0x80] sm:$0xff] %vm1699, 0.0
        %2243 = vst.msk [vmem:[#allocation3 + $0x88] sm:$0x3] %vm2226, 0.0
        %2244 = vst.msk [vmem:[#allocation3 + $0x90] sm:$0xff] %vm1699, 0.0
        %2245 = vst.msk [vmem:[#allocation3 + $0x98] sm:$0x3] %vm2226, 0.0
        %v2246 = vld [vmem:[#allocation2] ss:$2 sm:$0xff]
        %s2247 = scalar_lea.vmem [#allocation2], 1
        %v2248 = vld [vmem:[%s2247] ss:$2 sm:$0xff]
        %v2249 = vmax.f32 %v2246, %v2248
        %s2250 = scalar_lea.vmem [#allocation2], 16
        %v2251 = vld [vmem:[%s2250] ss:$2 sm:$0xff]
        %s2252 = scalar_lea.vmem [#allocation2], 17
        %v2253 = vld [vmem:[%s2252] ss:$2 sm:$0xff]
        %v2254 = vmax.f32 %v2251, %v2253
        %v2255 = vmax.f32 %v2249, %v2254
        %s2256 = scalar_lea.vmem [#allocation3], 16
        %2257 = vst.msk [vmem:[%s2256 + $0x1] sm:$0xff] %vm1699, %v2255
        %s2258 = scalar_lea.vmem [#allocation2], 32
        %v2259 = vld [vmem:[%s2258] ss:$2 sm:$0xff]
        %s2260 = scalar_lea.vmem [#allocation2], 33
        %v2261 = vld [vmem:[%s2260] ss:$2 sm:$0xff]
        %v2262 = vmax.f32 %v2259, %v2261
        %s2263 = scalar_lea.vmem [#allocation2], 48
        %v2264 = vld [vmem:[%s2263] ss:$2 sm:$0xff]
        %s2265 = scalar_lea.vmem [#allocation2], 49
        %v2266 = vld [vmem:[%s2265] ss:$2 sm:$0xff]
        %v2267 = vmax.f32 %v2264, %v2266
        %v2268 = vmax.f32 %v2262, %v2267
        %s2269 = scalar_lea.vmem [#allocation3], 32
        %2270 = vst.msk [vmem:[%s2269 + $0x1] sm:$0xff] %vm1699, %v2268
        %s2271 = scalar_lea.vmem [#allocation2], 64
        %v2272 = vld [vmem:[%s2271] ss:$2 sm:$0xff]
        %s2273 = scalar_lea.vmem [#allocation2], 65
        %v2274 = vld [vmem:[%s2273] ss:$2 sm:$0xff]
        %v2275 = vmax.f32 %v2272, %v2274
        %s2276 = scalar_lea.vmem [#allocation2], 80
        %v2277 = vld [vmem:[%s2276] ss:$2 sm:$0xff]
        %s2278 = scalar_lea.vmem [#allocation2], 81
        %v2279 = vld [vmem:[%s2278] ss:$2 sm:$0xff]
        %v2280 = vmax.f32 %v2277, %v2279
        %v2281 = vmax.f32 %v2275, %v2280
        %s2282 = scalar_lea.vmem [#allocation3], 48
        %2283 = vst.msk [vmem:[%s2282 + $0x1] sm:$0xff] %vm1699, %v2281
        %s2284 = scalar_lea.vmem [#allocation2], 96
        %v2285 = vld [vmem:[%s2284] ss:$2 sm:$0xff]
        %s2286 = scalar_lea.vmem [#allocation2], 97
        %v2287 = vld [vmem:[%s2286] ss:$2 sm:$0xff]
        %v2288 = vmax.f32 %v2285, %v2287
        %s2289 = scalar_lea.vmem [#allocation2], 112
        %v2290 = vld [vmem:[%s2289] ss:$2 sm:$0xff]
        %s2291 = scalar_lea.vmem [#allocation2], 113
        %v2292 = vld [vmem:[%s2291] ss:$2 sm:$0xff]
        %v2293 = vmax.f32 %v2290, %v2292
        %v2294 = vmax.f32 %v2288, %v2293
        %s2295 = scalar_lea.vmem [#allocation3], 64
        %2296 = vst.msk [vmem:[%s2295 + $0x1] sm:$0xff] %vm1699, %v2294
        %s2297 = scalar_lea.vmem [#allocation2], 128
        %v2298 = vld [vmem:[%s2297] ss:$2 sm:$0xff]
        %s2299 = scalar_lea.vmem [#allocation2], 129
        %v2300 = vld [vmem:[%s2299] ss:$2 sm:$0xff]
        %v2301 = vmax.f32 %v2298, %v2300
        %s2302 = scalar_lea.vmem [#allocation2], 144
        %v2303 = vld [vmem:[%s2302] ss:$2 sm:$0xff]
        %s2304 = scalar_lea.vmem [#allocation2], 145
        %v2305 = vld [vmem:[%s2304] ss:$2 sm:$0xff]
        %v2306 = vmax.f32 %v2303, %v2305
        %v2307 = vmax.f32 %v2301, %v2306
        %s2308 = scalar_lea.vmem [#allocation3], 80
        %2309 = vst.msk [vmem:[%s2308 + $0x1] sm:$0xff] %vm1699, %v2307
        %s2310 = scalar_lea.vmem [#allocation2], 160
        %v2311 = vld [vmem:[%s2310] ss:$2 sm:$0xff]
        %s2312 = scalar_lea.vmem [#allocation2], 161
        %v2313 = vld [vmem:[%s2312] ss:$2 sm:$0xff]
        %v2314 = vmax.f32 %v2311, %v2313
        %s2315 = scalar_lea.vmem [#allocation2], 176
        %v2316 = vld [vmem:[%s2315] ss:$2 sm:$0xff]
        %s2317 = scalar_lea.vmem [#allocation2], 177
        %v2318 = vld [vmem:[%s2317] ss:$2 sm:$0xff]
        %v2319 = vmax.f32 %v2316, %v2318
        %v2320 = vmax.f32 %v2314, %v2319
        %s2321 = scalar_lea.vmem [#allocation3], 96
        %2322 = vst.msk [vmem:[%s2321 + $0x1] sm:$0xff] %vm1699, %v2320
        %s2323 = scalar_lea.vmem [#allocation2], 192
        %v2324 = vld [vmem:[%s2323] ss:$2 sm:$0xff]
        %s2325 = scalar_lea.vmem [#allocation2], 193
        %v2326 = vld [vmem:[%s2325] ss:$2 sm:$0xff]
        %v2327 = vmax.f32 %v2324, %v2326
        %s2328 = scalar_lea.vmem [#allocation2], 208
        %v2329 = vld [vmem:[%s2328] ss:$2 sm:$0xff]
        %s2330 = scalar_lea.vmem [#allocation2], 209
        %v2331 = vld [vmem:[%s2330] ss:$2 sm:$0xff]
        %v2332 = vmax.f32 %v2329, %v2331
        %v2333 = vmax.f32 %v2327, %v2332
        %s2334 = scalar_lea.vmem [#allocation3], 112
        %2335 = vst.msk [vmem:[%s2334 + $0x1] sm:$0xff] %vm1699, %v2333
        %s2336 = scalar_lea.vmem [#allocation2], 224
        %v2337 = vld [vmem:[%s2336] ss:$2 sm:$0xff]
        %s2338 = scalar_lea.vmem [#allocation2], 225
        %v2339 = vld [vmem:[%s2338] ss:$2 sm:$0xff]
        %v2340 = vmax.f32 %v2337, %v2339
        %s2341 = scalar_lea.vmem [#allocation2], 240
        %v2342 = vld [vmem:[%s2341] ss:$2 sm:$0xff]
        %s2343 = scalar_lea.vmem [#allocation2], 241
        %v2344 = vld [vmem:[%s2343] ss:$2 sm:$0xff]
        %v2345 = vmax.f32 %v2342, %v2344
        %v2346 = vmax.f32 %v2340, %v2345
        %s2347 = scalar_lea.vmem [#allocation3], 128
        %2348 = vst.msk [vmem:[%s2347 + $0x1] sm:$0xff] %vm1699, %v2346
        %v2349 = vld [vmem:[#allocation3] sm:$0xff]
        %v2350 = vld [vmem:[#allocation3 + $0x10] sm:$0xff]
        %v2351 = vld [vmem:[#allocation3 + $0x20] sm:$0xff]
        %v2352 = vld [vmem:[#allocation3 + $0x30] sm:$0xff]
        %v2353 = vld [vmem:[#allocation3 + $0x40] sm:$0xff]
        %v2354 = vld [vmem:[#allocation3 + $0x50] sm:$0xff]
        %v2355 = vld [vmem:[#allocation3 + $0x60] sm:$0xff]
        %v2356 = vld [vmem:[#allocation3 + $0x70] sm:$0xff]
        %v2357 = vld [vmem:[#allocation3 + $0x1] sm:$0xff]
        %v2358 = vld [vmem:[#allocation3 + $0x11] sm:$0xff]
        %v2359 = vld [vmem:[#allocation3 + $0x21] sm:$0xff]
        %v2360 = vld [vmem:[#allocation3 + $0x31] sm:$0xff]
        %v2361 = vld [vmem:[#allocation3 + $0x41] sm:$0xff]
        %v2362 = vld [vmem:[#allocation3 + $0x51] sm:$0xff]
        %v2363 = vld [vmem:[#allocation3 + $0x61] sm:$0xff]
        %v2364 = vld [vmem:[#allocation3 + $0x71] sm:$0xff]
        %v2365 = vld [vmem:[#allocation3 + $0x2] sm:$0xff]
        %v2366 = vld [vmem:[#allocation3 + $0x12] sm:$0xff]
        %v2367 = vld [vmem:[#allocation3 + $0x22] sm:$0xff]
        %v2368 = vld [vmem:[#allocation3 + $0x32] sm:$0xff]
        %v2369 = vld [vmem:[#allocation3 + $0x42] sm:$0xff]
        %v2370 = vld [vmem:[#allocation3 + $0x52] sm:$0xff]
        %v2371 = vld [vmem:[#allocation3 + $0x62] sm:$0xff]
        %v2372 = vld [vmem:[#allocation3 + $0x72] sm:$0xff]
        %v2373 = vld [vmem:[%s2256] sm:$0xff]
        %v2374 = vld [vmem:[%s2256 + $0x10] sm:$0xff]
        %v2375 = vld [vmem:[%s2256 + $0x20] sm:$0xff]
        %v2376 = vld [vmem:[%s2256 + $0x30] sm:$0xff]
        %v2377 = vld [vmem:[%s2256 + $0x40] sm:$0xff]
        %v2378 = vld [vmem:[%s2256 + $0x50] sm:$0xff]
        %v2379 = vld [vmem:[%s2256 + $0x60] sm:$0xff]
        %v2380 = vld [vmem:[%s2256 + $0x70] sm:$0xff]
        %v2381 = vld [vmem:[%s2256 + $0x1] sm:$0xff]
        %v2382 = vld [vmem:[%s2256 + $0x11] sm:$0xff]
        %v2383 = vld [vmem:[%s2256 + $0x21] sm:$0xff]
        %v2384 = vld [vmem:[%s2256 + $0x31] sm:$0xff]
        %v2385 = vld [vmem:[%s2256 + $0x41] sm:$0xff]
        %v2386 = vld [vmem:[%s2256 + $0x51] sm:$0xff]
        %v2387 = vld [vmem:[%s2256 + $0x61] sm:$0xff]
        %v2388 = vld [vmem:[%s2256 + $0x71] sm:$0xff]
        %v2389 = vld [vmem:[%s2256 + $0x2] sm:$0xff]
        %v2390 = vld [vmem:[%s2256 + $0x12] sm:$0xff]
        %v2391 = vld [vmem:[%s2256 + $0x22] sm:$0xff]
        %v2392 = vld [vmem:[%s2256 + $0x32] sm:$0xff]
        %v2393 = vld [vmem:[%s2256 + $0x42] sm:$0xff]
        %v2394 = vld [vmem:[%s2256 + $0x52] sm:$0xff]
        %v2395 = vld [vmem:[%s2256 + $0x62] sm:$0xff]
        %v2396 = vld [vmem:[%s2256 + $0x72] sm:$0xff]
        %v2397 = vld [vmem:[%s2269] sm:$0xff]
        %v2398 = vld [vmem:[%s2269 + $0x10] sm:$0xff]
        %v2399 = vld [vmem:[%s2269 + $0x20] sm:$0xff]
        %v2400 = vld [vmem:[%s2269 + $0x30] sm:$0xff]
        %v2401 = vld [vmem:[%s2269 + $0x40] sm:$0xff]
        %v2402 = vld [vmem:[%s2269 + $0x50] sm:$0xff]
        %v2403 = vld [vmem:[%s2269 + $0x60] sm:$0xff]
        %v2404 = vld [vmem:[%s2269 + $0x70] sm:$0xff]
        %v2405 = vld [vmem:[%s2269 + $0x1] sm:$0xff]
        %v2406 = vld [vmem:[%s2269 + $0x11] sm:$0xff]
        %v2407 = vld [vmem:[%s2269 + $0x21] sm:$0xff]
        %v2408 = vld [vmem:[%s2269 + $0x31] sm:$0xff]
        %v2409 = vld [vmem:[%s2269 + $0x41] sm:$0xff]
        %v2410 = vld [vmem:[%s2269 + $0x51] sm:$0xff]
        %v2411 = vld [vmem:[%s2269 + $0x61] sm:$0xff]
        %v2412 = vld [vmem:[%s2269 + $0x71] sm:$0xff]
        %v2413 = vld [vmem:[%s2269 + $0x2] sm:$0xff]
        %v2414 = vld [vmem:[%s2269 + $0x12] sm:$0xff]
        %v2415 = vld [vmem:[%s2269 + $0x22] sm:$0xff]
        %v2416 = vld [vmem:[%s2269 + $0x32] sm:$0xff]
        %v2417 = vld [vmem:[%s2269 + $0x42] sm:$0xff]
        %v2418 = vld [vmem:[%s2269 + $0x52] sm:$0xff]
        %v2419 = vld [vmem:[%s2269 + $0x62] sm:$0xff]
        %v2420 = vld [vmem:[%s2269 + $0x72] sm:$0xff]
        %2429 = vrot.lane.b32.xlu0 %v2357, 8
        %v2430 = vpop.permute.xlu0 %2429
        %2431 = vrot.lane.b32.xlu0 %v2358, 8
        %v2432 = vpop.permute.xlu0 %2431
        %2433 = vrot.lane.b32.xlu0 %v2359, 8
        %v2434 = vpop.permute.xlu0 %2433
        %2435 = vrot.lane.b32.xlu0 %v2360, 8
        %v2436 = vpop.permute.xlu0 %2435
        %2437 = vrot.lane.b32.xlu0 %v2361, 8
        %v2438 = vpop.permute.xlu0 %2437
        %2439 = vrot.lane.b32.xlu0 %v2362, 8
        %v2440 = vpop.permute.xlu0 %2439
        %2441 = vrot.lane.b32.xlu0 %v2363, 8
        %v2442 = vpop.permute.xlu0 %2441
        %2443 = vrot.lane.b32.xlu0 %v2364, 8
        %v2444 = vpop.permute.xlu0 %2443
        %2461 = vrot.lane.b32.xlu0 %v2365, 16
        %v2462 = vpop.permute.xlu0 %2461
        %2463 = vrot.lane.b32.xlu0 %v2366, 16
        %v2464 = vpop.permute.xlu0 %2463
        %2465 = vrot.lane.b32.xlu0 %v2367, 16
        %v2466 = vpop.permute.xlu0 %2465
        %2467 = vrot.lane.b32.xlu0 %v2368, 16
        %v2468 = vpop.permute.xlu0 %2467
        %2469 = vrot.lane.b32.xlu0 %v2369, 16
        %v2470 = vpop.permute.xlu0 %2469
        %2471 = vrot.lane.b32.xlu0 %v2370, 16
        %v2472 = vpop.permute.xlu0 %2471
        %2473 = vrot.lane.b32.xlu0 %v2371, 16
        %v2474 = vpop.permute.xlu0 %2473
        %2475 = vrot.lane.b32.xlu0 %v2372, 16
        %v2476 = vpop.permute.xlu0 %2475
        %2493 = vrot.lane.b32.xlu0 %v2373, 24
        %v2494 = vpop.permute.xlu0 %2493
        %2495 = vrot.lane.b32.xlu0 %v2374, 24
        %v2496 = vpop.permute.xlu0 %2495
        %2497 = vrot.lane.b32.xlu0 %v2375, 24
        %v2498 = vpop.permute.xlu0 %2497
        %2499 = vrot.lane.b32.xlu0 %v2376, 24
        %v2500 = vpop.permute.xlu0 %2499
        %2501 = vrot.lane.b32.xlu0 %v2377, 24
        %v2502 = vpop.permute.xlu0 %2501
        %2503 = vrot.lane.b32.xlu0 %v2378, 24
        %v2504 = vpop.permute.xlu0 %2503
        %2505 = vrot.lane.b32.xlu0 %v2379, 24
        %v2506 = vpop.permute.xlu0 %2505
        %2507 = vrot.lane.b32.xlu0 %v2380, 24
        %v2508 = vpop.permute.xlu0 %2507
        %2525 = vrot.lane.b32.xlu0 %v2381, 32
        %v2526 = vpop.permute.xlu0 %2525
        %2527 = vrot.lane.b32.xlu0 %v2382, 32
        %v2528 = vpop.permute.xlu0 %2527
        %2529 = vrot.lane.b32.xlu0 %v2383, 32
        %v2530 = vpop.permute.xlu0 %2529
        %2531 = vrot.lane.b32.xlu0 %v2384, 32
        %v2532 = vpop.permute.xlu0 %2531
        %2533 = vrot.lane.b32.xlu0 %v2385, 32
        %v2534 = vpop.permute.xlu0 %2533
        %2535 = vrot.lane.b32.xlu0 %v2386, 32
        %v2536 = vpop.permute.xlu0 %2535
        %2537 = vrot.lane.b32.xlu0 %v2387, 32
        %v2538 = vpop.permute.xlu0 %2537
        %2539 = vrot.lane.b32.xlu0 %v2388, 32
        %v2540 = vpop.permute.xlu0 %2539
        %2557 = vrot.lane.b32.xlu0 %v2389, 40
        %v2558 = vpop.permute.xlu0 %2557
        %2559 = vrot.lane.b32.xlu0 %v2390, 40
        %v2560 = vpop.permute.xlu0 %2559
        %2561 = vrot.lane.b32.xlu0 %v2391, 40
        %v2562 = vpop.permute.xlu0 %2561
        %2563 = vrot.lane.b32.xlu0 %v2392, 40
        %v2564 = vpop.permute.xlu0 %2563
        %2565 = vrot.lane.b32.xlu0 %v2393, 40
        %v2566 = vpop.permute.xlu0 %2565
        %2567 = vrot.lane.b32.xlu0 %v2394, 40
        %v2568 = vpop.permute.xlu0 %2567
        %2569 = vrot.lane.b32.xlu0 %v2395, 40
        %v2570 = vpop.permute.xlu0 %2569
        %2571 = vrot.lane.b32.xlu0 %v2396, 40
        %v2572 = vpop.permute.xlu0 %2571
        %2589 = vrot.lane.b32.xlu0 %v2397, 48
        %v2590 = vpop.permute.xlu0 %2589
        %2591 = vrot.lane.b32.xlu0 %v2398, 48
        %v2592 = vpop.permute.xlu0 %2591
        %2593 = vrot.lane.b32.xlu0 %v2399, 48
        %v2594 = vpop.permute.xlu0 %2593
        %2595 = vrot.lane.b32.xlu0 %v2400, 48
        %v2596 = vpop.permute.xlu0 %2595
        %2597 = vrot.lane.b32.xlu0 %v2401, 48
        %v2598 = vpop.permute.xlu0 %2597
        %2599 = vrot.lane.b32.xlu0 %v2402, 48
        %v2600 = vpop.permute.xlu0 %2599
        %2601 = vrot.lane.b32.xlu0 %v2403, 48
        %v2602 = vpop.permute.xlu0 %2601
        %2603 = vrot.lane.b32.xlu0 %v2404, 48
        %v2604 = vpop.permute.xlu0 %2603
        %2621 = vrot.lane.b32.xlu0 %v2405, 56
        %v2622 = vpop.permute.xlu0 %2621
        %2623 = vrot.lane.b32.xlu0 %v2406, 56
        %v2624 = vpop.permute.xlu0 %2623
        %2625 = vrot.lane.b32.xlu0 %v2407, 56
        %v2626 = vpop.permute.xlu0 %2625
        %2627 = vrot.lane.b32.xlu0 %v2408, 56
        %v2628 = vpop.permute.xlu0 %2627
        %2629 = vrot.lane.b32.xlu0 %v2409, 56
        %v2630 = vpop.permute.xlu0 %2629
        %2631 = vrot.lane.b32.xlu0 %v2410, 56
        %v2632 = vpop.permute.xlu0 %2631
        %2633 = vrot.lane.b32.xlu0 %v2411, 56
        %v2634 = vpop.permute.xlu0 %2633
        %2635 = vrot.lane.b32.xlu0 %v2412, 56
        %v2636 = vpop.permute.xlu0 %2635
        %2653 = vrot.lane.b32.xlu0 %v2413, 64
        %v2654 = vpop.permute.xlu0 %2653
        %2655 = vrot.lane.b32.xlu0 %v2414, 64
        %v2656 = vpop.permute.xlu0 %2655
        %2657 = vrot.lane.b32.xlu0 %v2415, 64
        %v2658 = vpop.permute.xlu0 %2657
        %2659 = vrot.lane.b32.xlu0 %v2416, 64
        %v2660 = vpop.permute.xlu0 %2659
        %2661 = vrot.lane.b32.xlu0 %v2417, 64
        %v2662 = vpop.permute.xlu0 %2661
        %2663 = vrot.lane.b32.xlu0 %v2418, 64
        %v2664 = vpop.permute.xlu0 %2663
        %2665 = vrot.lane.b32.xlu0 %v2419, 64
        %v2666 = vpop.permute.xlu0 %2665
        %2667 = vrot.lane.b32.xlu0 %v2420, 64
        %v2668 = vpop.permute.xlu0 %2667
        %v2677 = vsel %vm1699, %v2349, %v2430
        %v2678 = vsel %vm1699, %v2350, %v2432
        %v2679 = vsel %vm1699, %v2351, %v2434
        %v2680 = vsel %vm1699, %v2352, %v2436
        %v2681 = vsel %vm1699, %v2353, %v2438
        %v2682 = vsel %vm1699, %v2354, %v2440
        %v2683 = vsel %vm1699, %v2355, %v2442
        %v2684 = vsel %vm1699, %v2356, %v2444
        %v2685 = vsel %vm1732, %v2677, %v2462
        %v2686 = vsel %vm1732, %v2678, %v2464
        %v2687 = vsel %vm1732, %v2679, %v2466
        %v2688 = vsel %vm1732, %v2680, %v2468
        %v2689 = vsel %vm1732, %v2681, %v2470
        %v2690 = vsel %vm1732, %v2682, %v2472
        %v2691 = vsel %vm1732, %v2683, %v2474
        %v2692 = vsel %vm1732, %v2684, %v2476
        %v2693 = vsel %vm1765, %v2685, %v2494
        %v2694 = vsel %vm1765, %v2686, %v2496
        %v2695 = vsel %vm1765, %v2687, %v2498
        %v2696 = vsel %vm1765, %v2688, %v2500
        %v2697 = vsel %vm1765, %v2689, %v2502
        %v2698 = vsel %vm1765, %v2690, %v2504
        %v2699 = vsel %vm1765, %v2691, %v2506
        %v2700 = vsel %vm1765, %v2692, %v2508
        %v2701 = vsel %vm1798, %v2693, %v2526
        %v2702 = vsel %vm1798, %v2694, %v2528
        %v2703 = vsel %vm1798, %v2695, %v2530
        %v2704 = vsel %vm1798, %v2696, %v2532
        %v2705 = vsel %vm1798, %v2697, %v2534
        %v2706 = vsel %vm1798, %v2698, %v2536
        %v2707 = vsel %vm1798, %v2699, %v2538
        %v2708 = vsel %vm1798, %v2700, %v2540
        %v2709 = vsel %vm1831, %v2701, %v2558
        %v2710 = vsel %vm1831, %v2702, %v2560
        %v2711 = vsel %vm1831, %v2703, %v2562
        %v2712 = vsel %vm1831, %v2704, %v2564
        %v2713 = vsel %vm1831, %v2705, %v2566
        %v2714 = vsel %vm1831, %v2706, %v2568
        %v2715 = vsel %vm1831, %v2707, %v2570
        %v2716 = vsel %vm1831, %v2708, %v2572
        %v2717 = vsel %vm1864, %v2709, %v2590
        %v2718 = vsel %vm1864, %v2710, %v2592
        %v2719 = vsel %vm1864, %v2711, %v2594
        %v2720 = vsel %vm1864, %v2712, %v2596
        %v2721 = vsel %vm1864, %v2713, %v2598
        %v2722 = vsel %vm1864, %v2714, %v2600
        %v2723 = vsel %vm1864, %v2715, %v2602
        %v2724 = vsel %vm1864, %v2716, %v2604
        %v2725 = vsel %vm1897, %v2717, %v2622
        %v2726 = vsel %vm1897, %v2718, %v2624
        %v2727 = vsel %vm1897, %v2719, %v2626
        %v2728 = vsel %vm1897, %v2720, %v2628
        %v2729 = vsel %vm1897, %v2721, %v2630
        %v2730 = vsel %vm1897, %v2722, %v2632
        %v2731 = vsel %vm1897, %v2723, %v2634
        %v2732 = vsel %vm1897, %v2724, %v2636
        %v2733 = vsel %vm1930, %v2725, %v2654
        %v2734 = vsel %vm1930, %v2726, %v2656
        %v2735 = vsel %vm1930, %v2727, %v2658
        %v2736 = vsel %vm1930, %v2728, %v2660
        %v2737 = vsel %vm1930, %v2729, %v2662
        %v2738 = vsel %vm1930, %v2730, %v2664
        %v2739 = vsel %vm1930, %v2731, %v2666
        %v2740 = vsel %vm1930, %v2732, %v2668
        %v2741 = vpack.c.bf16 %v2734, %v2733
        %v2742 = vpack.c.bf16 %v2736, %v2735
        %v2743 = vpack.c.bf16 %v2738, %v2737
        %v2744 = vpack.c.bf16 %v2740, %v2739
        %v2745 = vld [vmem:[%s3] sm:$0xf]
        %v2746 = vld [vmem:[%s3 + $0x4] sm:$0xf]
        %v2747 = vld [vmem:[%s3 + $0x8] sm:$0xf]
        %v2748 = vld [vmem:[%s3 + $0xc] sm:$0xf]
        %v2749 = vld [vmem:[%s3 + $0x10] sm:$0xf]
        %v2750 = vld [vmem:[%s3 + $0x14] sm:$0xf]
        %v2751 = vld [vmem:[%s3 + $0x18] sm:$0xf]
        %v2752 = vld [vmem:[%s3 + $0x1c] sm:$0xf]
        %v2753 = vld [vmem:[%s3 + $0x20] sm:$0xf]
        %v2754 = vld [vmem:[%s4] sm:$0x1]
        %v2756 = vperm.slane %v2754, 0
        %v2767 = vunpack.c.l.b16 %v2745
        %v2768 = vunpack.c.l.b16 %v2746
        %v2769 = vunpack.c.l.b16 %v2747
        %v2770 = vunpack.c.l.b16 %v2748
        %v2771 = vunpack.c.l.b16 %v2749
        %v2772 = vunpack.c.l.b16 %v2750
        %v2773 = vunpack.c.l.b16 %v2751
        %v2774 = vunpack.c.l.b16 %v2752
        %v2775 = vunpack.c.l.b16 %v2753
        %v2776 = vpack.c.b16 %v2768, %v2767
        %v2777 = vpack.c.b16 %v2770, %v2769
        %v2778 = vpack.c.b16 %v2772, %v2771
        %v2779 = vpack.c.b16 %v2774, %v2773
        %v2780 = vpack.c.b16 %v2775, %v2775
        %v2786 = vsel %vm2019, %v2741, 0
        %v2789 = vsel %vm2019, %v2742, 0
        %v2792 = vsel %vm2019, %v2743, 0
        %v2795 = vsel %vm2019, %v2744, 0
        %v2798 = vsel %vm2068, %v2780, 0
        %2800 = vmatpush.bf16.msra.mxu0 0
        %2801 = vmatpush.bf16.msra.mxu0 0
        %2802 = vmatpush.bf16.msra.mxu0 0
        %2803 = vmatpush.bf16.msra.mxu0 %v2798
        %2804 = vmatpush.bf16.msra.mxu0 %v2779
        %2805 = vmatpush.bf16.msra.mxu0 %v2778
        %2806 = vmatpush.bf16.msra.mxu0 %v2777
        %2807 = vmatpush.bf16.msra.mxu0 %v2776
        %2808 = vmatmul.bf16.gmra.mxu0 %v2786
        %v2809 = vpop.f32.mrf.mxu0
        %v2810 = vadd.f32 %v2756, %v2809
        %v2811 = vpop.f32.mrf.mxu0
        %v2812 = vadd.f32 %v2756, %v2811
        %2813 = vmatmul.bf16.gmra.mxu0 %v2789
        %v2814 = vpop.f32.mrf.mxu0
        %v2815 = vadd.f32 %v2756, %v2814
        %v2816 = vpop.f32.mrf.mxu0
        %v2817 = vadd.f32 %v2756, %v2816
        %2818 = vmatmul.bf16.gmra.mxu0 %v2792
        %v2819 = vpop.f32.mrf.mxu0
        %v2820 = vadd.f32 %v2756, %v2819
        %v2821 = vpop.f32.mrf.mxu0
        %v2822 = vadd.f32 %v2756, %v2821
        %2823 = vmatmul.bf16.gmra.mxu0 %v2795
        %v2824 = vpop.f32.mrf.mxu0
        %v2825 = vadd.f32 %v2756, %v2824
        %v2826 = vpop.f32.mrf.mxu0
        %v2827 = vadd.f32 %v2756, %v2826
        %2828 = vdwg.mxu0
        %v2829 = vmax.f32 %v2810, 0.0
        %v2830 = vmax.f32 %v2812, 0.0
        %v2831 = vmax.f32 %v2815, 0.0
        %v2832 = vmax.f32 %v2817, 0.0
        %v2833 = vmax.f32 %v2820, 0.0
        %v2834 = vmax.f32 %v2822, 0.0
        %v2835 = vmax.f32 %v2825, 0.0
        %v2836 = vmax.f32 %v2827, 0.0
        %2837 = vst.msk [vmem:[#allocation4] sm:$0xff] %vm1732, %v2829
        %2838 = vst.msk [vmem:[#allocation4 + $0x8] sm:$0xff] %vm1732, %v2830
        %2839 = vst.msk [vmem:[#allocation4 + $0x10] sm:$0xff] %vm1732, %v2831
        %2840 = vst.msk [vmem:[#allocation4 + $0x18] sm:$0xff] %vm1732, %v2832
        %2841 = vst.msk [vmem:[#allocation4 + $0x20] sm:$0xff] %vm1732, %v2833
        %2842 = vst.msk [vmem:[#allocation4 + $0x28] sm:$0xff] %vm1732, %v2834
        %2843 = vst.msk [vmem:[#allocation4 + $0x30] sm:$0xff] %vm1732, %v2835
        %2844 = vst.msk [vmem:[#allocation4 + $0x38] sm:$0xff] %vm1732, %v2836
        %vm2845 = vcmask 128000
        %2846 = vst.msk [vmem:[#allocation5] sm:$0x3f] %vm2845, 0.0
        %2847 = vst.msk [vmem:[#allocation5 + $0x8] sm:$0x3f] %vm2845, 0.0
        %2848 = vst.msk [vmem:[#allocation5 + $0x10] sm:$0x3f] %vm2845, 0.0
        %2849 = vst.msk [vmem:[#allocation5 + $0x18] sm:$0x3f] %vm2845, 0.0
        %2850 = vst.msk [vmem:[#allocation5 + $0x20] sm:$0x3f] %vm2845, 0.0
        %2851 = vst.msk [vmem:[#allocation5 + $0x28] sm:$0x3f] %vm2845, 0.0
        %v2852 = vld [vmem:[#allocation4] ss:$2 sm:$0xf]
        %s2853 = scalar_lea.vmem [#allocation4], 1
        %v2854 = vld [vmem:[%s2853] ss:$2 sm:$0xf]
        %v2855 = vmax.f32 %v2852, %v2854
        %s2856 = scalar_lea.vmem [#allocation4], 8
        %v2857 = vld [vmem:[%s2856] ss:$2 sm:$0xf]
        %s2858 = scalar_lea.vmem [#allocation4], 9
        %v2859 = vld [vmem:[%s2858] ss:$2 sm:$0xf]
        %v2860 = vmax.f32 %v2857, %v2859
        %v2861 = vmax.f32 %v2855, %v2860
        %s2862 = scalar_lea.vmem [#allocation5], 8
        %vm2863 = vcmask 125952
        %2864 = vst.msk [vmem:[%s2862 + $0x1] sm:$0xf] %vm2863, %v2861
        %s2865 = scalar_lea.vmem [#allocation4], 16
        %v2866 = vld [vmem:[%s2865] ss:$2 sm:$0xf]
        %s2867 = scalar_lea.vmem [#allocation4], 17
        %v2868 = vld [vmem:[%s2867] ss:$2 sm:$0xf]
        %v2869 = vmax.f32 %v2866, %v2868
        %s2870 = scalar_lea.vmem [#allocation4], 24
        %v2871 = vld [vmem:[%s2870] ss:$2 sm:$0xf]
        %s2872 = scalar_lea.vmem [#allocation4], 25
        %v2873 = vld [vmem:[%s2872] ss:$2 sm:$0xf]
        %v2874 = vmax.f32 %v2871, %v2873
        %v2875 = vmax.f32 %v2869, %v2874
        %s2876 = scalar_lea.vmem [#allocation5], 16
        %2877 = vst.msk [vmem:[%s2876 + $0x1] sm:$0xf] %vm2863, %v2875
        %s2878 = scalar_lea.vmem [#allocation4], 32
        %v2879 = vld [vmem:[%s2878] ss:$2 sm:$0xf]
        %s2880 = scalar_lea.vmem [#allocation4], 33
        %v2881 = vld [vmem:[%s2880] ss:$2 sm:$0xf]
        %v2882 = vmax.f32 %v2879, %v2881
        %s2883 = scalar_lea.vmem [#allocation4], 40
        %v2884 = vld [vmem:[%s2883] ss:$2 sm:$0xf]
        %s2885 = scalar_lea.vmem [#allocation4], 41
        %v2886 = vld [vmem:[%s2885] ss:$2 sm:$0xf]
        %v2887 = vmax.f32 %v2884, %v2886
        %v2888 = vmax.f32 %v2882, %v2887
        %s2889 = scalar_lea.vmem [#allocation5], 24
        %2890 = vst.msk [vmem:[%s2889 + $0x1] sm:$0xf] %vm2863, %v2888
        %s2891 = scalar_lea.vmem [#allocation4], 48
        %v2892 = vld [vmem:[%s2891] ss:$2 sm:$0xf]
        %s2893 = scalar_lea.vmem [#allocation4], 49
        %v2894 = vld [vmem:[%s2893] ss:$2 sm:$0xf]
        %v2895 = vmax.f32 %v2892, %v2894
        %s2896 = scalar_lea.vmem [#allocation4], 56
        %v2897 = vld [vmem:[%s2896] ss:$2 sm:$0xf]
        %s2898 = scalar_lea.vmem [#allocation4], 57
        %v2899 = vld [vmem:[%s2898] ss:$2 sm:$0xf]
        %v2900 = vmax.f32 %v2897, %v2899
        %v2901 = vmax.f32 %v2895, %v2900
        %s2902 = scalar_lea.vmem [#allocation5], 32
        %2903 = vst.msk [vmem:[%s2902 + $0x1] sm:$0xf] %vm2863, %v2901
        %v2904 = vld [vmem:[#allocation5] sm:$0xf]
        %v2905 = vld [vmem:[#allocation5 + $0x8] sm:$0xf]
        %v2906 = vld [vmem:[#allocation5 + $0x10] sm:$0xf]
        %v2907 = vld [vmem:[#allocation5 + $0x18] sm:$0xf]
        %v2908 = vld [vmem:[#allocation5 + $0x1] sm:$0xf]
        %v2909 = vld [vmem:[#allocation5 + $0x9] sm:$0xf]
        %v2910 = vld [vmem:[#allocation5 + $0x11] sm:$0xf]
        %v2911 = vld [vmem:[#allocation5 + $0x19] sm:$0xf]
        %v2912 = vld [vmem:[#allocation5 + $0x2] sm:$0xf]
        %v2913 = vld [vmem:[#allocation5 + $0xa] sm:$0xf]
        %v2914 = vld [vmem:[#allocation5 + $0x12] sm:$0xf]
        %v2915 = vld [vmem:[#allocation5 + $0x1a] sm:$0xf]
        %v2916 = vld [vmem:[%s2862] sm:$0xf]
        %v2917 = vld [vmem:[%s2862 + $0x8] sm:$0xf]
        %v2918 = vld [vmem:[%s2862 + $0x10] sm:$0xf]
        %v2919 = vld [vmem:[%s2862 + $0x18] sm:$0xf]
        %v2920 = vld [vmem:[%s2862 + $0x1] sm:$0xf]
        %v2921 = vld [vmem:[%s2862 + $0x9] sm:$0xf]
        %v2922 = vld [vmem:[%s2862 + $0x11] sm:$0xf]
        %v2923 = vld [vmem:[%s2862 + $0x19] sm:$0xf]
        %v2924 = vld [vmem:[%s2862 + $0x2] sm:$0xf]
        %v2925 = vld [vmem:[%s2862 + $0xa] sm:$0xf]
        %v2926 = vld [vmem:[%s2862 + $0x12] sm:$0xf]
        %v2927 = vld [vmem:[%s2862 + $0x1a] sm:$0xf]
        %v2928 = vld [vmem:[%s2876] sm:$0xf]
        %v2929 = vld [vmem:[%s2876 + $0x8] sm:$0xf]
        %v2930 = vld [vmem:[%s2876 + $0x10] sm:$0xf]
        %v2931 = vld [vmem:[%s2876 + $0x18] sm:$0xf]
        %v2932 = vld [vmem:[%s2876 + $0x1] sm:$0xf]
        %v2933 = vld [vmem:[%s2876 + $0x9] sm:$0xf]
        %v2934 = vld [vmem:[%s2876 + $0x11] sm:$0xf]
        %v2935 = vld [vmem:[%s2876 + $0x19] sm:$0xf]
        %v2936 = vld [vmem:[%s2876 + $0x2] sm:$0xf]
        %v2937 = vld [vmem:[%s2876 + $0xa] sm:$0xf]
        %v2938 = vld [vmem:[%s2876 + $0x12] sm:$0xf]
        %v2939 = vld [vmem:[%s2876 + $0x1a] sm:$0xf]
        %2944 = vrot.lane.b32.xlu0 %v2908, 16
        %v2945 = vpop.permute.xlu0 %2944
        %2946 = vrot.lane.b32.xlu0 %v2909, 16
        %v2947 = vpop.permute.xlu0 %2946
        %2948 = vrot.lane.b32.xlu0 %v2910, 16
        %v2949 = vpop.permute.xlu0 %2948
        %2950 = vrot.lane.b32.xlu0 %v2911, 16
        %v2951 = vpop.permute.xlu0 %2950
        %2960 = vrot.lane.b32.xlu0 %v2912, 32
        %v2961 = vpop.permute.xlu0 %2960
        %2962 = vrot.lane.b32.xlu0 %v2913, 32
        %v2963 = vpop.permute.xlu0 %2962
        %2964 = vrot.lane.b32.xlu0 %v2914, 32
        %v2965 = vpop.permute.xlu0 %2964
        %2966 = vrot.lane.b32.xlu0 %v2915, 32
        %v2967 = vpop.permute.xlu0 %2966
        %2976 = vrot.lane.b32.xlu0 %v2916, 48
        %v2977 = vpop.permute.xlu0 %2976
        %2978 = vrot.lane.b32.xlu0 %v2917, 48
        %v2979 = vpop.permute.xlu0 %2978
        %2980 = vrot.lane.b32.xlu0 %v2918, 48
        %v2981 = vpop.permute.xlu0 %2980
        %2982 = vrot.lane.b32.xlu0 %v2919, 48
        %v2983 = vpop.permute.xlu0 %2982
        %2992 = vrot.lane.b32.xlu0 %v2920, 64
        %v2993 = vpop.permute.xlu0 %2992
        %2994 = vrot.lane.b32.xlu0 %v2921, 64
        %v2995 = vpop.permute.xlu0 %2994
        %2996 = vrot.lane.b32.xlu0 %v2922, 64
        %v2997 = vpop.permute.xlu0 %2996
        %2998 = vrot.lane.b32.xlu0 %v2923, 64
        %v2999 = vpop.permute.xlu0 %2998
        %3008 = vrot.lane.b32.xlu0 %v2924, 80
        %v3009 = vpop.permute.xlu0 %3008
        %3010 = vrot.lane.b32.xlu0 %v2925, 80
        %v3011 = vpop.permute.xlu0 %3010
        %3012 = vrot.lane.b32.xlu0 %v2926, 80
        %v3013 = vpop.permute.xlu0 %3012
        %3014 = vrot.lane.b32.xlu0 %v2927, 80
        %v3015 = vpop.permute.xlu0 %3014
        %3024 = vrot.lane.b32.xlu0 %v2928, 96
        %v3025 = vpop.permute.xlu0 %3024
        %3026 = vrot.lane.b32.xlu0 %v2929, 96
        %v3027 = vpop.permute.xlu0 %3026
        %3028 = vrot.lane.b32.xlu0 %v2930, 96
        %v3029 = vpop.permute.xlu0 %3028
        %3030 = vrot.lane.b32.xlu0 %v2931, 96
        %v3031 = vpop.permute.xlu0 %3030
        %3040 = vrot.lane.b32.xlu0 %v2932, 112
        %v3041 = vpop.permute.xlu0 %3040
        %3042 = vrot.lane.b32.xlu0 %v2933, 112
        %v3043 = vpop.permute.xlu0 %3042
        %3044 = vrot.lane.b32.xlu0 %v2934, 112
        %v3045 = vpop.permute.xlu0 %3044
        %3046 = vrot.lane.b32.xlu0 %v2935, 112
        %v3047 = vpop.permute.xlu0 %3046
        %v3052 = vsel %vm1732, %v2904, %v2945
        %v3053 = vsel %vm1732, %v2905, %v2947
        %v3054 = vsel %vm1732, %v2906, %v2949
        %v3055 = vsel %vm1732, %v2907, %v2951
        %v3056 = vsel %vm1798, %v3052, %v2961
        %v3057 = vsel %vm1798, %v3053, %v2963
        %v3058 = vsel %vm1798, %v3054, %v2965
        %v3059 = vsel %vm1798, %v3055, %v2967
        %v3060 = vsel %vm1864, %v3056, %v2977
        %v3061 = vsel %vm1864, %v3057, %v2979
        %v3062 = vsel %vm1864, %v3058, %v2981
        %v3063 = vsel %vm1864, %v3059, %v2983
        %v3064 = vsel %vm1930, %v3060, %v2993
        %v3065 = vsel %vm1930, %v3061, %v2995
        %v3066 = vsel %vm1930, %v3062, %v2997
        %v3067 = vsel %vm1930, %v3063, %v2999
        %vm3068 = vcmask 654336
        %v3069 = vsel %vm3068, %v3064, %v3009
        %v3070 = vsel %vm3068, %v3065, %v3011
        %v3071 = vsel %vm3068, %v3066, %v3013
        %v3072 = vsel %vm3068, %v3067, %v3015
        %vm3073 = vcmask 785408
        %v3074 = vsel %vm3073, %v3069, %v3025
        %v3075 = vsel %vm3073, %v3070, %v3027
        %v3076 = vsel %vm3073, %v3071, %v3029
        %v3077 = vsel %vm3073, %v3072, %v3031
        %vm3078 = vcmask 916480
        %v3079 = vsel %vm3078, %v3074, %v3041
        %v3080 = vsel %vm3078, %v3075, %v3043
        %v3081 = vsel %vm3078, %v3076, %v3045
        %v3082 = vsel %vm3078, %v3077, %v3047
        %v3083 = vpack.c.bf16 %v3079, %v3079
        %v3084 = vpack.c.bf16 %v2936, %v2936
        %v3085 = vld [vmem:[%s5] sm:$0xf]
        %v3086 = vld [vmem:[%s5 + $0x4] sm:$0xf]
        %v3087 = vld [vmem:[%s5 + $0x8] sm:$0xf]
        %v3088 = vld [vmem:[%s5 + $0xc] sm:$0xf]
        %v3089 = vld [vmem:[%s5 + $0x10] sm:$0xf]
        %v3090 = vld [vmem:[%s5 + $0x14] sm:$0xf]
        %v3091 = vld [vmem:[%s5 + $0x18] sm:$0xf]
        %v3092 = vld [vmem:[%s5 + $0x1c] sm:$0xf]
        %v3093 = vld [vmem:[%s5 + $0x20] sm:$0xf]
        %v3094 = vld [vmem:[%s5 + $0x24] sm:$0xf]
        %v3095 = vld [vmem:[%s5 + $0x28] sm:$0xf]
        %v3096 = vld [vmem:[%s5 + $0x2c] sm:$0xf]
        %v3097 = vld [vmem:[%s5 + $0x30] sm:$0xf]
        %v3098 = vld [vmem:[%s5 + $0x34] sm:$0xf]
        %v3099 = vld [vmem:[%s5 + $0x38] sm:$0xf]
        %v3100 = vld [vmem:[%s5 + $0x3c] sm:$0xf]
        %v3101 = vld [vmem:[%s5 + $0x40] sm:$0xf]
        %v3102 = vld [vmem:[%s5 + $0x44] sm:$0xf]
        %v3103 = vld [vmem:[%s6] sm:$0x1]
        %v3105 = vperm.slane %v3103, 0
        %v3125 = vunpack.c.l.b16 %v3085
        %v3126 = vunpack.c.l.b16 %v3086
        %v3127 = vunpack.c.l.b16 %v3087
        %v3128 = vunpack.c.l.b16 %v3088
        %v3129 = vunpack.c.l.b16 %v3089
        %v3130 = vunpack.c.l.b16 %v3090
        %v3131 = vunpack.c.l.b16 %v3091
        %v3132 = vunpack.c.l.b16 %v3092
        %v3133 = vunpack.c.l.b16 %v3093
        %v3134 = vunpack.c.l.b16 %v3094
        %v3135 = vunpack.c.l.b16 %v3095
        %v3136 = vunpack.c.l.b16 %v3096
        %v3137 = vunpack.c.l.b16 %v3097
        %v3138 = vunpack.c.l.b16 %v3098
        %v3139 = vunpack.c.l.b16 %v3099
        %v3140 = vunpack.c.l.b16 %v3100
        %v3141 = vunpack.c.l.b16 %v3101
        %v3142 = vunpack.c.l.b16 %v3102
        %v3143 = vpack.c.b16 %v3126, %v3125
        %v3144 = vpack.c.b16 %v3128, %v3127
        %v3145 = vpack.c.b16 %v3130, %v3129
        %v3146 = vpack.c.b16 %v3132, %v3131
        %v3147 = vpack.c.b16 %v3134, %v3133
        %v3148 = vpack.c.b16 %v3136, %v3135
        %v3149 = vpack.c.b16 %v3138, %v3137
        %v3150 = vpack.c.b16 %v3140, %v3139
        %v3151 = vpack.c.b16 %v3142, %v3141
        %v3162 = vsel %vm1732, %v3084, 0
        %3164 = vmatpush.bf16.msra.mxu0 %v3150
        %3165 = vmatpush.bf16.msra.mxu0 %v3149
        %3166 = vmatpush.bf16.msra.mxu0 %v3148
        %3167 = vmatpush.bf16.msra.mxu0 %v3147
        %3168 = vmatpush.bf16.msra.mxu0 %v3146
        %3169 = vmatpush.bf16.msra.mxu0 %v3145
        %3170 = vmatpush.bf16.msra.mxu0 %v3144
        %3171 = vmatpush.bf16.msra.mxu0 %v3143
        %3172 = vmatmul.bf16.gmra.mxu0 %v3083
        %v3173 = vpop.f32.mrf.mxu0
        %v3174 = vadd.f32 %v3105, %v3173
        %v3175 = vpop.f32.mrf.mxu0
        %3176 = vdwg.mxu0
        %3177 = vmatpush.bf16.msra.mxu0 0
        %3178 = vmatpush.bf16.msra.mxu0 0
        %3179 = vmatpush.bf16.msra.mxu0 0
        %3180 = vmatpush.bf16.msra.mxu0 0
        %3181 = vmatpush.bf16.msra.mxu0 0
        %3182 = vmatpush.bf16.msra.mxu0 0
        %3183 = vmatpush.bf16.msra.mxu0 0
        %3184 = vmatpush.bf16.msra.mxu0 %v3151
        %3185 = vmatmul.bf16.gmra.mxu0 %v3162
        %v3186 = vpop.f32.mrf.mxu0
        %v3187 = vadd.f32 %v3174, %v3186
        %v3188 = vpop.f32.mrf.mxu0
        %3189 = vdwg.mxu0
        %v3190 = vmax.f32 %v3187, 0.0
        %v3191 = vpack.c.bf16 %v3080, %v3080
        %v3192 = vpack.c.bf16 %v2937, %v2937
        %v3194 = vsel %vm1732, %v3192, 0
        %3196 = vmatpush.bf16.msra.mxu0 %v3150
        %3197 = vmatpush.bf16.msra.mxu0 %v3149
        %3198 = vmatpush.bf16.msra.mxu0 %v3148
        %3199 = vmatpush.bf16.msra.mxu0 %v3147
        %3200 = vmatpush.bf16.msra.mxu0 %v3146
        %3201 = vmatpush.bf16.msra.mxu0 %v3145
        %3202 = vmatpush.bf16.msra.mxu0 %v3144
        %3203 = vmatpush.bf16.msra.mxu0 %v3143
        %3204 = vmatmul.bf16.gmra.mxu0 %v3191
        %v3205 = vpop.f32.mrf.mxu0
        %v3206 = vadd.f32 %v3105, %v3205
        %v3207 = vpop.f32.mrf.mxu0
        %3208 = vdwg.mxu0
        %3209 = vmatpush.bf16.msra.mxu0 0
        %3210 = vmatpush.bf16.msra.mxu0 0
        %3211 = vmatpush.bf16.msra.mxu0 0
        %3212 = vmatpush.bf16.msra.mxu0 0
        %3213 = vmatpush.bf16.msra.mxu0 0
        %3214 = vmatpush.bf16.msra.mxu0 0
        %3215 = vmatpush.bf16.msra.mxu0 0
        %3216 = vmatpush.bf16.msra.mxu0 %v3151
        %3217 = vmatmul.bf16.gmra.mxu0 %v3194
        %v3218 = vpop.f32.mrf.mxu0
        %v3219 = vadd.f32 %v3206, %v3218
        %v3220 = vpop.f32.mrf.mxu0
        %3221 = vdwg.mxu0
        %v3222 = vmax.f32 %v3219, 0.0
        %v3223 = vpack.c.bf16 %v3081, %v3081
        %v3224 = vpack.c.bf16 %v2938, %v2938
        %v3226 = vsel %vm1732, %v3224, 0
        %3228 = vmatpush.bf16.msra.mxu0 %v3150
        %3229 = vmatpush.bf16.msra.mxu0 %v3149
        %3230 = vmatpush.bf16.msra.mxu0 %v3148
        %3231 = vmatpush.bf16.msra.mxu0 %v3147
        %3232 = vmatpush.bf16.msra.mxu0 %v3146
        %3233 = vmatpush.bf16.msra.mxu0 %v3145
        %3234 = vmatpush.bf16.msra.mxu0 %v3144
        %3235 = vmatpush.bf16.msra.mxu0 %v3143
        %3236 = vmatmul.bf16.gmra.mxu0 %v3223
        %v3237 = vpop.f32.mrf.mxu0
        %v3238 = vadd.f32 %v3105, %v3237
        %v3239 = vpop.f32.mrf.mxu0
        %3240 = vdwg.mxu0
        %3241 = vmatpush.bf16.msra.mxu0 0
        %3242 = vmatpush.bf16.msra.mxu0 0
        %3243 = vmatpush.bf16.msra.mxu0 0
        %3244 = vmatpush.bf16.msra.mxu0 0
        %3245 = vmatpush.bf16.msra.mxu0 0
        %3246 = vmatpush.bf16.msra.mxu0 0
        %3247 = vmatpush.bf16.msra.mxu0 0
        %3248 = vmatpush.bf16.msra.mxu0 %v3151
        %3249 = vmatmul.bf16.gmra.mxu0 %v3226
        %v3250 = vpop.f32.mrf.mxu0
        %v3251 = vadd.f32 %v3238, %v3250
        %v3252 = vpop.f32.mrf.mxu0
        %3253 = vdwg.mxu0
        %v3254 = vmax.f32 %v3251, 0.0
        %v3255 = vpack.c.bf16 %v3082, %v3082
        %v3256 = vpack.c.bf16 %v2939, %v2939
        %v3258 = vsel %vm1732, %v3256, 0
        %3260 = vmatpush.bf16.msra.mxu0 %v3150
        %3261 = vmatpush.bf16.msra.mxu0 %v3149
        %3262 = vmatpush.bf16.msra.mxu0 %v3148
        %3263 = vmatpush.bf16.msra.mxu0 %v3147
        %3264 = vmatpush.bf16.msra.mxu0 %v3146
        %3265 = vmatpush.bf16.msra.mxu0 %v3145
        %3266 = vmatpush.bf16.msra.mxu0 %v3144
        %3267 = vmatpush.bf16.msra.mxu0 %v3143
        %3268 = vmatmul.bf16.gmra.mxu0 %v3255
        %v3269 = vpop.f32.mrf.mxu0
        %v3270 = vadd.f32 %v3105, %v3269
        %v3271 = vpop.f32.mrf.mxu0
        %3272 = vdwg.mxu0
        %3273 = vmatpush.bf16.msra.mxu0 0
        %3274 = vmatpush.bf16.msra.mxu0 0
        %3275 = vmatpush.bf16.msra.mxu0 0
        %3276 = vmatpush.bf16.msra.mxu0 0
        %3277 = vmatpush.bf16.msra.mxu0 0
        %3278 = vmatpush.bf16.msra.mxu0 0
        %3279 = vmatpush.bf16.msra.mxu0 0
        %3280 = vmatpush.bf16.msra.mxu0 %v3151
        %3281 = vmatmul.bf16.gmra.mxu0 %v3258
        %v3282 = vpop.f32.mrf.mxu0
        %v3283 = vadd.f32 %v3270, %v3282
        %v3284 = vpop.f32.mrf.mxu0
        %3285 = vdwg.mxu0
        %v3286 = vmax.f32 %v3283, 0.0
        %v3287 = vld [vmem:[%s8] sm:$0x1]
        %v3289 = vrot.slane %v3190, 1
        %v3291 = vadd.f32 %v3190, %v3289
        %v3292 = vadd.f32 %v3291, %v3222
        %v3294 = vrot.slane %v3222, 1
        %v3296 = vadd.f32 %v3292, %v3294
        %v3297 = vmul.f32 %v3296, 0.25
        %v3298 = vpack.c.bf16 %v3297, %v3297
        %v3299 = vld [vmem:[%s7] sm:$0xf]
        %v3300 = vld [vmem:[%s7 + $0x4] sm:$0xf]
        %v3303 = vunpack.c.l.b16 %v3299
        %v3304 = vunpack.c.l.b16 %v3300
        %v3305 = vpack.c.b16 %v3304, %v3303
        %v3308 = vsel %vm1732, %v3298, 0
        %3310 = vmatpush.bf16.msra.mxu0 0
        %3311 = vmatpush.bf16.msra.mxu0 0
        %3312 = vmatpush.bf16.msra.mxu0 0
        %3313 = vmatpush.bf16.msra.mxu0 0
        %3314 = vmatpush.bf16.msra.mxu0 0
        %3315 = vmatpush.bf16.msra.mxu0 0
        %3316 = vmatpush.bf16.msra.mxu0 0
        %3317 = vmatpush.bf16.msra.mxu0 %v3305
        %3318 = vmatmul.bf16.gmra.mxu0 %v3308
        %v3319 = vpop.f32.mrf.mxu0
        %v3320 = vadd.f32 0.0, %v3319
        %v3321 = vpop.f32.mrf.mxu0
        %3322 = vdwg.mxu0
        %v3323 = vadd.f32 %v3287, %v3320
        %s3324 = scalar_lea.vmem %s7, 8
        %v3325 = vld [vmem:[%s3324] sm:$0xf]
        %v3326 = vld [vmem:[%s3324 + $0x4] sm:$0xf]
        %v3328 = vrot.slane %v3298, 1
        %v3331 = vunpack.c.l.b16 %v3325
        %v3332 = vunpack.c.l.b16 %v3326
        %v3333 = vpack.c.b16 %v3332, %v3331
        %v3336 = vsel %vm1732, %v3328, 0
        %3338 = vmatpush.bf16.msra.mxu0 0
        %3339 = vmatpush.bf16.msra.mxu0 0
        %3340 = vmatpush.bf16.msra.mxu0 0
        %3341 = vmatpush.bf16.msra.mxu0 0
        %3342 = vmatpush.bf16.msra.mxu0 0
        %3343 = vmatpush.bf16.msra.mxu0 0
        %3344 = vmatpush.bf16.msra.mxu0 0
        %3345 = vmatpush.bf16.msra.mxu0 %v3333
        %3346 = vmatmul.bf16.gmra.mxu0 %v3336
        %v3347 = vpop.f32.mrf.mxu0
        %v3348 = vadd.f32 0.0, %v3347
        %v3349 = vpop.f32.mrf.mxu0
        %3350 = vdwg.mxu0
        %v3351 = vadd.f32 %v3323, %v3348
        %v3353 = vrot.slane %v3254, 1
        %v3355 = vadd.f32 %v3254, %v3353
        %v3356 = vadd.f32 %v3355, %v3286
        %v3358 = vrot.slane %v3286, 1
        %v3360 = vadd.f32 %v3356, %v3358
        %v3361 = vmul.f32 %v3360, 0.25
        %v3362 = vpack.c.bf16 %v3361, %v3361
        %s3363 = scalar_lea.vmem %s7, 16
        %v3364 = vld [vmem:[%s3363] sm:$0xf]
        %v3365 = vld [vmem:[%s3363 + $0x4] sm:$0xf]
        %v3368 = vunpack.c.l.b16 %v3364
        %v3369 = vunpack.c.l.b16 %v3365
        %v3370 = vpack.c.b16 %v3369, %v3368
        %v3373 = vsel %vm1732, %v3362, 0
        %3375 = vmatpush.bf16.msra.mxu0 0
        %3376 = vmatpush.bf16.msra.mxu0 0
        %3377 = vmatpush.bf16.msra.mxu0 0
        %3378 = vmatpush.bf16.msra.mxu0 0
        %3379 = vmatpush.bf16.msra.mxu0 0
        %3380 = vmatpush.bf16.msra.mxu0 0
        %3381 = vmatpush.bf16.msra.mxu0 0
        %3382 = vmatpush.bf16.msra.mxu0 %v3370
        %3383 = vmatmul.bf16.gmra.mxu0 %v3373
        %v3384 = vpop.f32.mrf.mxu0
        %v3385 = vadd.f32 0.0, %v3384
        %v3386 = vpop.f32.mrf.mxu0
        %3387 = vdwg.mxu0
        %v3388 = vadd.f32 %v3351, %v3385
        %s3389 = scalar_lea.vmem %s7, 24
        %v3390 = vld [vmem:[%s3389] sm:$0xf]
        %v3391 = vld [vmem:[%s3389 + $0x4] sm:$0xf]
        %v3393 = vrot.slane %v3362, 1
        %v3396 = vunpack.c.l.b16 %v3390
        %v3397 = vunpack.c.l.b16 %v3391
        %v3398 = vpack.c.b16 %v3397, %v3396
        %v3401 = vsel %vm1732, %v3393, 0
        %3403 = vmatpush.bf16.msra.mxu0 0
        %3404 = vmatpush.bf16.msra.mxu0 0
        %3405 = vmatpush.bf16.msra.mxu0 0
        %3406 = vmatpush.bf16.msra.mxu0 0
        %3407 = vmatpush.bf16.msra.mxu0 0
        %3408 = vmatpush.bf16.msra.mxu0 0
        %3409 = vmatpush.bf16.msra.mxu0 0
        %3410 = vmatpush.bf16.msra.mxu0 %v3398
        %3411 = vmatmul.bf16.gmra.mxu0 %v3401
        %v3412 = vpop.f32.mrf.mxu0
        %v3413 = vadd.f32 0.0, %v3412
        %v3414 = vpop.f32.mrf.mxu0
        %3415 = vdwg.mxu0
        %v3416 = vadd.f32 %v3388, %v3413
        %v3417 = vmax.f32 %v3416, 0.0
        %v3418 = vpack.c.bf16 %v3417, %v3417
        %v3419 = vld [vmem:[%s9] sm:$0xf]
        %v3420 = vld [vmem:[%s9 + $0x4] sm:$0xf]
        %v3421 = vld [vmem:[%s9 + $0x8] sm:$0xf]
        %v3422 = vld [vmem:[%s9 + $0xc] sm:$0xf]
        %v3423 = vld [vmem:[%s10] sm:$0x1]
        %v3428 = vunpack.c.l.b16 %v3419
        %v3429 = vunpack.c.l.b16 %v3420
        %v3430 = vunpack.c.l.b16 %v3421
        %v3431 = vunpack.c.l.b16 %v3422
        %v3432 = vpack.c.b16 %v3429, %v3428
        %v3433 = vpack.c.b16 %v3431, %v3430
        %v3437 = vsel %vm1798, %v3418, 0
        %3439 = vmatpush.bf16.msra.mxu0 0
        %3440 = vmatpush.bf16.msra.mxu0 0
        %3441 = vmatpush.bf16.msra.mxu0 0
        %3442 = vmatpush.bf16.msra.mxu0 0
        %3443 = vmatpush.bf16.msra.mxu0 0
        %3444 = vmatpush.bf16.msra.mxu0 0
        %3445 = vmatpush.bf16.msra.mxu0 %v3433
        %3446 = vmatpush.bf16.msra.mxu0 %v3432
        %3447 = vmatmul.bf16.gmra.mxu0 %v3437
        %v3448 = vpop.f32.mrf.mxu0
        %v3449 = vadd.f32 %v3423, %v3448
        %v3450 = vpop.f32.mrf.mxu0
        %3451 = vdwg.mxu0
        %v3452 = vmax.f32 %v3449, 0.0
        %vm3453 = vcmask 253952
        %3454 = vst.msk [vmem:[%s378] sm:$0x1] %vm3453, %v3452
        %s3455 = sand.u32 %s269, 1
        %s3456 = scalar_lea.sflag [#allocation7], %s3455
        %s3457 = sand.u32 %s269, 1
        %s3458 = scalar_lea.vmem [#allocation6], %s3457
        // Predicated region
        $region65: #{alexnet_backbone_forward.1} parent=63 // pred_check
          %p3459 = pneg %p279
        $region66: #{alexnet_backbone_forward.1} parent=63 // pred_check_branch
          %3461 = sbr.rel (%p3459) target = $region68
        $region67: #{alexnet_backbone_forward.1} parent=63 // pred_region
          %3463 = vsyncadd %s3456, 0
          %s3464 = scalar_lea.hbm %s11, %s25
          %s3466 = sshll.u32 %s3458, 4
          %s3467 = int_to_ptr.vmem [resolvable:$true] %s3466
          %s3468 = sshll.u32 %s3464, 4
          %s3469 = int_to_ptr.hbm [resolvable:$true] %s3468
          %3471 = dma.vmem_to_hbm [thread:$0]  %s3467, 16, %s3469, %s3456
        $region68: #{alexnet_backbone_forward.1} parent=63 // pred_fallthru
          _
      $region64: #{alexnet_backbone_forward.1} parent=5 // pred_fallthru
        _
      %p3472 = scmp.le.s32.totalorder 2, %s20
      // Predicated region
      $region69: #{alexnet_backbone_forward.1} parent=5 // pred_check
        %p3473 = pneg %p3472
      $region70: #{alexnet_backbone_forward.1} parent=5 // pred_check_branch
        %3475 = sbr.rel (%p3473) target = $region72
      $region71: #{alexnet_backbone_forward.1} parent=5 // pred_region
        %s3476 = ssub.s32 %s20, 2
        // Predicated region
        $region73: #{alexnet_backbone_forward.1} parent=71 // pred_check
          %p3477 = pneg %p285
        $region74: #{alexnet_backbone_forward.1} parent=71 // pred_check_branch
          %3479 = sbr.rel (%p3477) target = $region76
        $region75: #{alexnet_backbone_forward.1} parent=71 // pred_region
          %s3480 = sand.u32 %s270, 1
          %s3481 = scalar_lea.sflag [#allocation7], %s3480
          %s3482 = sand.u32 %s270, 1
          %s3483 = scalar_lea.vmem [#allocation6], %s3482
          %3485 = dma.done %s3481, 16
        $region76: #{alexnet_backbone_forward.1} parent=71 // pred_fallthru
          _
      $region72: #{alexnet_backbone_forward.1} parent=5 // pred_fallthru
        _
    $region6: #{alexnet_backbone_forward.1} parent=1 // loop_footer
      %s24 = sadd.s32 1, %s20
    $region7: #{alexnet_backbone_forward.1} parent=1 // loop_footer_branch
      %19 = sbr.rel target = $region3
    $region8: #{alexnet_backbone_forward.1} parent=1 // loop_exit
      _
    %3486 = vsyncpa [#allocation7], 1
    %s3487 = scalar_lea.sflag [#allocation7], 1
    %3488 = vsyncpa %s3487, 1

</llo_original>
